<compile_context>
chip_gen: v7x
topology: tpu7x:2x2x1
jax: 0.10.0
libtpu: 0.0.40
codegen_flags: <defaults>
</compile_context>

<pallas_src>
import functools

import jax
import jax.numpy as jnp
import numpy as np
from jax.experimental import pallas as pl
from jax.experimental.pallas import tpu as pltpu

LANE = 128
MIN_BM = 128          # minimum batch tile (keeps the MXU M-dim well fed)
BM_ALIGN = 16         # bf16-safe sublane alignment for the batch tile


def _round_up(x, m):
    return (x + m - 1) // m * m


def generator_kernel(n_layers, dout_pads, z_ref, labels_ref, wl_all_ref,
                     b_all_ref, *refs):
    """Fused conditional-MLP generator over one batch tile.

    refs = (Wx_0, ..., Wx_{L-1}, out_ref, cond_scratch)
      Wx_i:    [din_pad_i, dout_pad_i]  bf16 (lane-padded, resident)
      Wl_all:  [ncls_pad, sum(dout_pad_i)] bf16 (resident)
      b_all:   [1, sum(dout_pad_i)]     f32 (resident)
      cond:    [bm, sum(dout_pad_i)]    f32 VMEM scratch
    """
    wx_refs = refs[:n_layers]
    out_ref = refs[n_layers]
    cond_ref = refs[n_layers + 1]

    # One fused conditioning matmul for every layer (bf16 MXU inputs, f32
    # accumulation) + a single bias add; stored to explicit VMEM scratch.
    labels_bf16 = labels_ref[...].astype(jnp.bfloat16)
    cond_ref[...] = (
        jnp.dot(labels_bf16, wl_all_ref[...],
                preferred_element_type=jnp.float32)
        + b_all_ref[...])

    h = z_ref[...].astype(jnp.bfloat16)
    off = 0
    for i in range(n_layers):
        d = dout_pads[i]
        acc = (jnp.dot(h, wx_refs[i][...], preferred_element_type=jnp.float32)
               + cond_ref[:, off:off + d])
        if i < n_layers - 1:
            # nn.LeakyReLU(0.2) (slope<1 => max(x, 0.2x)); Dropout(0.0) == id.
            acc = jnp.maximum(acc, 0.2 * acc)
            h = acc.astype(jnp.bfloat16)
        else:
            out_ref[...] = jnp.tanh(acc)          # final nn.Tanh(), f32 out
        off += d


def init_generator_params(key, latent_dim, n_classes, output_dim, hidden_dims):
    """kaiming_normal(fan_in, relu) weights, zero bias (== Generator.init_weights).
    Returns per-layer (Wx, Wl, b) with W pre-transposed and pre-split."""
    dims_in = [latent_dim] + list(hidden_dims)
    dims_out = list(hidden_dims) + [output_dim]
    params = []
    for din, dout in zip(dims_in, dims_out):
        fan_in = din + n_classes
        key, k = jax.random.split(key)
        w = jax.random.normal(k, (dout, fan_in), jnp.float32) * jnp.sqrt(2.0 / fan_in)
        wt = w.T                           # [fan_in, dout]
        wx, wl = wt[:din, :], wt[din:, :]
        b = jnp.zeros((dout,), jnp.float32)
        params.append((wx, wl, b))
    return params


def prepare_padded_params(params, latent_dim, n_classes):
    """One-time lane-padding, bf16 cast, and fusion of the conditioning weights."""
    ncls_pad = _round_up(n_classes, LANE)
    din_pad_prev = _round_up(latent_dim, LANE)
    wx_pads, wl_blocks, b_blocks, dout_pads = [], [], [], []
    for (wx, wl, b) in params:
        din, dout = wx.shape
        dout_pad = _round_up(dout, LANE)
        wx_p = jnp.zeros((din_pad_prev, dout_pad), jnp.float32).at[:din, :dout].set(wx)
        wl_p = jnp.zeros((ncls_pad, dout_pad), jnp.float32).at[:n_classes, :dout].set(wl)
        b_p = jnp.zeros((dout_pad,), jnp.float32).at[:dout].set(b)
        wx_pads.append(wx_p.astype(jnp.bfloat16))       # MXU-native dtype
        wl_blocks.append(wl_p.astype(jnp.bfloat16))
        b_blocks.append(b_p)                             # bias stays f32
        dout_pads.append(dout_pad)
        din_pad_prev = dout_pad
    wl_all = jnp.concatenate(wl_blocks, axis=1)          # [ncls_pad, total_cond] bf16
    b_all = jnp.concatenate(b_blocks).reshape(1, -1)     # [1, total_cond] f32
    return wx_pads, wl_all, b_all, tuple(dout_pads)


def _build_generator_call(bm, batch_pad, latent_pad, ncls_pad, total_cond,
                          out_pad, wx_shapes, dout_pads, vmem_limit, cost,
                          single_buffer_weights):
    n_layers = len(wx_shapes)
    # Resident weights: constant index_map; request single-buffering so their
    # VMEM footprint is not doubled for zero benefit (matters on v7x 64 MiB).
    wkw = dict(pipeline_mode=pl.Buffered(buffer_count=1)) if single_buffer_weights else {}

    in_specs = [
        pl.BlockSpec((bm, latent_pad), lambda i: (i, 0)),          # z tile
        pl.BlockSpec((bm, ncls_pad), lambda i: (i, 0)),            # labels tile
        pl.BlockSpec((ncls_pad, total_cond), lambda i: (0, 0), **wkw),  # fused Wl
        pl.BlockSpec((1, total_cond), lambda i: (0, 0), **wkw),         # fused bias
    ] + [pl.BlockSpec(s, lambda i: (0, 0), **wkw) for s in wx_shapes]   # Wx (resident)

    kernel = functools.partial(generator_kernel, n_layers, dout_pads)
    return pl.pallas_call(
        kernel,
        out_shape=jax.ShapeDtypeStruct((batch_pad, out_pad), jnp.float32),
        grid_spec=pltpu.PrefetchScalarGridSpec(
            num_scalar_prefetch=0,
            grid=(batch_pad // bm,),
            in_specs=in_specs,
            out_specs=pl.BlockSpec((bm, out_pad), lambda i: (i, 0)),
            scratch_shapes=[pltpu.VMEM((bm, total_cond), jnp.float32)],  # cond
        ),
        compiler_params=pltpu.CompilerParams(
            dimension_semantics=("parallel",),
            vmem_limit_bytes=vmem_limit),
        cost_estimate=cost,
    )


def cgan_forward(z, labels, padded_params, out_dim, *, block_m=256):
    """Pallas wrapper: batch-tiled, lane-dense fused generator MLP."""
    wx_pads, wl_all, b_all, dout_pads = padded_params
    batch = z.shape[0]
    latent_pad = wx_pads[0].shape[0]
    ncls_pad = wl_all.shape[0]
    total_cond = wl_all.shape[1]
    out_pad = dout_pads[-1]

    # Batch tile: >= 128 rows (MXU-friendly), multiple of 16 (bf16-safe),
    # capped by block_m.  If the batch is big enough, keep >= 2 grid steps so
    # both v7x TensorCores get work via the "parallel" axis.
    bm = min(block_m, max(MIN_BM, _round_up(batch, BM_ALIGN)))
    if batch > MIN_BM and _round_up(batch, bm) // bm < 2:
        bm = max(MIN_BM, _round_up((batch + 1) // 2, BM_ALIGN))
    batch_pad = _round_up(batch, bm)

    # Lane/sublane-pad the inputs once in the wrapper (zeros are inert; padded
    # batch rows compute tanh(bias) garbage and are sliced off on return).
    z_p = jnp.zeros((batch_pad, latent_pad), jnp.float32).at[:batch, :z.shape[1]].set(z)
    l_p = jnp.zeros((batch_pad, ncls_pad), jnp.float32).at[:batch, :labels.shape[1]].set(labels)

    # Explicit VMEM budget: bf16 resident weights (x2 if double-buffered),
    # double-buffered f32 streaming tiles, plus the f32 cond scratch.
    weight_bytes = 2 * (wl_all.size + sum(w.size for w in wx_pads)) + 4 * b_all.size
    stream_bytes = 4 * 2 * bm * (latent_pad + ncls_pad + out_pad)
    cond_bytes = 4 * bm * total_cond
    vmem_need = 2 * weight_bytes + stream_bytes + cond_bytes
    vmem_limit = int(min(max(2 * vmem_need, 32 << 20), 64 << 20))

    flops = 2 * batch_pad * (ncls_pad * total_cond
                             + sum(w.shape[0] * w.shape[1] for w in wx_pads))
    bytes_accessed = (4 * (z_p.size + l_p.size + b_all.size + batch_pad * out_pad)
                      + 2 * (wl_all.size + sum(w.size for w in wx_pads)))
    transcendentals = batch_pad * out_pad   # tanh on the final layer
    cost = pl.CostEstimate(flops=flops, transcendentals=transcendentals,
                           bytes_accessed=bytes_accessed)

    wx_shapes = [w.shape for w in wx_pads]
    args = (z_p, l_p, wl_all, b_all, *wx_pads)
    try:
        out = _build_generator_call(bm, batch_pad, latent_pad, ncls_pad,
                                    total_cond, out_pad, wx_shapes, dout_pads,
                                    vmem_limit, cost,
                                    single_buffer_weights=True)(*args)
    except Exception:
        # Fall back to default double-buffering if pipeline_mode / Buffered(1)
        # is not supported by this JAX build.
        out = _build_generator_call(bm, batch_pad, latent_pad, ncls_pad,
                                    total_cond, out_pad, wx_shapes, dout_pads,
                                    vmem_limit, cost,
                                    single_buffer_weights=False)(*args)
    return out[:batch, :out_dim]


def cgan_forward_ref(z, labels, params):
    """Pure-JAX f32 reference mirroring the PyTorch forward loop."""
    h = z
    n_layers = len(params)
    for i, (wx, wl, b) in enumerate(params):
        h = h @ wx + labels @ wl + b        # == concat([h, labels]) @ W^T + b
        if i < n_layers - 1:
            h = jnp.where(h > 0, h, 0.2 * h)
        else:
            h = jnp.tanh(h)
    return h


if __name__ == "__main__":
    # Small synthetic CGAN config.
    n_features = 64      # generator output_dim
    n_classes = 4
    latent_dim = 16
    hidden_dims = [32, 64, 128]
    batch = 8

    key = jax.random.PRNGKey(0)
    k_params, k_z, k_lab = jax.random.split(key, 3)

    params = init_generator_params(k_params, latent_dim, n_classes,
                                   n_features, hidden_dims)
    padded = prepare_padded_params(params, latent_dim, n_classes)

    z = jax.random.normal(k_z, (batch, latent_dim), jnp.float32)
    label_ids = jax.random.randint(k_lab, (batch,), 0, n_classes)
    labels = jax.nn.one_hot(label_ids, n_classes, dtype=jnp.float32)

    out = cgan_forward(z, labels, padded, n_features)
    out = jax.block_until_ready(out)

    # f32 reference; kernel uses bf16 MXU inputs with f32 accumulation, so
    # compare at bf16-level tolerance.
    ref = cgan_forward_ref(z, labels, params)
    np.testing.assert_allclose(np.asarray(out), np.asarray(ref),
                               rtol=3e-2, atol=3e-2)
    assert out.shape == (batch, n_features)

    # TODO(synk): Dropout with p>0 and the Discriminator/training paths are not
    # part of CGAN.forward and are not implemented here.
    print("KERNEL_OK")
</pallas_src>

<mosaic_0001>
module attributes {stable_mosaic.version = 11 : i64} {
  func.func @generator_kernel(%arg0: i32, %arg1: memref<128x128xf32, #tpu.memory_space<vmem>>, %arg2: memref<128x128xf32, #tpu.memory_space<vmem>>, %arg3: memref<128x512xbf16, #tpu.memory_space<vmem>>, %arg4: memref<1x512xf32, #tpu.memory_space<vmem>>, %arg5: memref<128x128xbf16, #tpu.memory_space<vmem>>, %arg6: memref<128x128xbf16, #tpu.memory_space<vmem>>, %arg7: memref<128x128xbf16, #tpu.memory_space<vmem>>, %arg8: memref<128x128xbf16, #tpu.memory_space<vmem>>, %arg9: memref<128x128xf32, #tpu.memory_space<vmem>>, %arg10: memref<128x512xf32, #tpu.memory_space<vmem>>) attributes {dimension_semantics = [#tpu.dimension_semantics<parallel>], iteration_bounds = array<i64: 1>, scalar_prefetch = 0 : i64, scratch_operands = 1 : i64, tpu.core_type = #tpu.core_type<tc>, window_params = [{transform_indices = @transform_0, window_bounds = array<i64: 128, 128>}, {transform_indices = @transform_1, window_bounds = array<i64: 128, 128>}, {pipeline_mode = #tpu.pipeline_mode<synchronous>, transform_indices = @transform_2, window_bounds = array<i64: 128, 512>}, {pipeline_mode = #tpu.pipeline_mode<synchronous>, transform_indices = @transform_3, window_bounds = array<i64: 1, 512>}, {pipeline_mode = #tpu.pipeline_mode<synchronous>, transform_indices = @transform_4, window_bounds = array<i64: 128, 128>}, {pipeline_mode = #tpu.pipeline_mode<synchronous>, transform_indices = @transform_5, window_bounds = array<i64: 128, 128>}, {pipeline_mode = #tpu.pipeline_mode<synchronous>, transform_indices = @transform_6, window_bounds = array<i64: 128, 128>}, {pipeline_mode = #tpu.pipeline_mode<synchronous>, transform_indices = @transform_7, window_bounds = array<i64: 128, 128>}, {transform_indices = @transform_8, window_bounds = array<i64: 128, 128>}]} {
    %c0 = arith.constant 0 : index
    %c0_0 = arith.constant 0 : index
    %0 = vector.load %arg2[%c0, %c0_0] : memref<128x128xf32, #tpu.memory_space<vmem>>, vector<128x128xf32>
    %1 = arith.truncf %0 : vector<128x128xf32> to vector<128x128xbf16>
    %c0_1 = arith.constant 0 : index
    %c0_2 = arith.constant 0 : index
    %2 = vector.load %arg3[%c0_1, %c0_2] : memref<128x512xbf16, #tpu.memory_space<vmem>>, vector<128x512xbf16>
    %cst = arith.constant dense<0.000000e+00> : vector<128x512xf32>
    %3 = tpu.matmul %1, %2, %cst {dimension_numbers = #tpu.dot_dimension_numbers<[1], [0], [0], [1], [0, 0, 1, 1], [], []>} : vector<128x128xbf16>, vector<128x512xbf16>, vector<128x512xf32> -> vector<128x512xf32>
    %c0_3 = arith.constant 0 : index
    %c0_4 = arith.constant 0 : index
    %4 = vector.load %arg4[%c0_3, %c0_4] : memref<1x512xf32, #tpu.memory_space<vmem>>, vector<1x512xf32>
    %5 = vector.broadcast %4 : vector<1x512xf32> to vector<128x512xf32>
    %6 = arith.addf %3, %5 : vector<128x512xf32>
    %c0_5 = arith.constant 0 : index
    %c0_6 = arith.constant 0 : index
    %7 = vector.load %arg10[%c0_5, %c0_6] : memref<128x512xf32, #tpu.memory_space<vmem>>, vector<128x512xf32>
    tpu.vector_store %arg10[%c0_5, %c0_6], %6 {strides = array<i32>} : memref<128x512xf32, #tpu.memory_space<vmem>>, vector<128x512xf32>,
    %c0_7 = arith.constant 0 : index
    %c0_8 = arith.constant 0 : index
    %8 = vector.load %arg1[%c0_7, %c0_8] : memref<128x128xf32, #tpu.memory_space<vmem>>, vector<128x128xf32>
    %9 = arith.truncf %8 : vector<128x128xf32> to vector<128x128xbf16>
    %c0_9 = arith.constant 0 : index
    %c0_10 = arith.constant 0 : index
    %10 = vector.load %arg5[%c0_9, %c0_10] : memref<128x128xbf16, #tpu.memory_space<vmem>>, vector<128x128xbf16>
    %cst_11 = arith.constant dense<0.000000e+00> : vector<128x128xf32>
    %11 = tpu.matmul %9, %10, %cst_11 {dimension_numbers = #tpu.dot_dimension_numbers<[1], [0], [0], [1], [0, 0, 1, 1], [], []>} : vector<128x128xbf16>, vector<128x128xbf16>, vector<128x128xf32> -> vector<128x128xf32>
    %c0_12 = arith.constant 0 : index
    %c0_13 = arith.constant 0 : index
    %12 = vector.load %arg10[%c0_12, %c0_13] : memref<128x512xf32, #tpu.memory_space<vmem>>, vector<128x128xf32>
    %13 = arith.addf %11, %12 : vector<128x128xf32>
    %cst_14 = arith.constant 2.000000e-01 : f32
    %14 = vector.broadcast %cst_14 : f32 to vector<128x128xf32>
    %15 = arith.mulf %14, %13 : vector<128x128xf32>
    %16 = arith.maximumf %13, %15 : vector<128x128xf32>
    %17 = arith.truncf %16 : vector<128x128xf32> to vector<128x128xbf16>
    %c0_15 = arith.constant 0 : index
    %c0_16 = arith.constant 0 : index
    %18 = vector.load %arg6[%c0_15, %c0_16] : memref<128x128xbf16, #tpu.memory_space<vmem>>, vector<128x128xbf16>
    %cst_17 = arith.constant dense<0.000000e+00> : vector<128x128xf32>
    %19 = tpu.matmul %17, %18, %cst_17 {dimension_numbers = #tpu.dot_dimension_numbers<[1], [0], [0], [1], [0, 0, 1, 1], [], []>} : vector<128x128xbf16>, vector<128x128xbf16>, vector<128x128xf32> -> vector<128x128xf32>
    %c0_18 = arith.constant 0 : index
    %c128 = arith.constant 128 : index
    %20 = vector.load %arg10[%c0_18, %c128] : memref<128x512xf32, #tpu.memory_space<vmem>>, vector<128x128xf32>
    %21 = arith.addf %19, %20 : vector<128x128xf32>
    %cst_19 = arith.constant 2.000000e-01 : f32
    %22 = vector.broadcast %cst_19 : f32 to vector<128x128xf32>
    %23 = arith.mulf %22, %21 : vector<128x128xf32>
    %24 = arith.maximumf %21, %23 : vector<128x128xf32>
    %25 = arith.truncf %24 : vector<128x128xf32> to vector<128x128xbf16>
    %c0_20 = arith.constant 0 : index
    %c0_21 = arith.constant 0 : index
    %26 = vector.load %arg7[%c0_20, %c0_21] : memref<128x128xbf16, #tpu.memory_space<vmem>>, vector<128x128xbf16>
    %cst_22 = arith.constant dense<0.000000e+00> : vector<128x128xf32>
    %27 = tpu.matmul %25, %26, %cst_22 {dimension_numbers = #tpu.dot_dimension_numbers<[1], [0], [0], [1], [0, 0, 1, 1], [], []>} : vector<128x128xbf16>, vector<128x128xbf16>, vector<128x128xf32> -> vector<128x128xf32>
    %c0_23 = arith.constant 0 : index
    %c256 = arith.constant 256 : index
    %28 = vector.load %arg10[%c0_23, %c256] : memref<128x512xf32, #tpu.memory_space<vmem>>, vector<128x128xf32>
    %29 = arith.addf %27, %28 : vector<128x128xf32>
    %cst_24 = arith.constant 2.000000e-01 : f32
    %30 = vector.broadcast %cst_24 : f32 to vector<128x128xf32>
    %31 = arith.mulf %30, %29 : vector<128x128xf32>
    %32 = arith.maximumf %29, %31 : vector<128x128xf32>
    %33 = arith.truncf %32 : vector<128x128xf32> to vector<128x128xbf16>
    %c0_25 = arith.constant 0 : index
    %c0_26 = arith.constant 0 : index
    %34 = vector.load %arg8[%c0_25, %c0_26] : memref<128x128xbf16, #tpu.memory_space<vmem>>, vector<128x128xbf16>
    %cst_27 = arith.constant dense<0.000000e+00> : vector<128x128xf32>
    %35 = tpu.matmul %33, %34, %cst_27 {dimension_numbers = #tpu.dot_dimension_numbers<[1], [0], [0], [1], [0, 0, 1, 1], [], []>} : vector<128x128xbf16>, vector<128x128xbf16>, vector<128x128xf32> -> vector<128x128xf32>
    %c0_28 = arith.constant 0 : index
    %c384 = arith.constant 384 : index
    %36 = vector.load %arg10[%c0_28, %c384] : memref<128x512xf32, #tpu.memory_space<vmem>>, vector<128x128xf32>
    %37 = arith.addf %35, %36 : vector<128x128xf32>
    %38 = math.tanh %37 : vector<128x128xf32>
    %c0_29 = arith.constant 0 : index
    %c0_30 = arith.constant 0 : index
    %39 = vector.load %arg9[%c0_29, %c0_30] : memref<128x128xf32, #tpu.memory_space<vmem>>, vector<128x128xf32>
    tpu.vector_store %arg9[%c0_29, %c0_30], %38 {strides = array<i32>} : memref<128x128xf32, #tpu.memory_space<vmem>>, vector<128x128xf32>,
    return
  }
  func.func @transform_0(%arg0: i32) -> (i32, i32) {
    %c0_i32 = arith.constant 0 : i32
    %c0_i32_0 = arith.constant 0 : i32
    return %arg0, %c0_i32 : i32, i32
  }
  func.func @transform_1(%arg0: i32) -> (i32, i32) {
    %c0_i32 = arith.constant 0 : i32
    %c0_i32_0 = arith.constant 0 : i32
    return %arg0, %c0_i32 : i32, i32
  }
  func.func @transform_2(%arg0: i32) -> (i32, i32) {
    %c0_i32 = arith.constant 0 : i32
    %c0_i32_0 = arith.constant 0 : i32
    %c0_i32_1 = arith.constant 0 : i32
    return %c0_i32, %c0_i32_0 : i32, i32
  }
  func.func @transform_3(%arg0: i32) -> (i32, i32) {
    %c0_i32 = arith.constant 0 : i32
    %c0_i32_0 = arith.constant 0 : i32
    %c0_i32_1 = arith.constant 0 : i32
    return %c0_i32, %c0_i32_0 : i32, i32
  }
  func.func @transform_4(%arg0: i32) -> (i32, i32) {
    %c0_i32 = arith.constant 0 : i32
    %c0_i32_0 = arith.constant 0 : i32
    %c0_i32_1 = arith.constant 0 : i32
    return %c0_i32, %c0_i32_0 : i32, i32
  }
  func.func @transform_5(%arg0: i32) -> (i32, i32) {
    %c0_i32 = arith.constant 0 : i32
    %c0_i32_0 = arith.constant 0 : i32
    %c0_i32_1 = arith.constant 0 : i32
    return %c0_i32, %c0_i32_0 : i32, i32
  }
  func.func @transform_6(%arg0: i32) -> (i32, i32) {
    %c0_i32 = arith.constant 0 : i32
    %c0_i32_0 = arith.constant 0 : i32
    %c0_i32_1 = arith.constant 0 : i32
    return %c0_i32, %c0_i32_0 : i32, i32
  }
  func.func @transform_7(%arg0: i32) -> (i32, i32) {
    %c0_i32 = arith.constant 0 : i32
    %c0_i32_0 = arith.constant 0 : i32
    %c0_i32_1 = arith.constant 0 : i32
    return %c0_i32, %c0_i32_0 : i32, i32
  }
  func.func @transform_8(%arg0: i32) -> (i32, i32) {
    %c0_i32 = arith.constant 0 : i32
    %c0_i32_0 = arith.constant 0 : i32
    return %arg0, %c0_i32 : i32, i32
  }
}

module attributes {stable_mosaic.version = 11 : i64} {
  func.func @generator_kernel(%arg0: i32, %arg1: memref<128x128xf32, #tpu.memory_space<vmem>>, %arg2: memref<128x128xf32, #tpu.memory_space<vmem>>, %arg3: memref<128x512xbf16, #tpu.memory_space<vmem>>, %arg4: memref<1x512xf32, #tpu.memory_space<vmem>>, %arg5: memref<128x128xbf16, #tpu.memory_space<vmem>>, %arg6: memref<128x128xbf16, #tpu.memory_space<vmem>>, %arg7: memref<128x128xbf16, #tpu.memory_space<vmem>>, %arg8: memref<128x128xbf16, #tpu.memory_space<vmem>>, %arg9: memref<128x128xf32, #tpu.memory_space<vmem>>, %arg10: memref<128x512xf32, #tpu.memory_space<vmem>>) attributes {dimension_semantics = [#tpu.dimension_semantics<parallel>], iteration_bounds = array<i64: 1>, scalar_prefetch = 0 : i64, scratch_operands = 1 : i64, tpu.core_type = #tpu.core_type<tc>, window_params = [{transform_indices = @transform_0, window_bounds = array<i64: 128, 128>}, {transform_indices = @transform_1, window_bounds = array<i64: 128, 128>}, {pipeline_mode = #tpu.pipeline_mode<synchronous>, transform_indices = @transform_2, window_bounds = array<i64: 128, 512>}, {pipeline_mode = #tpu.pipeline_mode<synchronous>, transform_indices = @transform_3, window_bounds = array<i64: 1, 512>}, {pipeline_mode = #tpu.pipeline_mode<synchronous>, transform_indices = @transform_4, window_bounds = array<i64: 128, 128>}, {pipeline_mode = #tpu.pipeline_mode<synchronous>, transform_indices = @transform_5, window_bounds = array<i64: 128, 128>}, {pipeline_mode = #tpu.pipeline_mode<synchronous>, transform_indices = @transform_6, window_bounds = array<i64: 128, 128>}, {pipeline_mode = #tpu.pipeline_mode<synchronous>, transform_indices = @transform_7, window_bounds = array<i64: 128, 128>}, {transform_indices = @transform_8, window_bounds = array<i64: 128, 128>}]} {
    %c0 = arith.constant 0 : index
    %c0_0 = arith.constant 0 : index
    %0 = vector.load %arg2[%c0, %c0_0] : memref<128x128xf32, #tpu.memory_space<vmem>>, vector<128x128xf32>
    %1 = arith.truncf %0 : vector<128x128xf32> to vector<128x128xbf16>
    %c0_1 = arith.constant 0 : index
    %c0_2 = arith.constant 0 : index
    %2 = vector.load %arg3[%c0_1, %c0_2] : memref<128x512xbf16, #tpu.memory_space<vmem>>, vector<128x512xbf16>
    %cst = arith.constant dense<0.000000e+00> : vector<128x512xf32>
    %3 = tpu.matmul %1, %2, %cst {dimension_numbers = #tpu.dot_dimension_numbers<[1], [0], [0], [1], [0, 0, 1, 1], [], []>} : vector<128x128xbf16>, vector<128x512xbf16>, vector<128x512xf32> -> vector<128x512xf32>
    %c0_3 = arith.constant 0 : index
    %c0_4 = arith.constant 0 : index
    %4 = vector.load %arg4[%c0_3, %c0_4] : memref<1x512xf32, #tpu.memory_space<vmem>>, vector<1x512xf32>
    %5 = vector.broadcast %4 : vector<1x512xf32> to vector<128x512xf32>
    %6 = arith.addf %3, %5 : vector<128x512xf32>
    %c0_5 = arith.constant 0 : index
    %c0_6 = arith.constant 0 : index
    %7 = vector.load %arg10[%c0_5, %c0_6] : memref<128x512xf32, #tpu.memory_space<vmem>>, vector<128x512xf32>
    tpu.vector_store %arg10[%c0_5, %c0_6], %6 {strides = array<i32>} : memref<128x512xf32, #tpu.memory_space<vmem>>, vector<128x512xf32>,
    %c0_7 = arith.constant 0 : index
    %c0_8 = arith.constant 0 : index
    %8 = vector.load %arg1[%c0_7, %c0_8] : memref<128x128xf32, #tpu.memory_space<vmem>>, vector<128x128xf32>
    %9 = arith.truncf %8 : vector<128x128xf32> to vector<128x128xbf16>
    %c0_9 = arith.constant 0 : index
    %c0_10 = arith.constant 0 : index
    %10 = vector.load %arg5[%c0_9, %c0_10] : memref<128x128xbf16, #tpu.memory_space<vmem>>, vector<128x128xbf16>
    %cst_11 = arith.constant dense<0.000000e+00> : vector<128x128xf32>
    %11 = tpu.matmul %9, %10, %cst_11 {dimension_numbers = #tpu.dot_dimension_numbers<[1], [0], [0], [1], [0, 0, 1, 1], [], []>} : vector<128x128xbf16>, vector<128x128xbf16>, vector<128x128xf32> -> vector<128x128xf32>
    %c0_12 = arith.constant 0 : index
    %c0_13 = arith.constant 0 : index
    %12 = vector.load %arg10[%c0_12, %c0_13] : memref<128x512xf32, #tpu.memory_space<vmem>>, vector<128x128xf32>
    %13 = arith.addf %11, %12 : vector<128x128xf32>
    %cst_14 = arith.constant 2.000000e-01 : f32
    %14 = vector.broadcast %cst_14 : f32 to vector<128x128xf32>
    %15 = arith.mulf %14, %13 : vector<128x128xf32>
    %16 = arith.maximumf %13, %15 : vector<128x128xf32>
    %17 = arith.truncf %16 : vector<128x128xf32> to vector<128x128xbf16>
    %c0_15 = arith.constant 0 : index
    %c0_16 = arith.constant 0 : index
    %18 = vector.load %arg6[%c0_15, %c0_16] : memref<128x128xbf16, #tpu.memory_space<vmem>>, vector<128x128xbf16>
    %cst_17 = arith.constant dense<0.000000e+00> : vector<128x128xf32>
    %19 = tpu.matmul %17, %18, %cst_17 {dimension_numbers = #tpu.dot_dimension_numbers<[1], [0], [0], [1], [0, 0, 1, 1], [], []>} : vector<128x128xbf16>, vector<128x128xbf16>, vector<128x128xf32> -> vector<128x128xf32>
    %c0_18 = arith.constant 0 : index
    %c128 = arith.constant 128 : index
    %20 = vector.load %arg10[%c0_18, %c128] : memref<128x512xf32, #tpu.memory_space<vmem>>, vector<128x128xf32>
    %21 = arith.addf %19, %20 : vector<128x128xf32>
    %cst_19 = arith.constant 2.000000e-01 : f32
    %22 = vector.broadcast %cst_19 : f32 to vector<128x128xf32>
    %23 = arith.mulf %22, %21 : vector<128x128xf32>
    %24 = arith.maximumf %21, %23 : vector<128x128xf32>
    %25 = arith.truncf %24 : vector<128x128xf32> to vector<128x128xbf16>
    %c0_20 = arith.constant 0 : index
    %c0_21 = arith.constant 0 : index
    %26 = vector.load %arg7[%c0_20, %c0_21] : memref<128x128xbf16, #tpu.memory_space<vmem>>, vector<128x128xbf16>
    %cst_22 = arith.constant dense<0.000000e+00> : vector<128x128xf32>
    %27 = tpu.matmul %25, %26, %cst_22 {dimension_numbers = #tpu.dot_dimension_numbers<[1], [0], [0], [1], [0, 0, 1, 1], [], []>} : vector<128x128xbf16>, vector<128x128xbf16>, vector<128x128xf32> -> vector<128x128xf32>
    %c0_23 = arith.constant 0 : index
    %c256 = arith.constant 256 : index
    %28 = vector.load %arg10[%c0_23, %c256] : memref<128x512xf32, #tpu.memory_space<vmem>>, vector<128x128xf32>
    %29 = arith.addf %27, %28 : vector<128x128xf32>
    %cst_24 = arith.constant 2.000000e-01 : f32
    %30 = vector.broadcast %cst_24 : f32 to vector<128x128xf32>
    %31 = arith.mulf %30, %29 : vector<128x128xf32>
    %32 = arith.maximumf %29, %31 : vector<128x128xf32>
    %33 = arith.truncf %32 : vector<128x128xf32> to vector<128x128xbf16>
    %c0_25 = arith.constant 0 : index
    %c0_26 = arith.constant 0 : index
    %34 = vector.load %arg8[%c0_25, %c0_26] : memref<128x128xbf16, #tpu.memory_space<vmem>>, vector<128x128xbf16>
    %cst_27 = arith.constant dense<0.000000e+00> : vector<128x128xf32>
    %35 = tpu.matmul %33, %34, %cst_27 {dimension_numbers = #tpu.dot_dimension_numbers<[1], [0], [0], [1], [0, 0, 1, 1], [], []>} : vector<128x128xbf16>, vector<128x128xbf16>, vector<128x128xf32> -> vector<128x128xf32>
    %c0_28 = arith.constant 0 : index
    %c384 = arith.constant 384 : index
    %36 = vector.load %arg10[%c0_28, %c384] : memref<128x512xf32, #tpu.memory_space<vmem>>, vector<128x128xf32>
    %37 = arith.addf %35, %36 : vector<128x128xf32>
    %38 = math.tanh %37 : vector<128x128xf32>
    %c0_29 = arith.constant 0 : index
    %c0_30 = arith.constant 0 : index
    %39 = vector.load %arg9[%c0_29, %c0_30] : memref<128x128xf32, #tpu.memory_space<vmem>>, vector<128x128xf32>
    tpu.vector_store %arg9[%c0_29, %c0_30], %38 {strides = array<i32>} : memref<128x128xf32, #tpu.memory_space<vmem>>, vector<128x128xf32>,
    return
  }
  func.func @transform_0(%arg0: i32) -> (i32, i32) {
    %c0_i32 = arith.constant 0 : i32
    %c0_i32_0 = arith.constant 0 : i32
    return %arg0, %c0_i32 : i32, i32
  }
  func.func @transform_1(%arg0: i32) -> (i32, i32) {
    %c0_i32 = arith.constant 0 : i32
    %c0_i32_0 = arith.constant 0 : i32
    return %arg0, %c0_i32 : i32, i32
  }
  func.func @transform_2(%arg0: i32) -> (i32, i32) {
    %c0_i32 = arith.constant 0 : i32
    %c0_i32_0 = arith.constant 0 : i32
    %c0_i32_1 = arith.constant 0 : i32
    return %c0_i32, %c0_i32_0 : i32, i32
  }
  func.func @transform_3(%arg0: i32) -> (i32, i32) {
    %c0_i32 = arith.constant 0 : i32
    %c0_i32_0 = arith.constant 0 : i32
    %c0_i32_1 = arith.constant 0 : i32
    return %c0_i32, %c0_i32_0 : i32, i32
  }
  func.func @transform_4(%arg0: i32) -> (i32, i32) {
    %c0_i32 = arith.constant 0 : i32
    %c0_i32_0 = arith.constant 0 : i32
    %c0_i32_1 = arith.constant 0 : i32
    return %c0_i32, %c0_i32_0 : i32, i32
  }
  func.func @transform_5(%arg0: i32) -> (i32, i32) {
    %c0_i32 = arith.constant 0 : i32
    %c0_i32_0 = arith.constant 0 : i32
    %c0_i32_1 = arith.constant 0 : i32
    return %c0_i32, %c0_i32_0 : i32, i32
  }
  func.func @transform_6(%arg0: i32) -> (i32, i32) {
    %c0_i32 = arith.constant 0 : i32
    %c0_i32_0 = arith.constant 0 : i32
    %c0_i32_1 = arith.constant 0 : i32
    return %c0_i32, %c0_i32_0 : i32, i32
  }
  func.func @transform_7(%arg0: i32) -> (i32, i32) {
    %c0_i32 = arith.constant 0 : i32
    %c0_i32_0 = arith.constant 0 : i32
    %c0_i32_1 = arith.constant 0 : i32
    return %c0_i32, %c0_i32_0 : i32, i32
  }
  func.func @transform_8(%arg0: i32) -> (i32, i32) {
    %c0_i32 = arith.constant 0 : i32
    %c0_i32_0 = arith.constant 0 : i32
    return %arg0, %c0_i32 : i32, i32
  }
}

</mosaic_0001>

<llo_original>
// kernel: tpu_custom_call.1
$region0: #{tpu_custom_call.1}
  #allocation0 [shape = 'u32[]', space=smem, size = 0x4, offset = 0x4, fixed_abs, tag = 'smem constant byte address 0x4 - core index']
  #allocation1 [shape = 'u32[144,128]{1,0:T(1,128)}', space=vmem, size = 0x12000, scoped, tag = 'internal scratch']
  #allocation2 [shape = 'f32[128,512]{1,0:T(8,128)}', space=vmem, size = 0x40000, scoped, tag = 'scratch operand']
  %s0 = inlined_call_operand.hbm [shape: f32[128,128], index: 0, kind: input, shape index: {}]
  %s1 = inlined_call_operand.hbm [shape: f32[128,128], index: 1, kind: input, shape index: {}]
  %s2 = inlined_call_operand.hbm [shape: bf16[128,512], index: 2, kind: input, shape index: {}]
  %s3 = inlined_call_operand.vmem [shape: f32[1,512], index: 3, kind: input, shape index: {}]
  %s4 = inlined_call_operand.hbm [shape: bf16[128,128], index: 4, kind: input, shape index: {}]
  %s5 = inlined_call_operand.hbm [shape: bf16[128,128], index: 5, kind: input, shape index: {}]
  %s6 = inlined_call_operand.hbm [shape: bf16[128,128], index: 6, kind: input, shape index: {}]
  %s7 = inlined_call_operand.hbm [shape: bf16[128,128], index: 7, kind: input, shape index: {}]
  %s8 = inlined_call_operand.hbm [shape: f32[128,128], index: 8, kind: output, shape index: {}]
  %s9 = sld [smem:[#allocation0]]
  $region70: #{tpu_custom_call.1} parent=0
    _
  %s11 = ssub.s32 1, %s9
  %s12 = scalar_select 0, %s11, %s9
  $region1: #{tpu_custom_call.1} parent=0
    #allocation3 [shape = 'u8[65536]{0}', space=vmem, size = 0x10000, scoped, tag = 'input window, operand 0, single buffered']
    #allocation4 [shape = 's32[1]{0}', space=sflag, size = 0x4, scoped, tag = 'scoped memory for tpu_custom_call.1']
    #allocation5 [shape = 's32[1]{0}', space=sflag, size = 0x4, scoped, tag = 'scoped memory for tpu_custom_call.1']
    #allocation6 [shape = 'u8[65536]{0}', space=vmem, size = 0x10000, scoped, tag = 'input window, operand 1, single buffered']
    #allocation7 [shape = 's32[1]{0}', space=sflag, size = 0x4, scoped, tag = 'scoped memory for tpu_custom_call.1']
    #allocation8 [shape = 'u8[131072]{0}', space=vmem, size = 0x20000, scoped, tag = 'input window, operand 2, single buffered']
    #allocation9 [shape = 'u8[32768]{0}', space=vmem, size = 0x8000, scoped, tag = 'input window, operand 4, single buffered']
    #allocation10 [shape = 's32[1]{0}', space=sflag, size = 0x4, scoped, tag = 'scoped memory for tpu_custom_call.1']
    #allocation11 [shape = 'u8[32768]{0}', space=vmem, size = 0x8000, scoped, tag = 'input window, operand 5, single buffered']
    #allocation12 [shape = 'u8[32768]{0}', space=vmem, size = 0x8000, scoped, tag = 'input window, operand 6, single buffered']
    #allocation13 [shape = 's32[1]{0}', space=sflag, size = 0x4, scoped, tag = 'scoped memory for tpu_custom_call.1']
    #allocation14 [shape = 'u8[32768]{0}', space=vmem, size = 0x8000, scoped, tag = 'input window, operand 7, single buffered']
    #allocation15 [shape = 'u8[65536]{0}', space=vmem, size = 0x10000, scoped, tag = 'output window, operand 0, single buffered']
    %13 = vsyncpa [#allocation4], 0
    %14 = vsyncpa [#allocation7], 0
    %15 = vsyncpa [#allocation10], 0
    %16 = vsyncpa [#allocation13], 0
    %17 = vsyncpa [#allocation5], 0
    // Predicated region
    $region2: #{tpu_custom_call.1} parent=1 // pred_check
      _
    $region3: #{tpu_custom_call.1} parent=1 // pred_check_branch
      %19 = sbr.rel (0) target = $region5
    $region4: #{tpu_custom_call.1} parent=1 // pred_region
      %s21 = ssub.s32 2048, 2048
      %22 = vsyncadd [#allocation4], %s21
      %s23 = sshll.u32 [#allocation3], 4
      %s24 = int_to_ptr.vmem [resolvable:$true] %s23
      %29 = dma.hbm_to_vmem [thread:$0]  %s0, 2048, %s24, [#allocation4], 128, 128, 8
    $region5: #{tpu_custom_call.1} parent=1 // pred_fallthru
      _
    // Predicated region
    $region6: #{tpu_custom_call.1} parent=1 // pred_check
      _
    $region7: #{tpu_custom_call.1} parent=1 // pred_check_branch
      %31 = sbr.rel (0) target = $region9
    $region8: #{tpu_custom_call.1} parent=1 // pred_region
      %s33 = ssub.s32 2048, 2048
      %34 = vsyncadd [#allocation7], %s33
      %s35 = sshll.u32 [#allocation6], 4
      %s36 = int_to_ptr.vmem [resolvable:$true] %s35
      %41 = dma.hbm_to_vmem [thread:$0]  %s1, 2048, %s36, [#allocation7], 128, 128, 8
    $region9: #{tpu_custom_call.1} parent=1 // pred_fallthru
      _
    // Predicated region
    $region10: #{tpu_custom_call.1} parent=1 // pred_check
      _
    $region11: #{tpu_custom_call.1} parent=1 // pred_check_branch
      %43 = sbr.rel (0) target = $region13
    $region12: #{tpu_custom_call.1} parent=1 // pred_region
      %s45 = ssub.s32 4096, 4096
      %46 = vsyncadd [#allocation7], %s45
      %s47 = sshll.u32 [#allocation8], 4
      %s48 = int_to_ptr.vmem [resolvable:$true] %s47
      %53 = dma.hbm_to_vmem [thread:$0]  %s2, 4096, %s48, [#allocation7], 256, 256, 16
    $region13: #{tpu_custom_call.1} parent=1 // pred_fallthru
      _
    // Predicated region
    $region14: #{tpu_custom_call.1} parent=1 // pred_check
      _
    $region15: #{tpu_custom_call.1} parent=1 // pred_check_branch
      %55 = sbr.rel (0) target = $region17
    $region16: #{tpu_custom_call.1} parent=1 // pred_region
      _
    $region17: #{tpu_custom_call.1} parent=1 // pred_fallthru
      _
    // Predicated region
    $region18: #{tpu_custom_call.1} parent=1 // pred_check
      _
    $region19: #{tpu_custom_call.1} parent=1 // pred_check_branch
      %57 = sbr.rel (0) target = $region21
    $region20: #{tpu_custom_call.1} parent=1 // pred_region
      %s59 = ssub.s32 1024, 1024
      %60 = vsyncadd [#allocation10], %s59
      %s61 = sshll.u32 [#allocation9], 4
      %s62 = int_to_ptr.vmem [resolvable:$true] %s61
      %67 = dma.hbm_to_vmem [thread:$0]  %s4, 1024, %s62, [#allocation10], 64, 64, 4
    $region21: #{tpu_custom_call.1} parent=1 // pred_fallthru
      _
    // Predicated region
    $region22: #{tpu_custom_call.1} parent=1 // pred_check
      _
    $region23: #{tpu_custom_call.1} parent=1 // pred_check_branch
      %69 = sbr.rel (0) target = $region25
    $region24: #{tpu_custom_call.1} parent=1 // pred_region
      %s71 = ssub.s32 1024, 1024
      %72 = vsyncadd [#allocation10], %s71
      %s73 = sshll.u32 [#allocation11], 4
      %s74 = int_to_ptr.vmem [resolvable:$true] %s73
      %79 = dma.hbm_to_vmem [thread:$0]  %s5, 1024, %s74, [#allocation10], 64, 64, 4
    $region25: #{tpu_custom_call.1} parent=1 // pred_fallthru
      _
    // Predicated region
    $region26: #{tpu_custom_call.1} parent=1 // pred_check
      _
    $region27: #{tpu_custom_call.1} parent=1 // pred_check_branch
      %81 = sbr.rel (0) target = $region29
    $region28: #{tpu_custom_call.1} parent=1 // pred_region
      %s83 = ssub.s32 1024, 1024
      %84 = vsyncadd [#allocation13], %s83
      %s85 = sshll.u32 [#allocation12], 4
      %s86 = int_to_ptr.vmem [resolvable:$true] %s85
      %91 = dma.hbm_to_vmem [thread:$0]  %s6, 1024, %s86, [#allocation13], 64, 64, 4
    $region29: #{tpu_custom_call.1} parent=1 // pred_fallthru
      _
    // Predicated region
    $region30: #{tpu_custom_call.1} parent=1 // pred_check
      _
    $region31: #{tpu_custom_call.1} parent=1 // pred_check_branch
      %93 = sbr.rel (0) target = $region33
    $region32: #{tpu_custom_call.1} parent=1 // pred_region
      %s95 = ssub.s32 1024, 1024
      %96 = vsyncadd [#allocation13], %s95
      %s97 = sshll.u32 [#allocation14], 4
      %s98 = int_to_ptr.vmem [resolvable:$true] %s97
      %103 = dma.hbm_to_vmem [thread:$0]  %s7, 1024, %s98, [#allocation13], 64, 64, 4
    $region33: #{tpu_custom_call.1} parent=1 // pred_fallthru
      _
    // Predicated region
    $region34: #{tpu_custom_call.1} parent=1 // pred_check
      _
    $region35: #{tpu_custom_call.1} parent=1 // pred_check_branch
      %105 = sbr.rel (0) target = $region37
    $region36: #{tpu_custom_call.1} parent=1 // pred_region
      %106 = dma.done [#allocation4], 2048
    $region37: #{tpu_custom_call.1} parent=1 // pred_fallthru
      _
    // Predicated region
    $region38: #{tpu_custom_call.1} parent=1 // pred_check
      _
    $region39: #{tpu_custom_call.1} parent=1 // pred_check_branch
      %108 = sbr.rel (0) target = $region41
    $region40: #{tpu_custom_call.1} parent=1 // pred_region
      %109 = dma.done [#allocation7], 2048
    $region41: #{tpu_custom_call.1} parent=1 // pred_fallthru
      _
    // Predicated region
    $region42: #{tpu_custom_call.1} parent=1 // pred_check
      _
    $region43: #{tpu_custom_call.1} parent=1 // pred_check_branch
      %111 = sbr.rel (0) target = $region45
    $region44: #{tpu_custom_call.1} parent=1 // pred_region
      %112 = dma.done [#allocation7], 4096
    $region45: #{tpu_custom_call.1} parent=1 // pred_fallthru
      _
    // Predicated region
    $region46: #{tpu_custom_call.1} parent=1 // pred_check
      _
    $region47: #{tpu_custom_call.1} parent=1 // pred_check_branch
      %114 = sbr.rel (0) target = $region49
    $region48: #{tpu_custom_call.1} parent=1 // pred_region
      %115 = dma.done [#allocation10], 1024
    $region49: #{tpu_custom_call.1} parent=1 // pred_fallthru
      _
    // Predicated region
    $region50: #{tpu_custom_call.1} parent=1 // pred_check
      _
    $region51: #{tpu_custom_call.1} parent=1 // pred_check_branch
      %117 = sbr.rel (0) target = $region53
    $region52: #{tpu_custom_call.1} parent=1 // pred_region
      %118 = dma.done [#allocation10], 1024
    $region53: #{tpu_custom_call.1} parent=1 // pred_fallthru
      _
    // Predicated region
    $region54: #{tpu_custom_call.1} parent=1 // pred_check
      _
    $region55: #{tpu_custom_call.1} parent=1 // pred_check_branch
      %120 = sbr.rel (0) target = $region57
    $region56: #{tpu_custom_call.1} parent=1 // pred_region
      %121 = dma.done [#allocation13], 1024
    $region57: #{tpu_custom_call.1} parent=1 // pred_fallthru
      _
    // Predicated region
    $region58: #{tpu_custom_call.1} parent=1 // pred_check
      _
    $region59: #{tpu_custom_call.1} parent=1 // pred_check_branch
      %123 = sbr.rel (0) target = $region61
    $region60: #{tpu_custom_call.1} parent=1 // pred_region
      %124 = dma.done [#allocation13], 1024
    $region61: #{tpu_custom_call.1} parent=1 // pred_fallthru
      _
    %v126 = vld [vmem:[#allocation6] sm:$0xff]
    %v127 = vld [vmem:[#allocation6 + $0x8] sm:$0xff]
    %v128 = vld [vmem:[#allocation6 + $0x10] sm:$0xff]
    %v129 = vld [vmem:[#allocation6 + $0x18] sm:$0xff]
    %v130 = vld [vmem:[#allocation6 + $0x20] sm:$0xff]
    %v131 = vld [vmem:[#allocation6 + $0x28] sm:$0xff]
    %v132 = vld [vmem:[#allocation6 + $0x30] sm:$0xff]
    %v133 = vld [vmem:[#allocation6 + $0x38] sm:$0xff]
    %v134 = vld [vmem:[#allocation6 + $0x40] sm:$0xff]
    %v135 = vld [vmem:[#allocation6 + $0x48] sm:$0xff]
    %v136 = vld [vmem:[#allocation6 + $0x50] sm:$0xff]
    %v137 = vld [vmem:[#allocation6 + $0x58] sm:$0xff]
    %v138 = vld [vmem:[#allocation6 + $0x60] sm:$0xff]
    %v139 = vld [vmem:[#allocation6 + $0x68] sm:$0xff]
    %v140 = vld [vmem:[#allocation6 + $0x70] sm:$0xff]
    %v141 = vld [vmem:[#allocation6 + $0x78] sm:$0xff]
    %v142 = vpack.c.bf16 %v127, %v126
    %v143 = vpack.c.bf16 %v129, %v128
    %v144 = vpack.c.bf16 %v131, %v130
    %v145 = vpack.c.bf16 %v133, %v132
    %v146 = vpack.c.bf16 %v135, %v134
    %v147 = vpack.c.bf16 %v137, %v136
    %v148 = vpack.c.bf16 %v139, %v138
    %v149 = vpack.c.bf16 %v141, %v140
    %v150 = vld [vmem:[#allocation8] sm:$0xff]
    %v151 = vld [vmem:[#allocation8 + $0x8] sm:$0xff]
    %v152 = vld [vmem:[#allocation8 + $0x10] sm:$0xff]
    %v153 = vld [vmem:[#allocation8 + $0x18] sm:$0xff]
    %v154 = vld [vmem:[#allocation8 + $0x20] sm:$0xff]
    %v155 = vld [vmem:[#allocation8 + $0x28] sm:$0xff]
    %v156 = vld [vmem:[#allocation8 + $0x30] sm:$0xff]
    %v157 = vld [vmem:[#allocation8 + $0x38] sm:$0xff]
    %v158 = vld [vmem:[#allocation8 + $0x40] sm:$0xff]
    %v159 = vld [vmem:[#allocation8 + $0x48] sm:$0xff]
    %v160 = vld [vmem:[#allocation8 + $0x50] sm:$0xff]
    %v161 = vld [vmem:[#allocation8 + $0x58] sm:$0xff]
    %v162 = vld [vmem:[#allocation8 + $0x60] sm:$0xff]
    %v163 = vld [vmem:[#allocation8 + $0x68] sm:$0xff]
    %v164 = vld [vmem:[#allocation8 + $0x70] sm:$0xff]
    %v165 = vld [vmem:[#allocation8 + $0x78] sm:$0xff]
    %v166 = vld [vmem:[#allocation8 + $0x80] sm:$0xff]
    %v167 = vld [vmem:[#allocation8 + $0x88] sm:$0xff]
    %v168 = vld [vmem:[#allocation8 + $0x90] sm:$0xff]
    %v169 = vld [vmem:[#allocation8 + $0x98] sm:$0xff]
    %v170 = vld [vmem:[#allocation8 + $0xa0] sm:$0xff]
    %v171 = vld [vmem:[#allocation8 + $0xa8] sm:$0xff]
    %v172 = vld [vmem:[#allocation8 + $0xb0] sm:$0xff]
    %v173 = vld [vmem:[#allocation8 + $0xb8] sm:$0xff]
    %v174 = vld [vmem:[#allocation8 + $0xc0] sm:$0xff]
    %v175 = vld [vmem:[#allocation8 + $0xc8] sm:$0xff]
    %v176 = vld [vmem:[#allocation8 + $0xd0] sm:$0xff]
    %v177 = vld [vmem:[#allocation8 + $0xd8] sm:$0xff]
    %v178 = vld [vmem:[#allocation8 + $0xe0] sm:$0xff]
    %v179 = vld [vmem:[#allocation8 + $0xe8] sm:$0xff]
    %v180 = vld [vmem:[#allocation8 + $0xf0] sm:$0xff]
    %v181 = vld [vmem:[#allocation8 + $0xf8] sm:$0xff]
    %v182 = vld [vmem:[%s3] sm:$0xf]
    %v184 = vlaneseq
    %v185 = vshrl.u32 %v184, 7
    %v186 = vsub.s32 0, %v185
    %v187 = vrot.slane %v182, %v186
    %v188 = vlaneseq
    %v189 = vshrl.u32 %v188, 7
    %v190 = vsub.s32 1, %v189
    %v191 = vrot.slane %v182, %v190
    %v192 = vlaneseq
    %v193 = vshrl.u32 %v192, 7
    %v194 = vsub.s32 2, %v193
    %v195 = vrot.slane %v182, %v194
    %v196 = vlaneseq
    %v197 = vshrl.u32 %v196, 7
    %v198 = vsub.s32 3, %v197
    %v199 = vrot.slane %v182, %v198
    %v236 = vunpack.c.l.b16 %v150
    %v237 = vunpack.c.h.b16 %v150
    %v238 = vunpack.c.l.b16 %v151
    %v239 = vunpack.c.h.b16 %v151
    %v240 = vunpack.c.l.b16 %v152
    %v241 = vunpack.c.h.b16 %v152
    %v242 = vunpack.c.l.b16 %v153
    %v243 = vunpack.c.h.b16 %v153
    %v244 = vunpack.c.l.b16 %v154
    %v245 = vunpack.c.h.b16 %v154
    %v246 = vunpack.c.l.b16 %v155
    %v247 = vunpack.c.h.b16 %v155
    %v248 = vunpack.c.l.b16 %v156
    %v249 = vunpack.c.h.b16 %v156
    %v250 = vunpack.c.l.b16 %v157
    %v251 = vunpack.c.h.b16 %v157
    %v252 = vunpack.c.l.b16 %v158
    %v253 = vunpack.c.h.b16 %v158
    %v254 = vunpack.c.l.b16 %v159
    %v255 = vunpack.c.h.b16 %v159
    %v256 = vunpack.c.l.b16 %v160
    %v257 = vunpack.c.h.b16 %v160
    %v258 = vunpack.c.l.b16 %v161
    %v259 = vunpack.c.h.b16 %v161
    %v260 = vunpack.c.l.b16 %v162
    %v261 = vunpack.c.h.b16 %v162
    %v262 = vunpack.c.l.b16 %v163
    %v263 = vunpack.c.h.b16 %v163
    %v264 = vunpack.c.l.b16 %v164
    %v265 = vunpack.c.h.b16 %v164
    %v266 = vunpack.c.l.b16 %v165
    %v267 = vunpack.c.h.b16 %v165
    %v268 = vunpack.c.l.b16 %v166
    %v269 = vunpack.c.h.b16 %v166
    %v270 = vunpack.c.l.b16 %v167
    %v271 = vunpack.c.h.b16 %v167
    %v272 = vunpack.c.l.b16 %v168
    %v273 = vunpack.c.h.b16 %v168
    %v274 = vunpack.c.l.b16 %v169
    %v275 = vunpack.c.h.b16 %v169
    %v276 = vunpack.c.l.b16 %v170
    %v277 = vunpack.c.h.b16 %v170
    %v278 = vunpack.c.l.b16 %v171
    %v279 = vunpack.c.h.b16 %v171
    %v280 = vunpack.c.l.b16 %v172
    %v281 = vunpack.c.h.b16 %v172
    %v282 = vunpack.c.l.b16 %v173
    %v283 = vunpack.c.h.b16 %v173
    %v284 = vunpack.c.l.b16 %v174
    %v285 = vunpack.c.h.b16 %v174
    %v286 = vunpack.c.l.b16 %v175
    %v287 = vunpack.c.h.b16 %v175
    %v288 = vunpack.c.l.b16 %v176
    %v289 = vunpack.c.h.b16 %v176
    %v290 = vunpack.c.l.b16 %v177
    %v291 = vunpack.c.h.b16 %v177
    %v292 = vunpack.c.l.b16 %v178
    %v293 = vunpack.c.h.b16 %v178
    %v294 = vunpack.c.l.b16 %v179
    %v295 = vunpack.c.h.b16 %v179
    %v296 = vunpack.c.l.b16 %v180
    %v297 = vunpack.c.h.b16 %v180
    %v298 = vunpack.c.l.b16 %v181
    %v299 = vunpack.c.h.b16 %v181
    %v300 = vpack.c.b16 %v240, %v236
    %v301 = vpack.c.b16 %v241, %v237
    %v302 = vpack.c.b16 %v242, %v238
    %v303 = vpack.c.b16 %v243, %v239
    %v304 = vpack.c.b16 %v248, %v244
    %v305 = vpack.c.b16 %v249, %v245
    %v306 = vpack.c.b16 %v250, %v246
    %v307 = vpack.c.b16 %v251, %v247
    %v308 = vpack.c.b16 %v256, %v252
    %v309 = vpack.c.b16 %v257, %v253
    %v310 = vpack.c.b16 %v258, %v254
    %v311 = vpack.c.b16 %v259, %v255
    %v312 = vpack.c.b16 %v264, %v260
    %v313 = vpack.c.b16 %v265, %v261
    %v314 = vpack.c.b16 %v266, %v262
    %v315 = vpack.c.b16 %v267, %v263
    %v316 = vpack.c.b16 %v272, %v268
    %v317 = vpack.c.b16 %v273, %v269
    %v318 = vpack.c.b16 %v274, %v270
    %v319 = vpack.c.b16 %v275, %v271
    %v320 = vpack.c.b16 %v280, %v276
    %v321 = vpack.c.b16 %v281, %v277
    %v322 = vpack.c.b16 %v282, %v278
    %v323 = vpack.c.b16 %v283, %v279
    %v324 = vpack.c.b16 %v288, %v284
    %v325 = vpack.c.b16 %v289, %v285
    %v326 = vpack.c.b16 %v290, %v286
    %v327 = vpack.c.b16 %v291, %v287
    %v328 = vpack.c.b16 %v296, %v292
    %v329 = vpack.c.b16 %v297, %v293
    %v330 = vpack.c.b16 %v298, %v294
    %v331 = vpack.c.b16 %v299, %v295
    %364 = vmatprep.subr.bf16.mxu0 %v301
    %365 = vmatpush1.bf16.msra.mxu0 %v300
    %366 = vmatprep.subr.bf16.mxu0 %v305
    %367 = vmatpush1.bf16.msra.mxu0 %v304
    %368 = vmatprep.subr.bf16.mxu0 %v309
    %369 = vmatpush1.bf16.msra.mxu0 %v308
    %370 = vmatprep.subr.bf16.mxu0 %v313
    %371 = vmatpush1.bf16.msra.mxu0 %v312
    %372 = vmatprep.subr.bf16.mxu0 %v317
    %373 = vmatpush1.bf16.msra.mxu0 %v316
    %374 = vmatprep.subr.bf16.mxu0 %v321
    %375 = vmatpush1.bf16.msra.mxu0 %v320
    %376 = vmatprep.subr.bf16.mxu0 %v325
    %377 = vmatpush1.bf16.msra.mxu0 %v324
    %378 = vmatprep.subr.bf16.mxu0 %v329
    %379 = vmatpush1.bf16.msra.mxu0 %v328
    %380 = vmatprep.subr.bf16.mxu0 0
    %381 = vmatpush1.bf16.msra.mxu0 0
    %382 = vmatprep.subr.bf16.mxu0 0
    %383 = vmatpush1.bf16.msra.mxu0 0
    %384 = vmatprep.subr.bf16.mxu0 0
    %385 = vmatpush1.bf16.msra.mxu0 0
    %386 = vmatprep.subr.bf16.mxu0 0
    %387 = vmatpush1.bf16.msra.mxu0 0
    %388 = vmatprep.subr.bf16.mxu0 0
    %389 = vmatpush1.bf16.msra.mxu0 0
    %390 = vmatprep.subr.bf16.mxu0 0
    %391 = vmatpush1.bf16.msra.mxu0 0
    %392 = vmatprep.subr.bf16.mxu0 0
    %393 = vmatpush1.bf16.msra.mxu0 0
    %394 = vmatprep.subr.bf16.mxu0 0
    %395 = vmatpush1.bf16.msra.mxu0 0
    %396 = vmatprep.mubr.bf16.mxu0 0
    %397 = vmatmul.mubr.bf16.gmra.mrb[0].mxu0 %v142
    %v398 = vpop.f32.mrb[0].mxu0
    %v399 = vadd.f32 %v187, %v398
    %v400 = vpop.f32.mrb[0].mxu0
    %v401 = vadd.f32 %v191, %v400
    %v402 = vpop.f32.mrb[0].mxu0
    %v403 = vadd.f32 %v187, %v402
    %v404 = vpop.f32.mrb[0].mxu0
    %v405 = vadd.f32 %v191, %v404
    %406 = vmatprep.mubr.bf16.mxu0 0
    %407 = vmatmul.mubr.bf16.gmra.mrb[0].mxu0 %v143
    %v408 = vpop.f32.mrb[0].mxu0
    %v409 = vadd.f32 %v187, %v408
    %v410 = vpop.f32.mrb[0].mxu0
    %v411 = vadd.f32 %v191, %v410
    %v412 = vpop.f32.mrb[0].mxu0
    %v413 = vadd.f32 %v187, %v412
    %v414 = vpop.f32.mrb[0].mxu0
    %v415 = vadd.f32 %v191, %v414
    %416 = vmatprep.mubr.bf16.mxu0 0
    %417 = vmatmul.mubr.bf16.gmra.mrb[0].mxu0 %v144
    %v418 = vpop.f32.mrb[0].mxu0
    %v419 = vadd.f32 %v187, %v418
    %v420 = vpop.f32.mrb[0].mxu0
    %v421 = vadd.f32 %v191, %v420
    %v422 = vpop.f32.mrb[0].mxu0
    %v423 = vadd.f32 %v187, %v422
    %v424 = vpop.f32.mrb[0].mxu0
    %v425 = vadd.f32 %v191, %v424
    %426 = vmatprep.mubr.bf16.mxu0 0
    %427 = vmatmul.mubr.bf16.gmra.mrb[0].mxu0 %v145
    %v428 = vpop.f32.mrb[0].mxu0
    %v429 = vadd.f32 %v187, %v428
    %v430 = vpop.f32.mrb[0].mxu0
    %v431 = vadd.f32 %v191, %v430
    %v432 = vpop.f32.mrb[0].mxu0
    %v433 = vadd.f32 %v187, %v432
    %v434 = vpop.f32.mrb[0].mxu0
    %v435 = vadd.f32 %v191, %v434
    %436 = vmatprep.mubr.bf16.mxu0 0
    %437 = vmatmul.mubr.bf16.gmra.mrb[0].mxu0 %v146
    %v438 = vpop.f32.mrb[0].mxu0
    %v439 = vadd.f32 %v187, %v438
    %v440 = vpop.f32.mrb[0].mxu0
    %v441 = vadd.f32 %v191, %v440
    %v442 = vpop.f32.mrb[0].mxu0
    %v443 = vadd.f32 %v187, %v442
    %v444 = vpop.f32.mrb[0].mxu0
    %v445 = vadd.f32 %v191, %v444
    %446 = vmatprep.mubr.bf16.mxu0 0
    %447 = vmatmul.mubr.bf16.gmra.mrb[0].mxu0 %v147
    %v448 = vpop.f32.mrb[0].mxu0
    %v449 = vadd.f32 %v187, %v448
    %v450 = vpop.f32.mrb[0].mxu0
    %v451 = vadd.f32 %v191, %v450
    %v452 = vpop.f32.mrb[0].mxu0
    %v453 = vadd.f32 %v187, %v452
    %v454 = vpop.f32.mrb[0].mxu0
    %v455 = vadd.f32 %v191, %v454
    %456 = vmatprep.mubr.bf16.mxu0 0
    %457 = vmatmul.mubr.bf16.gmra.mrb[0].mxu0 %v148
    %v458 = vpop.f32.mrb[0].mxu0
    %v459 = vadd.f32 %v187, %v458
    %v460 = vpop.f32.mrb[0].mxu0
    %v461 = vadd.f32 %v191, %v460
    %v462 = vpop.f32.mrb[0].mxu0
    %v463 = vadd.f32 %v187, %v462
    %v464 = vpop.f32.mrb[0].mxu0
    %v465 = vadd.f32 %v191, %v464
    %466 = vmatprep.mubr.bf16.mxu0 0
    %467 = vmatmul.mubr.bf16.gmra.mrb[0].mxu0 %v149
    %v468 = vpop.f32.mrb[0].mxu0
    %v469 = vadd.f32 %v187, %v468
    %v470 = vpop.f32.mrb[0].mxu0
    %v471 = vadd.f32 %v191, %v470
    %v472 = vpop.f32.mrb[0].mxu0
    %v473 = vadd.f32 %v187, %v472
    %v474 = vpop.f32.mrb[0].mxu0
    %v475 = vadd.f32 %v191, %v474
    %476 = vdwg.mxu0
    %477 = vmatprep.subr.bf16.mxu0 %v303
    %478 = vmatpush1.bf16.msra.mxu0 %v302
    %479 = vmatprep.subr.bf16.mxu0 %v307
    %480 = vmatpush1.bf16.msra.mxu0 %v306
    %481 = vmatprep.subr.bf16.mxu0 %v311
    %482 = vmatpush1.bf16.msra.mxu0 %v310
    %483 = vmatprep.subr.bf16.mxu0 %v315
    %484 = vmatpush1.bf16.msra.mxu0 %v314
    %485 = vmatprep.subr.bf16.mxu0 %v319
    %486 = vmatpush1.bf16.msra.mxu0 %v318
    %487 = vmatprep.subr.bf16.mxu0 %v323
    %488 = vmatpush1.bf16.msra.mxu0 %v322
    %489 = vmatprep.subr.bf16.mxu0 %v327
    %490 = vmatpush1.bf16.msra.mxu0 %v326
    %491 = vmatprep.subr.bf16.mxu0 %v331
    %492 = vmatpush1.bf16.msra.mxu0 %v330
    %493 = vmatprep.subr.bf16.mxu0 0
    %494 = vmatpush1.bf16.msra.mxu0 0
    %495 = vmatprep.subr.bf16.mxu0 0
    %496 = vmatpush1.bf16.msra.mxu0 0
    %497 = vmatprep.subr.bf16.mxu0 0
    %498 = vmatpush1.bf16.msra.mxu0 0
    %499 = vmatprep.subr.bf16.mxu0 0
    %500 = vmatpush1.bf16.msra.mxu0 0
    %501 = vmatprep.subr.bf16.mxu0 0
    %502 = vmatpush1.bf16.msra.mxu0 0
    %503 = vmatprep.subr.bf16.mxu0 0
    %504 = vmatpush1.bf16.msra.mxu0 0
    %505 = vmatprep.subr.bf16.mxu0 0
    %506 = vmatpush1.bf16.msra.mxu0 0
    %507 = vmatprep.subr.bf16.mxu0 0
    %508 = vmatpush1.bf16.msra.mxu0 0
    %509 = vmatprep.mubr.bf16.mxu0 0
    %510 = vmatmul.mubr.bf16.gmra.mrb[0].mxu0 %v142
    %v511 = vpop.f32.mrb[0].mxu0
    %v512 = vadd.f32 %v195, %v511
    %v513 = vpop.f32.mrb[0].mxu0
    %v514 = vadd.f32 %v199, %v513
    %v515 = vpop.f32.mrb[0].mxu0
    %v516 = vadd.f32 %v195, %v515
    %v517 = vpop.f32.mrb[0].mxu0
    %v518 = vadd.f32 %v199, %v517
    %519 = vmatprep.mubr.bf16.mxu0 0
    %520 = vmatmul.mubr.bf16.gmra.mrb[0].mxu0 %v143
    %v521 = vpop.f32.mrb[0].mxu0
    %v522 = vadd.f32 %v195, %v521
    %v523 = vpop.f32.mrb[0].mxu0
    %v524 = vadd.f32 %v199, %v523
    %v525 = vpop.f32.mrb[0].mxu0
    %v526 = vadd.f32 %v195, %v525
    %v527 = vpop.f32.mrb[0].mxu0
    %v528 = vadd.f32 %v199, %v527
    %529 = vmatprep.mubr.bf16.mxu0 0
    %530 = vmatmul.mubr.bf16.gmra.mrb[0].mxu0 %v144
    %v531 = vpop.f32.mrb[0].mxu0
    %v532 = vadd.f32 %v195, %v531
    %v533 = vpop.f32.mrb[0].mxu0
    %v534 = vadd.f32 %v199, %v533
    %v535 = vpop.f32.mrb[0].mxu0
    %v536 = vadd.f32 %v195, %v535
    %v537 = vpop.f32.mrb[0].mxu0
    %v538 = vadd.f32 %v199, %v537
    %539 = vmatprep.mubr.bf16.mxu0 0
    %540 = vmatmul.mubr.bf16.gmra.mrb[0].mxu0 %v145
    %v541 = vpop.f32.mrb[0].mxu0
    %v542 = vadd.f32 %v195, %v541
    %v543 = vpop.f32.mrb[0].mxu0
    %v544 = vadd.f32 %v199, %v543
    %v545 = vpop.f32.mrb[0].mxu0
    %v546 = vadd.f32 %v195, %v545
    %v547 = vpop.f32.mrb[0].mxu0
    %v548 = vadd.f32 %v199, %v547
    %549 = vmatprep.mubr.bf16.mxu0 0
    %550 = vmatmul.mubr.bf16.gmra.mrb[0].mxu0 %v146
    %v551 = vpop.f32.mrb[0].mxu0
    %v552 = vadd.f32 %v195, %v551
    %v553 = vpop.f32.mrb[0].mxu0
    %v554 = vadd.f32 %v199, %v553
    %v555 = vpop.f32.mrb[0].mxu0
    %v556 = vadd.f32 %v195, %v555
    %v557 = vpop.f32.mrb[0].mxu0
    %v558 = vadd.f32 %v199, %v557
    %559 = vmatprep.mubr.bf16.mxu0 0
    %560 = vmatmul.mubr.bf16.gmra.mrb[0].mxu0 %v147
    %v561 = vpop.f32.mrb[0].mxu0
    %v562 = vadd.f32 %v195, %v561
    %v563 = vpop.f32.mrb[0].mxu0
    %v564 = vadd.f32 %v199, %v563
    %v565 = vpop.f32.mrb[0].mxu0
    %v566 = vadd.f32 %v195, %v565
    %v567 = vpop.f32.mrb[0].mxu0
    %v568 = vadd.f32 %v199, %v567
    %569 = vmatprep.mubr.bf16.mxu0 0
    %570 = vmatmul.mubr.bf16.gmra.mrb[0].mxu0 %v148
    %v571 = vpop.f32.mrb[0].mxu0
    %v572 = vadd.f32 %v195, %v571
    %v573 = vpop.f32.mrb[0].mxu0
    %v574 = vadd.f32 %v199, %v573
    %v575 = vpop.f32.mrb[0].mxu0
    %v576 = vadd.f32 %v195, %v575
    %v577 = vpop.f32.mrb[0].mxu0
    %v578 = vadd.f32 %v199, %v577
    %579 = vmatprep.mubr.bf16.mxu0 0
    %580 = vmatmul.mubr.bf16.gmra.mrb[0].mxu0 %v149
    %v581 = vpop.f32.mrb[0].mxu0
    %v582 = vadd.f32 %v195, %v581
    %v583 = vpop.f32.mrb[0].mxu0
    %v584 = vadd.f32 %v199, %v583
    %v585 = vpop.f32.mrb[0].mxu0
    %v586 = vadd.f32 %v195, %v585
    %v587 = vpop.f32.mrb[0].mxu0
    %v588 = vadd.f32 %v199, %v587
    %589 = vdwg.mxu0
    %590 = vst [vmem:[#allocation2] sm:$0xff] %v399
    %591 = vst [vmem:[#allocation2 + $0x8] sm:$0xff] %v401
    %592 = vst [vmem:[#allocation2 + $0x10] sm:$0xff] %v512
    %593 = vst [vmem:[#allocation2 + $0x18] sm:$0xff] %v514
    %594 = vst [vmem:[#allocation2 + $0x20] sm:$0xff] %v403
    %595 = vst [vmem:[#allocation2 + $0x28] sm:$0xff] %v405
    %596 = vst [vmem:[#allocation2 + $0x30] sm:$0xff] %v516
    %597 = vst [vmem:[#allocation2 + $0x38] sm:$0xff] %v518
    %598 = vst [vmem:[#allocation2 + $0x40] sm:$0xff] %v409
    %599 = vst [vmem:[#allocation2 + $0x48] sm:$0xff] %v411
    %600 = vst [vmem:[#allocation2 + $0x50] sm:$0xff] %v522
    %601 = vst [vmem:[#allocation2 + $0x58] sm:$0xff] %v524
    %602 = vst [vmem:[#allocation2 + $0x60] sm:$0xff] %v413
    %603 = vst [vmem:[#allocation2 + $0x68] sm:$0xff] %v415
    %604 = vst [vmem:[#allocation2 + $0x70] sm:$0xff] %v526
    %605 = vst [vmem:[#allocation2 + $0x78] sm:$0xff] %v528
    %606 = vst [vmem:[#allocation2 + $0x80] sm:$0xff] %v419
    %607 = vst [vmem:[#allocation2 + $0x88] sm:$0xff] %v421
    %608 = vst [vmem:[#allocation2 + $0x90] sm:$0xff] %v532
    %609 = vst [vmem:[#allocation2 + $0x98] sm:$0xff] %v534
    %610 = vst [vmem:[#allocation2 + $0xa0] sm:$0xff] %v423
    %611 = vst [vmem:[#allocation2 + $0xa8] sm:$0xff] %v425
    %612 = vst [vmem:[#allocation2 + $0xb0] sm:$0xff] %v536
    %613 = vst [vmem:[#allocation2 + $0xb8] sm:$0xff] %v538
    %614 = vst [vmem:[#allocation2 + $0xc0] sm:$0xff] %v429
    %615 = vst [vmem:[#allocation2 + $0xc8] sm:$0xff] %v431
    %616 = vst [vmem:[#allocation2 + $0xd0] sm:$0xff] %v542
    %617 = vst [vmem:[#allocation2 + $0xd8] sm:$0xff] %v544
    %618 = vst [vmem:[#allocation2 + $0xe0] sm:$0xff] %v433
    %619 = vst [vmem:[#allocation2 + $0xe8] sm:$0xff] %v435
    %620 = vst [vmem:[#allocation2 + $0xf0] sm:$0xff] %v546
    %621 = vst [vmem:[#allocation2 + $0xf8] sm:$0xff] %v548
    %622 = vst [vmem:[#allocation2 + $0x100] sm:$0xff] %v439
    %623 = vst [vmem:[#allocation2 + $0x108] sm:$0xff] %v441
    %624 = vst [vmem:[#allocation2 + $0x110] sm:$0xff] %v552
    %625 = vst [vmem:[#allocation2 + $0x118] sm:$0xff] %v554
    %626 = vst [vmem:[#allocation2 + $0x120] sm:$0xff] %v443
    %627 = vst [vmem:[#allocation2 + $0x128] sm:$0xff] %v445
    %628 = vst [vmem:[#allocation2 + $0x130] sm:$0xff] %v556
    %629 = vst [vmem:[#allocation2 + $0x138] sm:$0xff] %v558
    %630 = vst [vmem:[#allocation2 + $0x140] sm:$0xff] %v449
    %631 = vst [vmem:[#allocation2 + $0x148] sm:$0xff] %v451
    %632 = vst [vmem:[#allocation2 + $0x150] sm:$0xff] %v562
    %633 = vst [vmem:[#allocation2 + $0x158] sm:$0xff] %v564
    %634 = vst [vmem:[#allocation2 + $0x160] sm:$0xff] %v453
    %635 = vst [vmem:[#allocation2 + $0x168] sm:$0xff] %v455
    %636 = vst [vmem:[#allocation2 + $0x170] sm:$0xff] %v566
    %637 = vst [vmem:[#allocation2 + $0x178] sm:$0xff] %v568
    %638 = vst [vmem:[#allocation2 + $0x180] sm:$0xff] %v459
    %639 = vst [vmem:[#allocation2 + $0x188] sm:$0xff] %v461
    %640 = vst [vmem:[#allocation2 + $0x190] sm:$0xff] %v572
    %641 = vst [vmem:[#allocation2 + $0x198] sm:$0xff] %v574
    %642 = vst [vmem:[#allocation2 + $0x1a0] sm:$0xff] %v463
    %643 = vst [vmem:[#allocation2 + $0x1a8] sm:$0xff] %v465
    %644 = vst [vmem:[#allocation2 + $0x1b0] sm:$0xff] %v576
    %645 = vst [vmem:[#allocation2 + $0x1b8] sm:$0xff] %v578
    %646 = vst [vmem:[#allocation2 + $0x1c0] sm:$0xff] %v469
    %647 = vst [vmem:[#allocation2 + $0x1c8] sm:$0xff] %v471
    %648 = vst [vmem:[#allocation2 + $0x1d0] sm:$0xff] %v582
    %649 = vst [vmem:[#allocation2 + $0x1d8] sm:$0xff] %v584
    %650 = vst [vmem:[#allocation2 + $0x1e0] sm:$0xff] %v473
    %651 = vst [vmem:[#allocation2 + $0x1e8] sm:$0xff] %v475
    %652 = vst [vmem:[#allocation2 + $0x1f0] sm:$0xff] %v586
    %653 = vst [vmem:[#allocation2 + $0x1f8] sm:$0xff] %v588
    %v654 = vld [vmem:[#allocation3] sm:$0xff]
    %v655 = vld [vmem:[#allocation3 + $0x8] sm:$0xff]
    %v656 = vld [vmem:[#allocation3 + $0x10] sm:$0xff]
    %v657 = vld [vmem:[#allocation3 + $0x18] sm:$0xff]
    %v658 = vld [vmem:[#allocation3 + $0x20] sm:$0xff]
    %v659 = vld [vmem:[#allocation3 + $0x28] sm:$0xff]
    %v660 = vld [vmem:[#allocation3 + $0x30] sm:$0xff]
    %v661 = vld [vmem:[#allocation3 + $0x38] sm:$0xff]
    %v662 = vld [vmem:[#allocation3 + $0x40] sm:$0xff]
    %v663 = vld [vmem:[#allocation3 + $0x48] sm:$0xff]
    %v664 = vld [vmem:[#allocation3 + $0x50] sm:$0xff]
    %v665 = vld [vmem:[#allocation3 + $0x58] sm:$0xff]
    %v666 = vld [vmem:[#allocation3 + $0x60] sm:$0xff]
    %v667 = vld [vmem:[#allocation3 + $0x68] sm:$0xff]
    %v668 = vld [vmem:[#allocation3 + $0x70] sm:$0xff]
    %v669 = vld [vmem:[#allocation3 + $0x78] sm:$0xff]
    %v670 = vpack.c.bf16 %v655, %v654
    %v671 = vpack.c.bf16 %v657, %v656
    %v672 = vpack.c.bf16 %v659, %v658
    %v673 = vpack.c.bf16 %v661, %v660
    %v674 = vpack.c.bf16 %v663, %v662
    %v675 = vpack.c.bf16 %v665, %v664
    %v676 = vpack.c.bf16 %v667, %v666
    %v677 = vpack.c.bf16 %v669, %v668
    %v678 = vld [vmem:[#allocation9] sm:$0xf]
    %v679 = vld [vmem:[#allocation9 + $0x4] sm:$0xf]
    %v680 = vld [vmem:[#allocation9 + $0x8] sm:$0xf]
    %v681 = vld [vmem:[#allocation9 + $0xc] sm:$0xf]
    %v682 = vld [vmem:[#allocation9 + $0x10] sm:$0xf]
    %v683 = vld [vmem:[#allocation9 + $0x14] sm:$0xf]
    %v684 = vld [vmem:[#allocation9 + $0x18] sm:$0xf]
    %v685 = vld [vmem:[#allocation9 + $0x1c] sm:$0xf]
    %v686 = vld [vmem:[#allocation9 + $0x20] sm:$0xf]
    %v687 = vld [vmem:[#allocation9 + $0x24] sm:$0xf]
    %v688 = vld [vmem:[#allocation9 + $0x28] sm:$0xf]
    %v689 = vld [vmem:[#allocation9 + $0x2c] sm:$0xf]
    %v690 = vld [vmem:[#allocation9 + $0x30] sm:$0xf]
    %v691 = vld [vmem:[#allocation9 + $0x34] sm:$0xf]
    %v692 = vld [vmem:[#allocation9 + $0x38] sm:$0xf]
    %v693 = vld [vmem:[#allocation9 + $0x3c] sm:$0xf]
    %v694 = vld [vmem:[#allocation2] sm:$0xff]
    %v695 = vld [vmem:[#allocation2 + $0x20] sm:$0xff]
    %v696 = vld [vmem:[#allocation2 + $0x40] sm:$0xff]
    %v697 = vld [vmem:[#allocation2 + $0x60] sm:$0xff]
    %v698 = vld [vmem:[#allocation2 + $0x80] sm:$0xff]
    %v699 = vld [vmem:[#allocation2 + $0xa0] sm:$0xff]
    %v700 = vld [vmem:[#allocation2 + $0xc0] sm:$0xff]
    %v701 = vld [vmem:[#allocation2 + $0xe0] sm:$0xff]
    %v702 = vld [vmem:[#allocation2 + $0x100] sm:$0xff]
    %v703 = vld [vmem:[#allocation2 + $0x120] sm:$0xff]
    %v704 = vld [vmem:[#allocation2 + $0x140] sm:$0xff]
    %v705 = vld [vmem:[#allocation2 + $0x160] sm:$0xff]
    %v706 = vld [vmem:[#allocation2 + $0x180] sm:$0xff]
    %v707 = vld [vmem:[#allocation2 + $0x1a0] sm:$0xff]
    %v708 = vld [vmem:[#allocation2 + $0x1c0] sm:$0xff]
    %v709 = vld [vmem:[#allocation2 + $0x1e0] sm:$0xff]
    %v726 = vunpack.c.l.b16 %v678
    %v727 = vunpack.c.l.b16 %v679
    %v728 = vunpack.c.l.b16 %v680
    %v729 = vunpack.c.l.b16 %v681
    %v730 = vunpack.c.l.b16 %v682
    %v731 = vunpack.c.l.b16 %v683
    %v732 = vunpack.c.l.b16 %v684
    %v733 = vunpack.c.l.b16 %v685
    %v734 = vunpack.c.l.b16 %v686
    %v735 = vunpack.c.l.b16 %v687
    %v736 = vunpack.c.l.b16 %v688
    %v737 = vunpack.c.l.b16 %v689
    %v738 = vunpack.c.l.b16 %v690
    %v739 = vunpack.c.l.b16 %v691
    %v740 = vunpack.c.l.b16 %v692
    %v741 = vunpack.c.l.b16 %v693
    %v742 = vpack.c.b16 %v727, %v726
    %v743 = vpack.c.b16 %v729, %v728
    %v744 = vpack.c.b16 %v731, %v730
    %v745 = vpack.c.b16 %v733, %v732
    %v746 = vpack.c.b16 %v735, %v734
    %v747 = vpack.c.b16 %v737, %v736
    %v748 = vpack.c.b16 %v739, %v738
    %v749 = vpack.c.b16 %v741, %v740
    %758 = vmatprep.subr.bf16.mxu0 0
    %759 = vmatpush1.bf16.msra.mxu0 %v742
    %760 = vmatprep.subr.bf16.mxu0 0
    %761 = vmatpush1.bf16.msra.mxu0 %v743
    %762 = vmatprep.subr.bf16.mxu0 0
    %763 = vmatpush1.bf16.msra.mxu0 %v744
    %764 = vmatprep.subr.bf16.mxu0 0
    %765 = vmatpush1.bf16.msra.mxu0 %v745
    %766 = vmatprep.subr.bf16.mxu0 0
    %767 = vmatpush1.bf16.msra.mxu0 %v746
    %768 = vmatprep.subr.bf16.mxu0 0
    %769 = vmatpush1.bf16.msra.mxu0 %v747
    %770 = vmatprep.subr.bf16.mxu0 0
    %771 = vmatpush1.bf16.msra.mxu0 %v748
    %772 = vmatprep.subr.bf16.mxu0 0
    %773 = vmatpush1.bf16.msra.mxu0 %v749
    %774 = vmatprep.subr.bf16.mxu0 0
    %775 = vmatpush1.bf16.msra.mxu0 0
    %776 = vmatprep.subr.bf16.mxu0 0
    %777 = vmatpush1.bf16.msra.mxu0 0
    %778 = vmatprep.subr.bf16.mxu0 0
    %779 = vmatpush1.bf16.msra.mxu0 0
    %780 = vmatprep.subr.bf16.mxu0 0
    %781 = vmatpush1.bf16.msra.mxu0 0
    %782 = vmatprep.subr.bf16.mxu0 0
    %783 = vmatpush1.bf16.msra.mxu0 0
    %784 = vmatprep.subr.bf16.mxu0 0
    %785 = vmatpush1.bf16.msra.mxu0 0
    %786 = vmatprep.subr.bf16.mxu0 0
    %787 = vmatpush1.bf16.msra.mxu0 0
    %788 = vmatprep.subr.bf16.mxu0 0
    %789 = vmatpush1.bf16.msra.mxu0 0
    %790 = vmatprep.mubr.bf16.mxu0 0
    %791 = vmatmul.mubr.bf16.gmra.mrb[0].mxu0 %v670
    %v792 = vpop.f32.mrb[0].mxu0
    %v793 = vadd.f32 %v694, %v792
    %v794 = vpop.f32.mrb[0].mxu0
    %v795 = vpop.f32.mrb[0].mxu0
    %v796 = vadd.f32 %v695, %v795
    %v797 = vpop.f32.mrb[0].mxu0
    %798 = vmatprep.mubr.bf16.mxu0 0
    %799 = vmatmul.mubr.bf16.gmra.mrb[0].mxu0 %v671
    %v800 = vpop.f32.mrb[0].mxu0
    %v801 = vadd.f32 %v696, %v800
    %v802 = vpop.f32.mrb[0].mxu0
    %v803 = vpop.f32.mrb[0].mxu0
    %v804 = vadd.f32 %v697, %v803
    %v805 = vpop.f32.mrb[0].mxu0
    %806 = vmatprep.mubr.bf16.mxu0 0
    %807 = vmatmul.mubr.bf16.gmra.mrb[0].mxu0 %v672
    %v808 = vpop.f32.mrb[0].mxu0
    %v809 = vadd.f32 %v698, %v808
    %v810 = vpop.f32.mrb[0].mxu0
    %v811 = vpop.f32.mrb[0].mxu0
    %v812 = vadd.f32 %v699, %v811
    %v813 = vpop.f32.mrb[0].mxu0
    %814 = vmatprep.mubr.bf16.mxu0 0
    %815 = vmatmul.mubr.bf16.gmra.mrb[0].mxu0 %v673
    %v816 = vpop.f32.mrb[0].mxu0
    %v817 = vadd.f32 %v700, %v816
    %v818 = vpop.f32.mrb[0].mxu0
    %v819 = vpop.f32.mrb[0].mxu0
    %v820 = vadd.f32 %v701, %v819
    %v821 = vpop.f32.mrb[0].mxu0
    %822 = vmatprep.mubr.bf16.mxu0 0
    %823 = vmatmul.mubr.bf16.gmra.mrb[0].mxu0 %v674
    %v824 = vpop.f32.mrb[0].mxu0
    %v825 = vadd.f32 %v702, %v824
    %v826 = vpop.f32.mrb[0].mxu0
    %v827 = vpop.f32.mrb[0].mxu0
    %v828 = vadd.f32 %v703, %v827
    %v829 = vpop.f32.mrb[0].mxu0
    %830 = vmatprep.mubr.bf16.mxu0 0
    %831 = vmatmul.mubr.bf16.gmra.mrb[0].mxu0 %v675
    %v832 = vpop.f32.mrb[0].mxu0
    %v833 = vadd.f32 %v704, %v832
    %v834 = vpop.f32.mrb[0].mxu0
    %v835 = vpop.f32.mrb[0].mxu0
    %v836 = vadd.f32 %v705, %v835
    %v837 = vpop.f32.mrb[0].mxu0
    %838 = vmatprep.mubr.bf16.mxu0 0
    %839 = vmatmul.mubr.bf16.gmra.mrb[0].mxu0 %v676
    %v840 = vpop.f32.mrb[0].mxu0
    %v841 = vadd.f32 %v706, %v840
    %v842 = vpop.f32.mrb[0].mxu0
    %v843 = vpop.f32.mrb[0].mxu0
    %v844 = vadd.f32 %v707, %v843
    %v845 = vpop.f32.mrb[0].mxu0
    %846 = vmatprep.mubr.bf16.mxu0 0
    %847 = vmatmul.mubr.bf16.gmra.mrb[0].mxu0 %v677
    %v848 = vpop.f32.mrb[0].mxu0
    %v849 = vadd.f32 %v708, %v848
    %v850 = vpop.f32.mrb[0].mxu0
    %v851 = vpop.f32.mrb[0].mxu0
    %v852 = vadd.f32 %v709, %v851
    %v853 = vpop.f32.mrb[0].mxu0
    %854 = vdwg.mxu0
    %v855 = vmul.f32 %v793, 0.2
    %v856 = vmul.f32 %v796, 0.2
    %v857 = vmul.f32 %v801, 0.2
    %v858 = vmul.f32 %v804, 0.2
    %v859 = vmul.f32 %v809, 0.2
    %v860 = vmul.f32 %v812, 0.2
    %v861 = vmul.f32 %v817, 0.2
    %v862 = vmul.f32 %v820, 0.2
    %v863 = vmul.f32 %v825, 0.2
    %v864 = vmul.f32 %v828, 0.2
    %v865 = vmul.f32 %v833, 0.2
    %v866 = vmul.f32 %v836, 0.2
    %v867 = vmul.f32 %v841, 0.2
    %v868 = vmul.f32 %v844, 0.2
    %v869 = vmul.f32 %v849, 0.2
    %v870 = vmul.f32 %v852, 0.2
    %v871 = vmax.f32 %v793, %v855
    %v872 = vmax.f32 %v796, %v856
    %v873 = vmax.f32 %v801, %v857
    %v874 = vmax.f32 %v804, %v858
    %v875 = vmax.f32 %v809, %v859
    %v876 = vmax.f32 %v812, %v860
    %v877 = vmax.f32 %v817, %v861
    %v878 = vmax.f32 %v820, %v862
    %v879 = vmax.f32 %v825, %v863
    %v880 = vmax.f32 %v828, %v864
    %v881 = vmax.f32 %v833, %v865
    %v882 = vmax.f32 %v836, %v866
    %v883 = vmax.f32 %v841, %v867
    %v884 = vmax.f32 %v844, %v868
    %v885 = vmax.f32 %v849, %v869
    %v886 = vmax.f32 %v852, %v870
    %v887 = vpack.c.bf16 %v872, %v871
    %v888 = vpack.c.bf16 %v874, %v873
    %v889 = vpack.c.bf16 %v876, %v875
    %v890 = vpack.c.bf16 %v878, %v877
    %v891 = vpack.c.bf16 %v880, %v879
    %v892 = vpack.c.bf16 %v882, %v881
    %v893 = vpack.c.bf16 %v884, %v883
    %v894 = vpack.c.bf16 %v886, %v885
    %v895 = vld [vmem:[#allocation11] sm:$0xf]
    %v896 = vld [vmem:[#allocation11 + $0x4] sm:$0xf]
    %v897 = vld [vmem:[#allocation11 + $0x8] sm:$0xf]
    %v898 = vld [vmem:[#allocation11 + $0xc] sm:$0xf]
    %v899 = vld [vmem:[#allocation11 + $0x10] sm:$0xf]
    %v900 = vld [vmem:[#allocation11 + $0x14] sm:$0xf]
    %v901 = vld [vmem:[#allocation11 + $0x18] sm:$0xf]
    %v902 = vld [vmem:[#allocation11 + $0x1c] sm:$0xf]
    %v903 = vld [vmem:[#allocation11 + $0x20] sm:$0xf]
    %v904 = vld [vmem:[#allocation11 + $0x24] sm:$0xf]
    %v905 = vld [vmem:[#allocation11 + $0x28] sm:$0xf]
    %v906 = vld [vmem:[#allocation11 + $0x2c] sm:$0xf]
    %v907 = vld [vmem:[#allocation11 + $0x30] sm:$0xf]
    %v908 = vld [vmem:[#allocation11 + $0x34] sm:$0xf]
    %v909 = vld [vmem:[#allocation11 + $0x38] sm:$0xf]
    %v910 = vld [vmem:[#allocation11 + $0x3c] sm:$0xf]
    %v911 = vld [vmem:[#allocation2 + $0x8] sm:$0xff]
    %v912 = vld [vmem:[#allocation2 + $0x28] sm:$0xff]
    %v913 = vld [vmem:[#allocation2 + $0x48] sm:$0xff]
    %v914 = vld [vmem:[#allocation2 + $0x68] sm:$0xff]
    %v915 = vld [vmem:[#allocation2 + $0x88] sm:$0xff]
    %v916 = vld [vmem:[#allocation2 + $0xa8] sm:$0xff]
    %v917 = vld [vmem:[#allocation2 + $0xc8] sm:$0xff]
    %v918 = vld [vmem:[#allocation2 + $0xe8] sm:$0xff]
    %v919 = vld [vmem:[#allocation2 + $0x108] sm:$0xff]
    %v920 = vld [vmem:[#allocation2 + $0x128] sm:$0xff]
    %v921 = vld [vmem:[#allocation2 + $0x148] sm:$0xff]
    %v922 = vld [vmem:[#allocation2 + $0x168] sm:$0xff]
    %v923 = vld [vmem:[#allocation2 + $0x188] sm:$0xff]
    %v924 = vld [vmem:[#allocation2 + $0x1a8] sm:$0xff]
    %v925 = vld [vmem:[#allocation2 + $0x1c8] sm:$0xff]
    %v926 = vld [vmem:[#allocation2 + $0x1e8] sm:$0xff]
    %v943 = vunpack.c.l.b16 %v895
    %v944 = vunpack.c.l.b16 %v896
    %v945 = vunpack.c.l.b16 %v897
    %v946 = vunpack.c.l.b16 %v898
    %v947 = vunpack.c.l.b16 %v899
    %v948 = vunpack.c.l.b16 %v900
    %v949 = vunpack.c.l.b16 %v901
    %v950 = vunpack.c.l.b16 %v902
    %v951 = vunpack.c.l.b16 %v903
    %v952 = vunpack.c.l.b16 %v904
    %v953 = vunpack.c.l.b16 %v905
    %v954 = vunpack.c.l.b16 %v906
    %v955 = vunpack.c.l.b16 %v907
    %v956 = vunpack.c.l.b16 %v908
    %v957 = vunpack.c.l.b16 %v909
    %v958 = vunpack.c.l.b16 %v910
    %v959 = vpack.c.b16 %v944, %v943
    %v960 = vpack.c.b16 %v946, %v945
    %v961 = vpack.c.b16 %v948, %v947
    %v962 = vpack.c.b16 %v950, %v949
    %v963 = vpack.c.b16 %v952, %v951
    %v964 = vpack.c.b16 %v954, %v953
    %v965 = vpack.c.b16 %v956, %v955
    %v966 = vpack.c.b16 %v958, %v957
    %975 = vmatprep.subr.bf16.mxu0 0
    %976 = vmatpush1.bf16.msra.mxu0 %v959
    %977 = vmatprep.subr.bf16.mxu0 0
    %978 = vmatpush1.bf16.msra.mxu0 %v960
    %979 = vmatprep.subr.bf16.mxu0 0
    %980 = vmatpush1.bf16.msra.mxu0 %v961
    %981 = vmatprep.subr.bf16.mxu0 0
    %982 = vmatpush1.bf16.msra.mxu0 %v962
    %983 = vmatprep.subr.bf16.mxu0 0
    %984 = vmatpush1.bf16.msra.mxu0 %v963
    %985 = vmatprep.subr.bf16.mxu0 0
    %986 = vmatpush1.bf16.msra.mxu0 %v964
    %987 = vmatprep.subr.bf16.mxu0 0
    %988 = vmatpush1.bf16.msra.mxu0 %v965
    %989 = vmatprep.subr.bf16.mxu0 0
    %990 = vmatpush1.bf16.msra.mxu0 %v966
    %991 = vmatprep.subr.bf16.mxu0 0
    %992 = vmatpush1.bf16.msra.mxu0 0
    %993 = vmatprep.subr.bf16.mxu0 0
    %994 = vmatpush1.bf16.msra.mxu0 0
    %995 = vmatprep.subr.bf16.mxu0 0
    %996 = vmatpush1.bf16.msra.mxu0 0
    %997 = vmatprep.subr.bf16.mxu0 0
    %998 = vmatpush1.bf16.msra.mxu0 0
    %999 = vmatprep.subr.bf16.mxu0 0
    %1000 = vmatpush1.bf16.msra.mxu0 0
    %1001 = vmatprep.subr.bf16.mxu0 0
    %1002 = vmatpush1.bf16.msra.mxu0 0
    %1003 = vmatprep.subr.bf16.mxu0 0
    %1004 = vmatpush1.bf16.msra.mxu0 0
    %1005 = vmatprep.subr.bf16.mxu0 0
    %1006 = vmatpush1.bf16.msra.mxu0 0
    %1007 = vmatprep.mubr.bf16.mxu0 0
    %1008 = vmatmul.mubr.bf16.gmra.mrb[0].mxu0 %v887
    %v1009 = vpop.f32.mrb[0].mxu0
    %v1010 = vadd.f32 %v911, %v1009
    %v1011 = vpop.f32.mrb[0].mxu0
    %v1012 = vpop.f32.mrb[0].mxu0
    %v1013 = vadd.f32 %v912, %v1012
    %v1014 = vpop.f32.mrb[0].mxu0
    %1015 = vmatprep.mubr.bf16.mxu0 0
    %1016 = vmatmul.mubr.bf16.gmra.mrb[0].mxu0 %v888
    %v1017 = vpop.f32.mrb[0].mxu0
    %v1018 = vadd.f32 %v913, %v1017
    %v1019 = vpop.f32.mrb[0].mxu0
    %v1020 = vpop.f32.mrb[0].mxu0
    %v1021 = vadd.f32 %v914, %v1020
    %v1022 = vpop.f32.mrb[0].mxu0
    %1023 = vmatprep.mubr.bf16.mxu0 0
    %1024 = vmatmul.mubr.bf16.gmra.mrb[0].mxu0 %v889
    %v1025 = vpop.f32.mrb[0].mxu0
    %v1026 = vadd.f32 %v915, %v1025
    %v1027 = vpop.f32.mrb[0].mxu0
    %v1028 = vpop.f32.mrb[0].mxu0
    %v1029 = vadd.f32 %v916, %v1028
    %v1030 = vpop.f32.mrb[0].mxu0
    %1031 = vmatprep.mubr.bf16.mxu0 0
    %1032 = vmatmul.mubr.bf16.gmra.mrb[0].mxu0 %v890
    %v1033 = vpop.f32.mrb[0].mxu0
    %v1034 = vadd.f32 %v917, %v1033
    %v1035 = vpop.f32.mrb[0].mxu0
    %v1036 = vpop.f32.mrb[0].mxu0
    %v1037 = vadd.f32 %v918, %v1036
    %v1038 = vpop.f32.mrb[0].mxu0
    %1039 = vmatprep.mubr.bf16.mxu0 0
    %1040 = vmatmul.mubr.bf16.gmra.mrb[0].mxu0 %v891
    %v1041 = vpop.f32.mrb[0].mxu0
    %v1042 = vadd.f32 %v919, %v1041
    %v1043 = vpop.f32.mrb[0].mxu0
    %v1044 = vpop.f32.mrb[0].mxu0
    %v1045 = vadd.f32 %v920, %v1044
    %v1046 = vpop.f32.mrb[0].mxu0
    %1047 = vmatprep.mubr.bf16.mxu0 0
    %1048 = vmatmul.mubr.bf16.gmra.mrb[0].mxu0 %v892
    %v1049 = vpop.f32.mrb[0].mxu0
    %v1050 = vadd.f32 %v921, %v1049
    %v1051 = vpop.f32.mrb[0].mxu0
    %v1052 = vpop.f32.mrb[0].mxu0
    %v1053 = vadd.f32 %v922, %v1052
    %v1054 = vpop.f32.mrb[0].mxu0
    %1055 = vmatprep.mubr.bf16.mxu0 0
    %1056 = vmatmul.mubr.bf16.gmra.mrb[0].mxu0 %v893
    %v1057 = vpop.f32.mrb[0].mxu0
    %v1058 = vadd.f32 %v923, %v1057
    %v1059 = vpop.f32.mrb[0].mxu0
    %v1060 = vpop.f32.mrb[0].mxu0
    %v1061 = vadd.f32 %v924, %v1060
    %v1062 = vpop.f32.mrb[0].mxu0
    %1063 = vmatprep.mubr.bf16.mxu0 0
    %1064 = vmatmul.mubr.bf16.gmra.mrb[0].mxu0 %v894
    %v1065 = vpop.f32.mrb[0].mxu0
    %v1066 = vadd.f32 %v925, %v1065
    %v1067 = vpop.f32.mrb[0].mxu0
    %v1068 = vpop.f32.mrb[0].mxu0
    %v1069 = vadd.f32 %v926, %v1068
    %v1070 = vpop.f32.mrb[0].mxu0
    %1071 = vdwg.mxu0
    %v1072 = vmul.f32 %v1010, 0.2
    %v1073 = vmul.f32 %v1013, 0.2
    %v1074 = vmul.f32 %v1018, 0.2
    %v1075 = vmul.f32 %v1021, 0.2
    %v1076 = vmul.f32 %v1026, 0.2
    %v1077 = vmul.f32 %v1029, 0.2
    %v1078 = vmul.f32 %v1034, 0.2
    %v1079 = vmul.f32 %v1037, 0.2
    %v1080 = vmul.f32 %v1042, 0.2
    %v1081 = vmul.f32 %v1045, 0.2
    %v1082 = vmul.f32 %v1050, 0.2
    %v1083 = vmul.f32 %v1053, 0.2
    %v1084 = vmul.f32 %v1058, 0.2
    %v1085 = vmul.f32 %v1061, 0.2
    %v1086 = vmul.f32 %v1066, 0.2
    %v1087 = vmul.f32 %v1069, 0.2
    %v1088 = vmax.f32 %v1010, %v1072
    %v1089 = vmax.f32 %v1013, %v1073
    %v1090 = vmax.f32 %v1018, %v1074
    %v1091 = vmax.f32 %v1021, %v1075
    %v1092 = vmax.f32 %v1026, %v1076
    %v1093 = vmax.f32 %v1029, %v1077
    %v1094 = vmax.f32 %v1034, %v1078
    %v1095 = vmax.f32 %v1037, %v1079
    %v1096 = vmax.f32 %v1042, %v1080
    %v1097 = vmax.f32 %v1045, %v1081
    %v1098 = vmax.f32 %v1050, %v1082
    %v1099 = vmax.f32 %v1053, %v1083
    %v1100 = vmax.f32 %v1058, %v1084
    %v1101 = vmax.f32 %v1061, %v1085
    %v1102 = vmax.f32 %v1066, %v1086
    %v1103 = vmax.f32 %v1069, %v1087
    %v1104 = vpack.c.bf16 %v1089, %v1088
    %v1105 = vpack.c.bf16 %v1091, %v1090
    %v1106 = vpack.c.bf16 %v1093, %v1092
    %v1107 = vpack.c.bf16 %v1095, %v1094
    %v1108 = vpack.c.bf16 %v1097, %v1096
    %v1109 = vpack.c.bf16 %v1099, %v1098
    %v1110 = vpack.c.bf16 %v1101, %v1100
    %v1111 = vpack.c.bf16 %v1103, %v1102
    %v1112 = vld [vmem:[#allocation12] sm:$0xf]
    %v1113 = vld [vmem:[#allocation12 + $0x4] sm:$0xf]
    %v1114 = vld [vmem:[#allocation12 + $0x8] sm:$0xf]
    %v1115 = vld [vmem:[#allocation12 + $0xc] sm:$0xf]
    %v1116 = vld [vmem:[#allocation12 + $0x10] sm:$0xf]
    %v1117 = vld [vmem:[#allocation12 + $0x14] sm:$0xf]
    %v1118 = vld [vmem:[#allocation12 + $0x18] sm:$0xf]
    %v1119 = vld [vmem:[#allocation12 + $0x1c] sm:$0xf]
    %v1120 = vld [vmem:[#allocation12 + $0x20] sm:$0xf]
    %v1121 = vld [vmem:[#allocation12 + $0x24] sm:$0xf]
    %v1122 = vld [vmem:[#allocation12 + $0x28] sm:$0xf]
    %v1123 = vld [vmem:[#allocation12 + $0x2c] sm:$0xf]
    %v1124 = vld [vmem:[#allocation12 + $0x30] sm:$0xf]
    %v1125 = vld [vmem:[#allocation12 + $0x34] sm:$0xf]
    %v1126 = vld [vmem:[#allocation12 + $0x38] sm:$0xf]
    %v1127 = vld [vmem:[#allocation12 + $0x3c] sm:$0xf]
    %v1128 = vld [vmem:[#allocation2 + $0x10] sm:$0xff]
    %v1129 = vld [vmem:[#allocation2 + $0x30] sm:$0xff]
    %v1130 = vld [vmem:[#allocation2 + $0x50] sm:$0xff]
    %v1131 = vld [vmem:[#allocation2 + $0x70] sm:$0xff]
    %v1132 = vld [vmem:[#allocation2 + $0x90] sm:$0xff]
    %v1133 = vld [vmem:[#allocation2 + $0xb0] sm:$0xff]
    %v1134 = vld [vmem:[#allocation2 + $0xd0] sm:$0xff]
    %v1135 = vld [vmem:[#allocation2 + $0xf0] sm:$0xff]
    %v1136 = vld [vmem:[#allocation2 + $0x110] sm:$0xff]
    %v1137 = vld [vmem:[#allocation2 + $0x130] sm:$0xff]
    %v1138 = vld [vmem:[#allocation2 + $0x150] sm:$0xff]
    %v1139 = vld [vmem:[#allocation2 + $0x170] sm:$0xff]
    %v1140 = vld [vmem:[#allocation2 + $0x190] sm:$0xff]
    %v1141 = vld [vmem:[#allocation2 + $0x1b0] sm:$0xff]
    %v1142 = vld [vmem:[#allocation2 + $0x1d0] sm:$0xff]
    %v1143 = vld [vmem:[#allocation2 + $0x1f0] sm:$0xff]
    %v1160 = vunpack.c.l.b16 %v1112
    %v1161 = vunpack.c.l.b16 %v1113
    %v1162 = vunpack.c.l.b16 %v1114
    %v1163 = vunpack.c.l.b16 %v1115
    %v1164 = vunpack.c.l.b16 %v1116
    %v1165 = vunpack.c.l.b16 %v1117
    %v1166 = vunpack.c.l.b16 %v1118
    %v1167 = vunpack.c.l.b16 %v1119
    %v1168 = vunpack.c.l.b16 %v1120
    %v1169 = vunpack.c.l.b16 %v1121
    %v1170 = vunpack.c.l.b16 %v1122
    %v1171 = vunpack.c.l.b16 %v1123
    %v1172 = vunpack.c.l.b16 %v1124
    %v1173 = vunpack.c.l.b16 %v1125
    %v1174 = vunpack.c.l.b16 %v1126
    %v1175 = vunpack.c.l.b16 %v1127
    %v1176 = vpack.c.b16 %v1161, %v1160
    %v1177 = vpack.c.b16 %v1163, %v1162
    %v1178 = vpack.c.b16 %v1165, %v1164
    %v1179 = vpack.c.b16 %v1167, %v1166
    %v1180 = vpack.c.b16 %v1169, %v1168
    %v1181 = vpack.c.b16 %v1171, %v1170
    %v1182 = vpack.c.b16 %v1173, %v1172
    %v1183 = vpack.c.b16 %v1175, %v1174
    %1192 = vmatprep.subr.bf16.mxu0 0
    %1193 = vmatpush1.bf16.msra.mxu0 %v1176
    %1194 = vmatprep.subr.bf16.mxu0 0
    %1195 = vmatpush1.bf16.msra.mxu0 %v1177
    %1196 = vmatprep.subr.bf16.mxu0 0
    %1197 = vmatpush1.bf16.msra.mxu0 %v1178
    %1198 = vmatprep.subr.bf16.mxu0 0
    %1199 = vmatpush1.bf16.msra.mxu0 %v1179
    %1200 = vmatprep.subr.bf16.mxu0 0
    %1201 = vmatpush1.bf16.msra.mxu0 %v1180
    %1202 = vmatprep.subr.bf16.mxu0 0
    %1203 = vmatpush1.bf16.msra.mxu0 %v1181
    %1204 = vmatprep.subr.bf16.mxu0 0
    %1205 = vmatpush1.bf16.msra.mxu0 %v1182
    %1206 = vmatprep.subr.bf16.mxu0 0
    %1207 = vmatpush1.bf16.msra.mxu0 %v1183
    %1208 = vmatprep.subr.bf16.mxu0 0
    %1209 = vmatpush1.bf16.msra.mxu0 0
    %1210 = vmatprep.subr.bf16.mxu0 0
    %1211 = vmatpush1.bf16.msra.mxu0 0
    %1212 = vmatprep.subr.bf16.mxu0 0
    %1213 = vmatpush1.bf16.msra.mxu0 0
    %1214 = vmatprep.subr.bf16.mxu0 0
    %1215 = vmatpush1.bf16.msra.mxu0 0
    %1216 = vmatprep.subr.bf16.mxu0 0
    %1217 = vmatpush1.bf16.msra.mxu0 0
    %1218 = vmatprep.subr.bf16.mxu0 0
    %1219 = vmatpush1.bf16.msra.mxu0 0
    %1220 = vmatprep.subr.bf16.mxu0 0
    %1221 = vmatpush1.bf16.msra.mxu0 0
    %1222 = vmatprep.subr.bf16.mxu0 0
    %1223 = vmatpush1.bf16.msra.mxu0 0
    %1224 = vmatprep.mubr.bf16.mxu0 0
    %1225 = vmatmul.mubr.bf16.gmra.mrb[0].mxu0 %v1104
    %v1226 = vpop.f32.mrb[0].mxu0
    %v1227 = vadd.f32 %v1128, %v1226
    %v1228 = vpop.f32.mrb[0].mxu0
    %v1229 = vpop.f32.mrb[0].mxu0
    %v1230 = vadd.f32 %v1129, %v1229
    %v1231 = vpop.f32.mrb[0].mxu0
    %1232 = vmatprep.mubr.bf16.mxu0 0
    %1233 = vmatmul.mubr.bf16.gmra.mrb[0].mxu0 %v1105
    %v1234 = vpop.f32.mrb[0].mxu0
    %v1235 = vadd.f32 %v1130, %v1234
    %v1236 = vpop.f32.mrb[0].mxu0
    %v1237 = vpop.f32.mrb[0].mxu0
    %v1238 = vadd.f32 %v1131, %v1237
    %v1239 = vpop.f32.mrb[0].mxu0
    %1240 = vmatprep.mubr.bf16.mxu0 0
    %1241 = vmatmul.mubr.bf16.gmra.mrb[0].mxu0 %v1106
    %v1242 = vpop.f32.mrb[0].mxu0
    %v1243 = vadd.f32 %v1132, %v1242
    %v1244 = vpop.f32.mrb[0].mxu0
    %v1245 = vpop.f32.mrb[0].mxu0
    %v1246 = vadd.f32 %v1133, %v1245
    %v1247 = vpop.f32.mrb[0].mxu0
    %1248 = vmatprep.mubr.bf16.mxu0 0
    %1249 = vmatmul.mubr.bf16.gmra.mrb[0].mxu0 %v1107
    %v1250 = vpop.f32.mrb[0].mxu0
    %v1251 = vadd.f32 %v1134, %v1250
    %v1252 = vpop.f32.mrb[0].mxu0
    %v1253 = vpop.f32.mrb[0].mxu0
    %v1254 = vadd.f32 %v1135, %v1253
    %v1255 = vpop.f32.mrb[0].mxu0
    %1256 = vmatprep.mubr.bf16.mxu0 0
    %1257 = vmatmul.mubr.bf16.gmra.mrb[0].mxu0 %v1108
    %v1258 = vpop.f32.mrb[0].mxu0
    %v1259 = vadd.f32 %v1136, %v1258
    %v1260 = vpop.f32.mrb[0].mxu0
    %v1261 = vpop.f32.mrb[0].mxu0
    %v1262 = vadd.f32 %v1137, %v1261
    %v1263 = vpop.f32.mrb[0].mxu0
    %1264 = vmatprep.mubr.bf16.mxu0 0
    %1265 = vmatmul.mubr.bf16.gmra.mrb[0].mxu0 %v1109
    %v1266 = vpop.f32.mrb[0].mxu0
    %v1267 = vadd.f32 %v1138, %v1266
    %v1268 = vpop.f32.mrb[0].mxu0
    %v1269 = vpop.f32.mrb[0].mxu0
    %v1270 = vadd.f32 %v1139, %v1269
    %v1271 = vpop.f32.mrb[0].mxu0
    %1272 = vmatprep.mubr.bf16.mxu0 0
    %1273 = vmatmul.mubr.bf16.gmra.mrb[0].mxu0 %v1110
    %v1274 = vpop.f32.mrb[0].mxu0
    %v1275 = vadd.f32 %v1140, %v1274
    %v1276 = vpop.f32.mrb[0].mxu0
    %v1277 = vpop.f32.mrb[0].mxu0
    %v1278 = vadd.f32 %v1141, %v1277
    %v1279 = vpop.f32.mrb[0].mxu0
    %1280 = vmatprep.mubr.bf16.mxu0 0
    %1281 = vmatmul.mubr.bf16.gmra.mrb[0].mxu0 %v1111
    %v1282 = vpop.f32.mrb[0].mxu0
    %v1283 = vadd.f32 %v1142, %v1282
    %v1284 = vpop.f32.mrb[0].mxu0
    %v1285 = vpop.f32.mrb[0].mxu0
    %v1286 = vadd.f32 %v1143, %v1285
    %v1287 = vpop.f32.mrb[0].mxu0
    %1288 = vdwg.mxu0
    %v1289 = vmul.f32 %v1227, 0.2
    %v1290 = vmul.f32 %v1230, 0.2
    %v1291 = vmul.f32 %v1235, 0.2
    %v1292 = vmul.f32 %v1238, 0.2
    %v1293 = vmul.f32 %v1243, 0.2
    %v1294 = vmul.f32 %v1246, 0.2
    %v1295 = vmul.f32 %v1251, 0.2
    %v1296 = vmul.f32 %v1254, 0.2
    %v1297 = vmul.f32 %v1259, 0.2
    %v1298 = vmul.f32 %v1262, 0.2
    %v1299 = vmul.f32 %v1267, 0.2
    %v1300 = vmul.f32 %v1270, 0.2
    %v1301 = vmul.f32 %v1275, 0.2
    %v1302 = vmul.f32 %v1278, 0.2
    %v1303 = vmul.f32 %v1283, 0.2
    %v1304 = vmul.f32 %v1286, 0.2
    %v1305 = vmax.f32 %v1227, %v1289
    %v1306 = vmax.f32 %v1230, %v1290
    %v1307 = vmax.f32 %v1235, %v1291
    %v1308 = vmax.f32 %v1238, %v1292
    %v1309 = vmax.f32 %v1243, %v1293
    %v1310 = vmax.f32 %v1246, %v1294
    %v1311 = vmax.f32 %v1251, %v1295
    %v1312 = vmax.f32 %v1254, %v1296
    %v1313 = vmax.f32 %v1259, %v1297
    %v1314 = vmax.f32 %v1262, %v1298
    %v1315 = vmax.f32 %v1267, %v1299
    %v1316 = vmax.f32 %v1270, %v1300
    %v1317 = vmax.f32 %v1275, %v1301
    %v1318 = vmax.f32 %v1278, %v1302
    %v1319 = vmax.f32 %v1283, %v1303
    %v1320 = vmax.f32 %v1286, %v1304
    %v1321 = vpack.c.bf16 %v1306, %v1305
    %v1322 = vpack.c.bf16 %v1308, %v1307
    %v1323 = vpack.c.bf16 %v1310, %v1309
    %v1324 = vpack.c.bf16 %v1312, %v1311
    %v1325 = vpack.c.bf16 %v1314, %v1313
    %v1326 = vpack.c.bf16 %v1316, %v1315
    %v1327 = vpack.c.bf16 %v1318, %v1317
    %v1328 = vpack.c.bf16 %v1320, %v1319
    %v1329 = vld [vmem:[#allocation14] sm:$0xf]
    %v1330 = vld [vmem:[#allocation14 + $0x4] sm:$0xf]
    %v1331 = vld [vmem:[#allocation14 + $0x8] sm:$0xf]
    %v1332 = vld [vmem:[#allocation14 + $0xc] sm:$0xf]
    %v1333 = vld [vmem:[#allocation14 + $0x10] sm:$0xf]
    %v1334 = vld [vmem:[#allocation14 + $0x14] sm:$0xf]
    %v1335 = vld [vmem:[#allocation14 + $0x18] sm:$0xf]
    %v1336 = vld [vmem:[#allocation14 + $0x1c] sm:$0xf]
    %v1337 = vld [vmem:[#allocation14 + $0x20] sm:$0xf]
    %v1338 = vld [vmem:[#allocation14 + $0x24] sm:$0xf]
    %v1339 = vld [vmem:[#allocation14 + $0x28] sm:$0xf]
    %v1340 = vld [vmem:[#allocation14 + $0x2c] sm:$0xf]
    %v1341 = vld [vmem:[#allocation14 + $0x30] sm:$0xf]
    %v1342 = vld [vmem:[#allocation14 + $0x34] sm:$0xf]
    %v1343 = vld [vmem:[#allocation14 + $0x38] sm:$0xf]
    %v1344 = vld [vmem:[#allocation14 + $0x3c] sm:$0xf]
    %v1345 = vld [vmem:[#allocation2 + $0x18] sm:$0xff]
    %v1346 = vld [vmem:[#allocation2 + $0x38] sm:$0xff]
    %v1347 = vld [vmem:[#allocation2 + $0x58] sm:$0xff]
    %v1348 = vld [vmem:[#allocation2 + $0x78] sm:$0xff]
    %v1349 = vld [vmem:[#allocation2 + $0x98] sm:$0xff]
    %v1350 = vld [vmem:[#allocation2 + $0xb8] sm:$0xff]
    %v1351 = vld [vmem:[#allocation2 + $0xd8] sm:$0xff]
    %v1352 = vld [vmem:[#allocation2 + $0xf8] sm:$0xff]
    %v1353 = vld [vmem:[#allocation2 + $0x118] sm:$0xff]
    %v1354 = vld [vmem:[#allocation2 + $0x138] sm:$0xff]
    %v1355 = vld [vmem:[#allocation2 + $0x158] sm:$0xff]
    %v1356 = vld [vmem:[#allocation2 + $0x178] sm:$0xff]
    %v1357 = vld [vmem:[#allocation2 + $0x198] sm:$0xff]
    %v1358 = vld [vmem:[#allocation2 + $0x1b8] sm:$0xff]
    %v1359 = vld [vmem:[#allocation2 + $0x1d8] sm:$0xff]
    %v1360 = vld [vmem:[#allocation2 + $0x1f8] sm:$0xff]
    %v1377 = vunpack.c.l.b16 %v1329
    %v1378 = vunpack.c.l.b16 %v1330
    %v1379 = vunpack.c.l.b16 %v1331
    %v1380 = vunpack.c.l.b16 %v1332
    %v1381 = vunpack.c.l.b16 %v1333
    %v1382 = vunpack.c.l.b16 %v1334
    %v1383 = vunpack.c.l.b16 %v1335
    %v1384 = vunpack.c.l.b16 %v1336
    %v1385 = vunpack.c.l.b16 %v1337
    %v1386 = vunpack.c.l.b16 %v1338
    %v1387 = vunpack.c.l.b16 %v1339
    %v1388 = vunpack.c.l.b16 %v1340
    %v1389 = vunpack.c.l.b16 %v1341
    %v1390 = vunpack.c.l.b16 %v1342
    %v1391 = vunpack.c.l.b16 %v1343
    %v1392 = vunpack.c.l.b16 %v1344
    %v1393 = vpack.c.b16 %v1378, %v1377
    %v1394 = vpack.c.b16 %v1380, %v1379
    %v1395 = vpack.c.b16 %v1382, %v1381
    %v1396 = vpack.c.b16 %v1384, %v1383
    %v1397 = vpack.c.b16 %v1386, %v1385
    %v1398 = vpack.c.b16 %v1388, %v1387
    %v1399 = vpack.c.b16 %v1390, %v1389
    %v1400 = vpack.c.b16 %v1392, %v1391
    %1409 = vmatprep.subr.bf16.mxu0 0
    %1410 = vmatpush1.bf16.msra.mxu0 %v1393
    %1411 = vmatprep.subr.bf16.mxu0 0
    %1412 = vmatpush1.bf16.msra.mxu0 %v1394
    %1413 = vmatprep.subr.bf16.mxu0 0
    %1414 = vmatpush1.bf16.msra.mxu0 %v1395
    %1415 = vmatprep.subr.bf16.mxu0 0
    %1416 = vmatpush1.bf16.msra.mxu0 %v1396
    %1417 = vmatprep.subr.bf16.mxu0 0
    %1418 = vmatpush1.bf16.msra.mxu0 %v1397
    %1419 = vmatprep.subr.bf16.mxu0 0
    %1420 = vmatpush1.bf16.msra.mxu0 %v1398
    %1421 = vmatprep.subr.bf16.mxu0 0
    %1422 = vmatpush1.bf16.msra.mxu0 %v1399
    %1423 = vmatprep.subr.bf16.mxu0 0
    %1424 = vmatpush1.bf16.msra.mxu0 %v1400
    %1425 = vmatprep.subr.bf16.mxu0 0
    %1426 = vmatpush1.bf16.msra.mxu0 0
    %1427 = vmatprep.subr.bf16.mxu0 0
    %1428 = vmatpush1.bf16.msra.mxu0 0
    %1429 = vmatprep.subr.bf16.mxu0 0
    %1430 = vmatpush1.bf16.msra.mxu0 0
    %1431 = vmatprep.subr.bf16.mxu0 0
    %1432 = vmatpush1.bf16.msra.mxu0 0
    %1433 = vmatprep.subr.bf16.mxu0 0
    %1434 = vmatpush1.bf16.msra.mxu0 0
    %1435 = vmatprep.subr.bf16.mxu0 0
    %1436 = vmatpush1.bf16.msra.mxu0 0
    %1437 = vmatprep.subr.bf16.mxu0 0
    %1438 = vmatpush1.bf16.msra.mxu0 0
    %1439 = vmatprep.subr.bf16.mxu0 0
    %1440 = vmatpush1.bf16.msra.mxu0 0
    %1441 = vmatprep.mubr.bf16.mxu0 0
    %1442 = vmatmul.mubr.bf16.gmra.mrb[0].mxu0 %v1321
    %v1443 = vpop.f32.mrb[0].mxu0
    %v1444 = vadd.f32 %v1345, %v1443
    %v1445 = vpop.f32.mrb[0].mxu0
    %v1446 = vpop.f32.mrb[0].mxu0
    %v1447 = vadd.f32 %v1346, %v1446
    %v1448 = vpop.f32.mrb[0].mxu0
    %1449 = vmatprep.mubr.bf16.mxu0 0
    %1450 = vmatmul.mubr.bf16.gmra.mrb[0].mxu0 %v1322
    %v1451 = vpop.f32.mrb[0].mxu0
    %v1452 = vadd.f32 %v1347, %v1451
    %v1453 = vpop.f32.mrb[0].mxu0
    %v1454 = vpop.f32.mrb[0].mxu0
    %v1455 = vadd.f32 %v1348, %v1454
    %v1456 = vpop.f32.mrb[0].mxu0
    %1457 = vmatprep.mubr.bf16.mxu0 0
    %1458 = vmatmul.mubr.bf16.gmra.mrb[0].mxu0 %v1323
    %v1459 = vpop.f32.mrb[0].mxu0
    %v1460 = vadd.f32 %v1349, %v1459
    %v1461 = vpop.f32.mrb[0].mxu0
    %v1462 = vpop.f32.mrb[0].mxu0
    %v1463 = vadd.f32 %v1350, %v1462
    %v1464 = vpop.f32.mrb[0].mxu0
    %1465 = vmatprep.mubr.bf16.mxu0 0
    %1466 = vmatmul.mubr.bf16.gmra.mrb[0].mxu0 %v1324
    %v1467 = vpop.f32.mrb[0].mxu0
    %v1468 = vadd.f32 %v1351, %v1467
    %v1469 = vpop.f32.mrb[0].mxu0
    %v1470 = vpop.f32.mrb[0].mxu0
    %v1471 = vadd.f32 %v1352, %v1470
    %v1472 = vpop.f32.mrb[0].mxu0
    %1473 = vmatprep.mubr.bf16.mxu0 0
    %1474 = vmatmul.mubr.bf16.gmra.mrb[0].mxu0 %v1325
    %v1475 = vpop.f32.mrb[0].mxu0
    %v1476 = vadd.f32 %v1353, %v1475
    %v1477 = vpop.f32.mrb[0].mxu0
    %v1478 = vpop.f32.mrb[0].mxu0
    %v1479 = vadd.f32 %v1354, %v1478
    %v1480 = vpop.f32.mrb[0].mxu0
    %1481 = vmatprep.mubr.bf16.mxu0 0
    %1482 = vmatmul.mubr.bf16.gmra.mrb[0].mxu0 %v1326
    %v1483 = vpop.f32.mrb[0].mxu0
    %v1484 = vadd.f32 %v1355, %v1483
    %v1485 = vpop.f32.mrb[0].mxu0
    %v1486 = vpop.f32.mrb[0].mxu0
    %v1487 = vadd.f32 %v1356, %v1486
    %v1488 = vpop.f32.mrb[0].mxu0
    %1489 = vmatprep.mubr.bf16.mxu0 0
    %1490 = vmatmul.mubr.bf16.gmra.mrb[0].mxu0 %v1327
    %v1491 = vpop.f32.mrb[0].mxu0
    %v1492 = vadd.f32 %v1357, %v1491
    %v1493 = vpop.f32.mrb[0].mxu0
    %v1494 = vpop.f32.mrb[0].mxu0
    %v1495 = vadd.f32 %v1358, %v1494
    %v1496 = vpop.f32.mrb[0].mxu0
    %1497 = vmatprep.mubr.bf16.mxu0 0
    %1498 = vmatmul.mubr.bf16.gmra.mrb[0].mxu0 %v1328
    %v1499 = vpop.f32.mrb[0].mxu0
    %v1500 = vadd.f32 %v1359, %v1499
    %v1501 = vpop.f32.mrb[0].mxu0
    %v1502 = vpop.f32.mrb[0].mxu0
    %v1503 = vadd.f32 %v1360, %v1502
    %v1504 = vpop.f32.mrb[0].mxu0
    %1505 = vdwg.mxu0
    %v1506 = vtanh.pop %v1444
    %v1507 = vtanh.pop %v1447
    %v1508 = vtanh.pop %v1452
    %v1509 = vtanh.pop %v1455
    %v1510 = vtanh.pop %v1460
    %v1511 = vtanh.pop %v1463
    %v1512 = vtanh.pop %v1468
    %v1513 = vtanh.pop %v1471
    %v1514 = vtanh.pop %v1476
    %v1515 = vtanh.pop %v1479
    %v1516 = vtanh.pop %v1484
    %v1517 = vtanh.pop %v1487
    %v1518 = vtanh.pop %v1492
    %v1519 = vtanh.pop %v1495
    %v1520 = vtanh.pop %v1500
    %v1521 = vtanh.pop %v1503
    %1522 = vst [vmem:[#allocation15] sm:$0xff] %v1506
    %1523 = vst [vmem:[#allocation15 + $0x8] sm:$0xff] %v1507
    %1524 = vst [vmem:[#allocation15 + $0x10] sm:$0xff] %v1508
    %1525 = vst [vmem:[#allocation15 + $0x18] sm:$0xff] %v1509
    %1526 = vst [vmem:[#allocation15 + $0x20] sm:$0xff] %v1510
    %1527 = vst [vmem:[#allocation15 + $0x28] sm:$0xff] %v1511
    %1528 = vst [vmem:[#allocation15 + $0x30] sm:$0xff] %v1512
    %1529 = vst [vmem:[#allocation15 + $0x38] sm:$0xff] %v1513
    %1530 = vst [vmem:[#allocation15 + $0x40] sm:$0xff] %v1514
    %1531 = vst [vmem:[#allocation15 + $0x48] sm:$0xff] %v1515
    %1532 = vst [vmem:[#allocation15 + $0x50] sm:$0xff] %v1516
    %1533 = vst [vmem:[#allocation15 + $0x58] sm:$0xff] %v1517
    %1534 = vst [vmem:[#allocation15 + $0x60] sm:$0xff] %v1518
    %1535 = vst [vmem:[#allocation15 + $0x68] sm:$0xff] %v1519
    %1536 = vst [vmem:[#allocation15 + $0x70] sm:$0xff] %v1520
    %1537 = vst [vmem:[#allocation15 + $0x78] sm:$0xff] %v1521
    // Predicated region
    $region62: #{tpu_custom_call.1} parent=1 // pred_check
      _
    $region63: #{tpu_custom_call.1} parent=1 // pred_check_branch
      %1539 = sbr.rel (0) target = $region65
    $region64: #{tpu_custom_call.1} parent=1 // pred_region
      %s1541 = ssub.s32 2048, 2048
      %1542 = vsyncadd [#allocation5], %s1541
      %s1543 = sshll.u32 [#allocation15], 4
      %s1544 = int_to_ptr.vmem [resolvable:$true] %s1543
      %1549 = dma.vmem_to_hbm [thread:$0]  %s1544, 2048, %s8, [#allocation5], 128, 128, 8
    $region65: #{tpu_custom_call.1} parent=1 // pred_fallthru
      _
    // Predicated region
    $region66: #{tpu_custom_call.1} parent=1 // pred_check
      _
    $region67: #{tpu_custom_call.1} parent=1 // pred_check_branch
      %1551 = sbr.rel (0) target = $region69
    $region68: #{tpu_custom_call.1} parent=1 // pred_region
      %1552 = dma.done [#allocation5], 2048
    $region69: #{tpu_custom_call.1} parent=1 // pred_fallthru
      _
    %1553 = vsyncpa [#allocation4], 1
    %1554 = vsyncpa [#allocation7], 1
    %1555 = vsyncpa [#allocation10], 1
    %1556 = vsyncpa [#allocation13], 1
    %1557 = vsyncpa [#allocation5], 1

// kernel: tpu_custom_call.1
$region0: #{tpu_custom_call.1}
  #allocation0 [shape = 'u32[]', space=smem, size = 0x4, offset = 0x4, fixed_abs, tag = 'smem constant byte address 0x4 - core index']
  #allocation1 [shape = 'u32[144,128]{1,0:T(1,128)}', space=vmem, size = 0x12000, scoped, tag = 'internal scratch']
  #allocation2 [shape = 'f32[128,512]{1,0:T(8,128)}', space=vmem, size = 0x40000, scoped, tag = 'scratch operand']
  %s0 = inlined_call_operand.hbm [shape: f32[128,128], index: 0, kind: input, shape index: {}]
  %s1 = inlined_call_operand.hbm [shape: f32[128,128], index: 1, kind: input, shape index: {}]
  %s2 = inlined_call_operand.hbm [shape: bf16[128,512], index: 2, kind: input, shape index: {}]
  %s3 = inlined_call_operand.vmem [shape: f32[1,512], index: 3, kind: input, shape index: {}]
  %s4 = inlined_call_operand.hbm [shape: bf16[128,128], index: 4, kind: input, shape index: {}]
  %s5 = inlined_call_operand.hbm [shape: bf16[128,128], index: 5, kind: input, shape index: {}]
  %s6 = inlined_call_operand.hbm [shape: bf16[128,128], index: 6, kind: input, shape index: {}]
  %s7 = inlined_call_operand.hbm [shape: bf16[128,128], index: 7, kind: input, shape index: {}]
  %s8 = inlined_call_operand.hbm [shape: f32[128,128], index: 8, kind: output, shape index: {}]
  %s9 = sld [smem:[#allocation0]]
  $region70: #{tpu_custom_call.1} parent=0
    _
  %s11 = ssub.s32 1, %s9
  %s12 = scalar_select 0, %s11, %s9
  $region1: #{tpu_custom_call.1} parent=0
    #allocation3 [shape = 'u8[65536]{0}', space=vmem, size = 0x10000, scoped, tag = 'input window, operand 0, single buffered']
    #allocation4 [shape = 's32[1]{0}', space=sflag, size = 0x4, scoped, tag = 'scoped memory for tpu_custom_call.1']
    #allocation5 [shape = 's32[1]{0}', space=sflag, size = 0x4, scoped, tag = 'scoped memory for tpu_custom_call.1']
    #allocation6 [shape = 'u8[65536]{0}', space=vmem, size = 0x10000, scoped, tag = 'input window, operand 1, single buffered']
    #allocation7 [shape = 's32[1]{0}', space=sflag, size = 0x4, scoped, tag = 'scoped memory for tpu_custom_call.1']
    #allocation8 [shape = 'u8[131072]{0}', space=vmem, size = 0x20000, scoped, tag = 'input window, operand 2, single buffered']
    #allocation9 [shape = 'u8[32768]{0}', space=vmem, size = 0x8000, scoped, tag = 'input window, operand 4, single buffered']
    #allocation10 [shape = 's32[1]{0}', space=sflag, size = 0x4, scoped, tag = 'scoped memory for tpu_custom_call.1']
    #allocation11 [shape = 'u8[32768]{0}', space=vmem, size = 0x8000, scoped, tag = 'input window, operand 5, single buffered']
    #allocation12 [shape = 'u8[32768]{0}', space=vmem, size = 0x8000, scoped, tag = 'input window, operand 6, single buffered']
    #allocation13 [shape = 's32[1]{0}', space=sflag, size = 0x4, scoped, tag = 'scoped memory for tpu_custom_call.1']
    #allocation14 [shape = 'u8[32768]{0}', space=vmem, size = 0x8000, scoped, tag = 'input window, operand 7, single buffered']
    #allocation15 [shape = 'u8[65536]{0}', space=vmem, size = 0x10000, scoped, tag = 'output window, operand 0, single buffered']
    %13 = vsyncpa [#allocation4], 0
    %14 = vsyncpa [#allocation7], 0
    %15 = vsyncpa [#allocation10], 0
    %16 = vsyncpa [#allocation13], 0
    %17 = vsyncpa [#allocation5], 0
    // Predicated region
    $region2: #{tpu_custom_call.1} parent=1 // pred_check
      _
    $region3: #{tpu_custom_call.1} parent=1 // pred_check_branch
      %19 = sbr.rel (0) target = $region5
    $region4: #{tpu_custom_call.1} parent=1 // pred_region
      %s21 = ssub.s32 2048, 2048
      %22 = vsyncadd [#allocation4], %s21
      %s23 = sshll.u32 [#allocation3], 4
      %s24 = int_to_ptr.vmem [resolvable:$true] %s23
      %29 = dma.hbm_to_vmem [thread:$0]  %s0, 2048, %s24, [#allocation4], 128, 128, 8
    $region5: #{tpu_custom_call.1} parent=1 // pred_fallthru
      _
    // Predicated region
    $region6: #{tpu_custom_call.1} parent=1 // pred_check
      _
    $region7: #{tpu_custom_call.1} parent=1 // pred_check_branch
      %31 = sbr.rel (0) target = $region9
    $region8: #{tpu_custom_call.1} parent=1 // pred_region
      %s33 = ssub.s32 2048, 2048
      %34 = vsyncadd [#allocation7], %s33
      %s35 = sshll.u32 [#allocation6], 4
      %s36 = int_to_ptr.vmem [resolvable:$true] %s35
      %41 = dma.hbm_to_vmem [thread:$0]  %s1, 2048, %s36, [#allocation7], 128, 128, 8
    $region9: #{tpu_custom_call.1} parent=1 // pred_fallthru
      _
    // Predicated region
    $region10: #{tpu_custom_call.1} parent=1 // pred_check
      _
    $region11: #{tpu_custom_call.1} parent=1 // pred_check_branch
      %43 = sbr.rel (0) target = $region13
    $region12: #{tpu_custom_call.1} parent=1 // pred_region
      %s45 = ssub.s32 4096, 4096
      %46 = vsyncadd [#allocation7], %s45
      %s47 = sshll.u32 [#allocation8], 4
      %s48 = int_to_ptr.vmem [resolvable:$true] %s47
      %53 = dma.hbm_to_vmem [thread:$0]  %s2, 4096, %s48, [#allocation7], 256, 256, 16
    $region13: #{tpu_custom_call.1} parent=1 // pred_fallthru
      _
    // Predicated region
    $region14: #{tpu_custom_call.1} parent=1 // pred_check
      _
    $region15: #{tpu_custom_call.1} parent=1 // pred_check_branch
      %55 = sbr.rel (0) target = $region17
    $region16: #{tpu_custom_call.1} parent=1 // pred_region
      _
    $region17: #{tpu_custom_call.1} parent=1 // pred_fallthru
      _
    // Predicated region
    $region18: #{tpu_custom_call.1} parent=1 // pred_check
      _
    $region19: #{tpu_custom_call.1} parent=1 // pred_check_branch
      %57 = sbr.rel (0) target = $region21
    $region20: #{tpu_custom_call.1} parent=1 // pred_region
      %s59 = ssub.s32 1024, 1024
      %60 = vsyncadd [#allocation10], %s59
      %s61 = sshll.u32 [#allocation9], 4
      %s62 = int_to_ptr.vmem [resolvable:$true] %s61
      %67 = dma.hbm_to_vmem [thread:$0]  %s4, 1024, %s62, [#allocation10], 64, 64, 4
    $region21: #{tpu_custom_call.1} parent=1 // pred_fallthru
      _
    // Predicated region
    $region22: #{tpu_custom_call.1} parent=1 // pred_check
      _
    $region23: #{tpu_custom_call.1} parent=1 // pred_check_branch
      %69 = sbr.rel (0) target = $region25
    $region24: #{tpu_custom_call.1} parent=1 // pred_region
      %s71 = ssub.s32 1024, 1024
      %72 = vsyncadd [#allocation10], %s71
      %s73 = sshll.u32 [#allocation11], 4
      %s74 = int_to_ptr.vmem [resolvable:$true] %s73
      %79 = dma.hbm_to_vmem [thread:$0]  %s5, 1024, %s74, [#allocation10], 64, 64, 4
    $region25: #{tpu_custom_call.1} parent=1 // pred_fallthru
      _
    // Predicated region
    $region26: #{tpu_custom_call.1} parent=1 // pred_check
      _
    $region27: #{tpu_custom_call.1} parent=1 // pred_check_branch
      %81 = sbr.rel (0) target = $region29
    $region28: #{tpu_custom_call.1} parent=1 // pred_region
      %s83 = ssub.s32 1024, 1024
      %84 = vsyncadd [#allocation13], %s83
      %s85 = sshll.u32 [#allocation12], 4
      %s86 = int_to_ptr.vmem [resolvable:$true] %s85
      %91 = dma.hbm_to_vmem [thread:$0]  %s6, 1024, %s86, [#allocation13], 64, 64, 4
    $region29: #{tpu_custom_call.1} parent=1 // pred_fallthru
      _
    // Predicated region
    $region30: #{tpu_custom_call.1} parent=1 // pred_check
      _
    $region31: #{tpu_custom_call.1} parent=1 // pred_check_branch
      %93 = sbr.rel (0) target = $region33
    $region32: #{tpu_custom_call.1} parent=1 // pred_region
      %s95 = ssub.s32 1024, 1024
      %96 = vsyncadd [#allocation13], %s95
      %s97 = sshll.u32 [#allocation14], 4
      %s98 = int_to_ptr.vmem [resolvable:$true] %s97
      %103 = dma.hbm_to_vmem [thread:$0]  %s7, 1024, %s98, [#allocation13], 64, 64, 4
    $region33: #{tpu_custom_call.1} parent=1 // pred_fallthru
      _
    // Predicated region
    $region34: #{tpu_custom_call.1} parent=1 // pred_check
      _
    $region35: #{tpu_custom_call.1} parent=1 // pred_check_branch
      %105 = sbr.rel (0) target = $region37
    $region36: #{tpu_custom_call.1} parent=1 // pred_region
      %106 = dma.done [#allocation4], 2048
    $region37: #{tpu_custom_call.1} parent=1 // pred_fallthru
      _
    // Predicated region
    $region38: #{tpu_custom_call.1} parent=1 // pred_check
      _
    $region39: #{tpu_custom_call.1} parent=1 // pred_check_branch
      %108 = sbr.rel (0) target = $region41
    $region40: #{tpu_custom_call.1} parent=1 // pred_region
      %109 = dma.done [#allocation7], 2048
    $region41: #{tpu_custom_call.1} parent=1 // pred_fallthru
      _
    // Predicated region
    $region42: #{tpu_custom_call.1} parent=1 // pred_check
      _
    $region43: #{tpu_custom_call.1} parent=1 // pred_check_branch
      %111 = sbr.rel (0) target = $region45
    $region44: #{tpu_custom_call.1} parent=1 // pred_region
      %112 = dma.done [#allocation7], 4096
    $region45: #{tpu_custom_call.1} parent=1 // pred_fallthru
      _
    // Predicated region
    $region46: #{tpu_custom_call.1} parent=1 // pred_check
      _
    $region47: #{tpu_custom_call.1} parent=1 // pred_check_branch
      %114 = sbr.rel (0) target = $region49
    $region48: #{tpu_custom_call.1} parent=1 // pred_region
      %115 = dma.done [#allocation10], 1024
    $region49: #{tpu_custom_call.1} parent=1 // pred_fallthru
      _
    // Predicated region
    $region50: #{tpu_custom_call.1} parent=1 // pred_check
      _
    $region51: #{tpu_custom_call.1} parent=1 // pred_check_branch
      %117 = sbr.rel (0) target = $region53
    $region52: #{tpu_custom_call.1} parent=1 // pred_region
      %118 = dma.done [#allocation10], 1024
    $region53: #{tpu_custom_call.1} parent=1 // pred_fallthru
      _
    // Predicated region
    $region54: #{tpu_custom_call.1} parent=1 // pred_check
      _
    $region55: #{tpu_custom_call.1} parent=1 // pred_check_branch
      %120 = sbr.rel (0) target = $region57
    $region56: #{tpu_custom_call.1} parent=1 // pred_region
      %121 = dma.done [#allocation13], 1024
    $region57: #{tpu_custom_call.1} parent=1 // pred_fallthru
      _
    // Predicated region
    $region58: #{tpu_custom_call.1} parent=1 // pred_check
      _
    $region59: #{tpu_custom_call.1} parent=1 // pred_check_branch
      %123 = sbr.rel (0) target = $region61
    $region60: #{tpu_custom_call.1} parent=1 // pred_region
      %124 = dma.done [#allocation13], 1024
    $region61: #{tpu_custom_call.1} parent=1 // pred_fallthru
      _
    %v126 = vld [vmem:[#allocation6] sm:$0xff]
    %v127 = vld [vmem:[#allocation6 + $0x8] sm:$0xff]
    %v128 = vld [vmem:[#allocation6 + $0x10] sm:$0xff]
    %v129 = vld [vmem:[#allocation6 + $0x18] sm:$0xff]
    %v130 = vld [vmem:[#allocation6 + $0x20] sm:$0xff]
    %v131 = vld [vmem:[#allocation6 + $0x28] sm:$0xff]
    %v132 = vld [vmem:[#allocation6 + $0x30] sm:$0xff]
    %v133 = vld [vmem:[#allocation6 + $0x38] sm:$0xff]
    %v134 = vld [vmem:[#allocation6 + $0x40] sm:$0xff]
    %v135 = vld [vmem:[#allocation6 + $0x48] sm:$0xff]
    %v136 = vld [vmem:[#allocation6 + $0x50] sm:$0xff]
    %v137 = vld [vmem:[#allocation6 + $0x58] sm:$0xff]
    %v138 = vld [vmem:[#allocation6 + $0x60] sm:$0xff]
    %v139 = vld [vmem:[#allocation6 + $0x68] sm:$0xff]
    %v140 = vld [vmem:[#allocation6 + $0x70] sm:$0xff]
    %v141 = vld [vmem:[#allocation6 + $0x78] sm:$0xff]
    %v142 = vpack.c.bf16 %v127, %v126
    %v143 = vpack.c.bf16 %v129, %v128
    %v144 = vpack.c.bf16 %v131, %v130
    %v145 = vpack.c.bf16 %v133, %v132
    %v146 = vpack.c.bf16 %v135, %v134
    %v147 = vpack.c.bf16 %v137, %v136
    %v148 = vpack.c.bf16 %v139, %v138
    %v149 = vpack.c.bf16 %v141, %v140
    %v150 = vld [vmem:[#allocation8] sm:$0xff]
    %v151 = vld [vmem:[#allocation8 + $0x8] sm:$0xff]
    %v152 = vld [vmem:[#allocation8 + $0x10] sm:$0xff]
    %v153 = vld [vmem:[#allocation8 + $0x18] sm:$0xff]
    %v154 = vld [vmem:[#allocation8 + $0x20] sm:$0xff]
    %v155 = vld [vmem:[#allocation8 + $0x28] sm:$0xff]
    %v156 = vld [vmem:[#allocation8 + $0x30] sm:$0xff]
    %v157 = vld [vmem:[#allocation8 + $0x38] sm:$0xff]
    %v158 = vld [vmem:[#allocation8 + $0x40] sm:$0xff]
    %v159 = vld [vmem:[#allocation8 + $0x48] sm:$0xff]
    %v160 = vld [vmem:[#allocation8 + $0x50] sm:$0xff]
    %v161 = vld [vmem:[#allocation8 + $0x58] sm:$0xff]
    %v162 = vld [vmem:[#allocation8 + $0x60] sm:$0xff]
    %v163 = vld [vmem:[#allocation8 + $0x68] sm:$0xff]
    %v164 = vld [vmem:[#allocation8 + $0x70] sm:$0xff]
    %v165 = vld [vmem:[#allocation8 + $0x78] sm:$0xff]
    %v166 = vld [vmem:[#allocation8 + $0x80] sm:$0xff]
    %v167 = vld [vmem:[#allocation8 + $0x88] sm:$0xff]
    %v168 = vld [vmem:[#allocation8 + $0x90] sm:$0xff]
    %v169 = vld [vmem:[#allocation8 + $0x98] sm:$0xff]
    %v170 = vld [vmem:[#allocation8 + $0xa0] sm:$0xff]
    %v171 = vld [vmem:[#allocation8 + $0xa8] sm:$0xff]
    %v172 = vld [vmem:[#allocation8 + $0xb0] sm:$0xff]
    %v173 = vld [vmem:[#allocation8 + $0xb8] sm:$0xff]
    %v174 = vld [vmem:[#allocation8 + $0xc0] sm:$0xff]
    %v175 = vld [vmem:[#allocation8 + $0xc8] sm:$0xff]
    %v176 = vld [vmem:[#allocation8 + $0xd0] sm:$0xff]
    %v177 = vld [vmem:[#allocation8 + $0xd8] sm:$0xff]
    %v178 = vld [vmem:[#allocation8 + $0xe0] sm:$0xff]
    %v179 = vld [vmem:[#allocation8 + $0xe8] sm:$0xff]
    %v180 = vld [vmem:[#allocation8 + $0xf0] sm:$0xff]
    %v181 = vld [vmem:[#allocation8 + $0xf8] sm:$0xff]
    %v182 = vld [vmem:[%s3] sm:$0xf]
    %v184 = vlaneseq
    %v185 = vshrl.u32 %v184, 7
    %v186 = vsub.s32 0, %v185
    %v187 = vrot.slane %v182, %v186
    %v188 = vlaneseq
    %v189 = vshrl.u32 %v188, 7
    %v190 = vsub.s32 1, %v189
    %v191 = vrot.slane %v182, %v190
    %v192 = vlaneseq
    %v193 = vshrl.u32 %v192, 7
    %v194 = vsub.s32 2, %v193
    %v195 = vrot.slane %v182, %v194
    %v196 = vlaneseq
    %v197 = vshrl.u32 %v196, 7
    %v198 = vsub.s32 3, %v197
    %v199 = vrot.slane %v182, %v198
    %v236 = vunpack.c.l.b16 %v150
    %v237 = vunpack.c.h.b16 %v150
    %v238 = vunpack.c.l.b16 %v151
    %v239 = vunpack.c.h.b16 %v151
    %v240 = vunpack.c.l.b16 %v152
    %v241 = vunpack.c.h.b16 %v152
    %v242 = vunpack.c.l.b16 %v153
    %v243 = vunpack.c.h.b16 %v153
    %v244 = vunpack.c.l.b16 %v154
    %v245 = vunpack.c.h.b16 %v154
    %v246 = vunpack.c.l.b16 %v155
    %v247 = vunpack.c.h.b16 %v155
    %v248 = vunpack.c.l.b16 %v156
    %v249 = vunpack.c.h.b16 %v156
    %v250 = vunpack.c.l.b16 %v157
    %v251 = vunpack.c.h.b16 %v157
    %v252 = vunpack.c.l.b16 %v158
    %v253 = vunpack.c.h.b16 %v158
    %v254 = vunpack.c.l.b16 %v159
    %v255 = vunpack.c.h.b16 %v159
    %v256 = vunpack.c.l.b16 %v160
    %v257 = vunpack.c.h.b16 %v160
    %v258 = vunpack.c.l.b16 %v161
    %v259 = vunpack.c.h.b16 %v161
    %v260 = vunpack.c.l.b16 %v162
    %v261 = vunpack.c.h.b16 %v162
    %v262 = vunpack.c.l.b16 %v163
    %v263 = vunpack.c.h.b16 %v163
    %v264 = vunpack.c.l.b16 %v164
    %v265 = vunpack.c.h.b16 %v164
    %v266 = vunpack.c.l.b16 %v165
    %v267 = vunpack.c.h.b16 %v165
    %v268 = vunpack.c.l.b16 %v166
    %v269 = vunpack.c.h.b16 %v166
    %v270 = vunpack.c.l.b16 %v167
    %v271 = vunpack.c.h.b16 %v167
    %v272 = vunpack.c.l.b16 %v168
    %v273 = vunpack.c.h.b16 %v168
    %v274 = vunpack.c.l.b16 %v169
    %v275 = vunpack.c.h.b16 %v169
    %v276 = vunpack.c.l.b16 %v170
    %v277 = vunpack.c.h.b16 %v170
    %v278 = vunpack.c.l.b16 %v171
    %v279 = vunpack.c.h.b16 %v171
    %v280 = vunpack.c.l.b16 %v172
    %v281 = vunpack.c.h.b16 %v172
    %v282 = vunpack.c.l.b16 %v173
    %v283 = vunpack.c.h.b16 %v173
    %v284 = vunpack.c.l.b16 %v174
    %v285 = vunpack.c.h.b16 %v174
    %v286 = vunpack.c.l.b16 %v175
    %v287 = vunpack.c.h.b16 %v175
    %v288 = vunpack.c.l.b16 %v176
    %v289 = vunpack.c.h.b16 %v176
    %v290 = vunpack.c.l.b16 %v177
    %v291 = vunpack.c.h.b16 %v177
    %v292 = vunpack.c.l.b16 %v178
    %v293 = vunpack.c.h.b16 %v178
    %v294 = vunpack.c.l.b16 %v179
    %v295 = vunpack.c.h.b16 %v179
    %v296 = vunpack.c.l.b16 %v180
    %v297 = vunpack.c.h.b16 %v180
    %v298 = vunpack.c.l.b16 %v181
    %v299 = vunpack.c.h.b16 %v181
    %v300 = vpack.c.b16 %v240, %v236
    %v301 = vpack.c.b16 %v241, %v237
    %v302 = vpack.c.b16 %v242, %v238
    %v303 = vpack.c.b16 %v243, %v239
    %v304 = vpack.c.b16 %v248, %v244
    %v305 = vpack.c.b16 %v249, %v245
    %v306 = vpack.c.b16 %v250, %v246
    %v307 = vpack.c.b16 %v251, %v247
    %v308 = vpack.c.b16 %v256, %v252
    %v309 = vpack.c.b16 %v257, %v253
    %v310 = vpack.c.b16 %v258, %v254
    %v311 = vpack.c.b16 %v259, %v255
    %v312 = vpack.c.b16 %v264, %v260
    %v313 = vpack.c.b16 %v265, %v261
    %v314 = vpack.c.b16 %v266, %v262
    %v315 = vpack.c.b16 %v267, %v263
    %v316 = vpack.c.b16 %v272, %v268
    %v317 = vpack.c.b16 %v273, %v269
    %v318 = vpack.c.b16 %v274, %v270
    %v319 = vpack.c.b16 %v275, %v271
    %v320 = vpack.c.b16 %v280, %v276
    %v321 = vpack.c.b16 %v281, %v277
    %v322 = vpack.c.b16 %v282, %v278
    %v323 = vpack.c.b16 %v283, %v279
    %v324 = vpack.c.b16 %v288, %v284
    %v325 = vpack.c.b16 %v289, %v285
    %v326 = vpack.c.b16 %v290, %v286
    %v327 = vpack.c.b16 %v291, %v287
    %v328 = vpack.c.b16 %v296, %v292
    %v329 = vpack.c.b16 %v297, %v293
    %v330 = vpack.c.b16 %v298, %v294
    %v331 = vpack.c.b16 %v299, %v295
    %364 = vmatprep.subr.bf16.mxu0 %v301
    %365 = vmatpush1.bf16.msra.mxu0 %v300
    %366 = vmatprep.subr.bf16.mxu0 %v305
    %367 = vmatpush1.bf16.msra.mxu0 %v304
    %368 = vmatprep.subr.bf16.mxu0 %v309
    %369 = vmatpush1.bf16.msra.mxu0 %v308
    %370 = vmatprep.subr.bf16.mxu0 %v313
    %371 = vmatpush1.bf16.msra.mxu0 %v312
    %372 = vmatprep.subr.bf16.mxu0 %v317
    %373 = vmatpush1.bf16.msra.mxu0 %v316
    %374 = vmatprep.subr.bf16.mxu0 %v321
    %375 = vmatpush1.bf16.msra.mxu0 %v320
    %376 = vmatprep.subr.bf16.mxu0 %v325
    %377 = vmatpush1.bf16.msra.mxu0 %v324
    %378 = vmatprep.subr.bf16.mxu0 %v329
    %379 = vmatpush1.bf16.msra.mxu0 %v328
    %380 = vmatprep.subr.bf16.mxu0 0
    %381 = vmatpush1.bf16.msra.mxu0 0
    %382 = vmatprep.subr.bf16.mxu0 0
    %383 = vmatpush1.bf16.msra.mxu0 0
    %384 = vmatprep.subr.bf16.mxu0 0
    %385 = vmatpush1.bf16.msra.mxu0 0
    %386 = vmatprep.subr.bf16.mxu0 0
    %387 = vmatpush1.bf16.msra.mxu0 0
    %388 = vmatprep.subr.bf16.mxu0 0
    %389 = vmatpush1.bf16.msra.mxu0 0
    %390 = vmatprep.subr.bf16.mxu0 0
    %391 = vmatpush1.bf16.msra.mxu0 0
    %392 = vmatprep.subr.bf16.mxu0 0
    %393 = vmatpush1.bf16.msra.mxu0 0
    %394 = vmatprep.subr.bf16.mxu0 0
    %395 = vmatpush1.bf16.msra.mxu0 0
    %396 = vmatprep.mubr.bf16.mxu0 0
    %397 = vmatmul.mubr.bf16.gmra.mrb[0].mxu0 %v142
    %v398 = vpop.f32.mrb[0].mxu0
    %v399 = vadd.f32 %v187, %v398
    %v400 = vpop.f32.mrb[0].mxu0
    %v401 = vadd.f32 %v191, %v400
    %v402 = vpop.f32.mrb[0].mxu0
    %v403 = vadd.f32 %v187, %v402
    %v404 = vpop.f32.mrb[0].mxu0
    %v405 = vadd.f32 %v191, %v404
    %406 = vmatprep.mubr.bf16.mxu0 0
    %407 = vmatmul.mubr.bf16.gmra.mrb[0].mxu0 %v143
    %v408 = vpop.f32.mrb[0].mxu0
    %v409 = vadd.f32 %v187, %v408
    %v410 = vpop.f32.mrb[0].mxu0
    %v411 = vadd.f32 %v191, %v410
    %v412 = vpop.f32.mrb[0].mxu0
    %v413 = vadd.f32 %v187, %v412
    %v414 = vpop.f32.mrb[0].mxu0
    %v415 = vadd.f32 %v191, %v414
    %416 = vmatprep.mubr.bf16.mxu0 0
    %417 = vmatmul.mubr.bf16.gmra.mrb[0].mxu0 %v144
    %v418 = vpop.f32.mrb[0].mxu0
    %v419 = vadd.f32 %v187, %v418
    %v420 = vpop.f32.mrb[0].mxu0
    %v421 = vadd.f32 %v191, %v420
    %v422 = vpop.f32.mrb[0].mxu0
    %v423 = vadd.f32 %v187, %v422
    %v424 = vpop.f32.mrb[0].mxu0
    %v425 = vadd.f32 %v191, %v424
    %426 = vmatprep.mubr.bf16.mxu0 0
    %427 = vmatmul.mubr.bf16.gmra.mrb[0].mxu0 %v145
    %v428 = vpop.f32.mrb[0].mxu0
    %v429 = vadd.f32 %v187, %v428
    %v430 = vpop.f32.mrb[0].mxu0
    %v431 = vadd.f32 %v191, %v430
    %v432 = vpop.f32.mrb[0].mxu0
    %v433 = vadd.f32 %v187, %v432
    %v434 = vpop.f32.mrb[0].mxu0
    %v435 = vadd.f32 %v191, %v434
    %436 = vmatprep.mubr.bf16.mxu0 0
    %437 = vmatmul.mubr.bf16.gmra.mrb[0].mxu0 %v146
    %v438 = vpop.f32.mrb[0].mxu0
    %v439 = vadd.f32 %v187, %v438
    %v440 = vpop.f32.mrb[0].mxu0
    %v441 = vadd.f32 %v191, %v440
    %v442 = vpop.f32.mrb[0].mxu0
    %v443 = vadd.f32 %v187, %v442
    %v444 = vpop.f32.mrb[0].mxu0
    %v445 = vadd.f32 %v191, %v444
    %446 = vmatprep.mubr.bf16.mxu0 0
    %447 = vmatmul.mubr.bf16.gmra.mrb[0].mxu0 %v147
    %v448 = vpop.f32.mrb[0].mxu0
    %v449 = vadd.f32 %v187, %v448
    %v450 = vpop.f32.mrb[0].mxu0
    %v451 = vadd.f32 %v191, %v450
    %v452 = vpop.f32.mrb[0].mxu0
    %v453 = vadd.f32 %v187, %v452
    %v454 = vpop.f32.mrb[0].mxu0
    %v455 = vadd.f32 %v191, %v454
    %456 = vmatprep.mubr.bf16.mxu0 0
    %457 = vmatmul.mubr.bf16.gmra.mrb[0].mxu0 %v148
    %v458 = vpop.f32.mrb[0].mxu0
    %v459 = vadd.f32 %v187, %v458
    %v460 = vpop.f32.mrb[0].mxu0
    %v461 = vadd.f32 %v191, %v460
    %v462 = vpop.f32.mrb[0].mxu0
    %v463 = vadd.f32 %v187, %v462
    %v464 = vpop.f32.mrb[0].mxu0
    %v465 = vadd.f32 %v191, %v464
    %466 = vmatprep.mubr.bf16.mxu0 0
    %467 = vmatmul.mubr.bf16.gmra.mrb[0].mxu0 %v149
    %v468 = vpop.f32.mrb[0].mxu0
    %v469 = vadd.f32 %v187, %v468
    %v470 = vpop.f32.mrb[0].mxu0
    %v471 = vadd.f32 %v191, %v470
    %v472 = vpop.f32.mrb[0].mxu0
    %v473 = vadd.f32 %v187, %v472
    %v474 = vpop.f32.mrb[0].mxu0
    %v475 = vadd.f32 %v191, %v474
    %476 = vdwg.mxu0
    %477 = vmatprep.subr.bf16.mxu0 %v303
    %478 = vmatpush1.bf16.msra.mxu0 %v302
    %479 = vmatprep.subr.bf16.mxu0 %v307
    %480 = vmatpush1.bf16.msra.mxu0 %v306
    %481 = vmatprep.subr.bf16.mxu0 %v311
    %482 = vmatpush1.bf16.msra.mxu0 %v310
    %483 = vmatprep.subr.bf16.mxu0 %v315
    %484 = vmatpush1.bf16.msra.mxu0 %v314
    %485 = vmatprep.subr.bf16.mxu0 %v319
    %486 = vmatpush1.bf16.msra.mxu0 %v318
    %487 = vmatprep.subr.bf16.mxu0 %v323
    %488 = vmatpush1.bf16.msra.mxu0 %v322
    %489 = vmatprep.subr.bf16.mxu0 %v327
    %490 = vmatpush1.bf16.msra.mxu0 %v326
    %491 = vmatprep.subr.bf16.mxu0 %v331
    %492 = vmatpush1.bf16.msra.mxu0 %v330
    %493 = vmatprep.subr.bf16.mxu0 0
    %494 = vmatpush1.bf16.msra.mxu0 0
    %495 = vmatprep.subr.bf16.mxu0 0
    %496 = vmatpush1.bf16.msra.mxu0 0
    %497 = vmatprep.subr.bf16.mxu0 0
    %498 = vmatpush1.bf16.msra.mxu0 0
    %499 = vmatprep.subr.bf16.mxu0 0
    %500 = vmatpush1.bf16.msra.mxu0 0
    %501 = vmatprep.subr.bf16.mxu0 0
    %502 = vmatpush1.bf16.msra.mxu0 0
    %503 = vmatprep.subr.bf16.mxu0 0
    %504 = vmatpush1.bf16.msra.mxu0 0
    %505 = vmatprep.subr.bf16.mxu0 0
    %506 = vmatpush1.bf16.msra.mxu0 0
    %507 = vmatprep.subr.bf16.mxu0 0
    %508 = vmatpush1.bf16.msra.mxu0 0
    %509 = vmatprep.mubr.bf16.mxu0 0
    %510 = vmatmul.mubr.bf16.gmra.mrb[0].mxu0 %v142
    %v511 = vpop.f32.mrb[0].mxu0
    %v512 = vadd.f32 %v195, %v511
    %v513 = vpop.f32.mrb[0].mxu0
    %v514 = vadd.f32 %v199, %v513
    %v515 = vpop.f32.mrb[0].mxu0
    %v516 = vadd.f32 %v195, %v515
    %v517 = vpop.f32.mrb[0].mxu0
    %v518 = vadd.f32 %v199, %v517
    %519 = vmatprep.mubr.bf16.mxu0 0
    %520 = vmatmul.mubr.bf16.gmra.mrb[0].mxu0 %v143
    %v521 = vpop.f32.mrb[0].mxu0
    %v522 = vadd.f32 %v195, %v521
    %v523 = vpop.f32.mrb[0].mxu0
    %v524 = vadd.f32 %v199, %v523
    %v525 = vpop.f32.mrb[0].mxu0
    %v526 = vadd.f32 %v195, %v525
    %v527 = vpop.f32.mrb[0].mxu0
    %v528 = vadd.f32 %v199, %v527
    %529 = vmatprep.mubr.bf16.mxu0 0
    %530 = vmatmul.mubr.bf16.gmra.mrb[0].mxu0 %v144
    %v531 = vpop.f32.mrb[0].mxu0
    %v532 = vadd.f32 %v195, %v531
    %v533 = vpop.f32.mrb[0].mxu0
    %v534 = vadd.f32 %v199, %v533
    %v535 = vpop.f32.mrb[0].mxu0
    %v536 = vadd.f32 %v195, %v535
    %v537 = vpop.f32.mrb[0].mxu0
    %v538 = vadd.f32 %v199, %v537
    %539 = vmatprep.mubr.bf16.mxu0 0
    %540 = vmatmul.mubr.bf16.gmra.mrb[0].mxu0 %v145
    %v541 = vpop.f32.mrb[0].mxu0
    %v542 = vadd.f32 %v195, %v541
    %v543 = vpop.f32.mrb[0].mxu0
    %v544 = vadd.f32 %v199, %v543
    %v545 = vpop.f32.mrb[0].mxu0
    %v546 = vadd.f32 %v195, %v545
    %v547 = vpop.f32.mrb[0].mxu0
    %v548 = vadd.f32 %v199, %v547
    %549 = vmatprep.mubr.bf16.mxu0 0
    %550 = vmatmul.mubr.bf16.gmra.mrb[0].mxu0 %v146
    %v551 = vpop.f32.mrb[0].mxu0
    %v552 = vadd.f32 %v195, %v551
    %v553 = vpop.f32.mrb[0].mxu0
    %v554 = vadd.f32 %v199, %v553
    %v555 = vpop.f32.mrb[0].mxu0
    %v556 = vadd.f32 %v195, %v555
    %v557 = vpop.f32.mrb[0].mxu0
    %v558 = vadd.f32 %v199, %v557
    %559 = vmatprep.mubr.bf16.mxu0 0
    %560 = vmatmul.mubr.bf16.gmra.mrb[0].mxu0 %v147
    %v561 = vpop.f32.mrb[0].mxu0
    %v562 = vadd.f32 %v195, %v561
    %v563 = vpop.f32.mrb[0].mxu0
    %v564 = vadd.f32 %v199, %v563
    %v565 = vpop.f32.mrb[0].mxu0
    %v566 = vadd.f32 %v195, %v565
    %v567 = vpop.f32.mrb[0].mxu0
    %v568 = vadd.f32 %v199, %v567
    %569 = vmatprep.mubr.bf16.mxu0 0
    %570 = vmatmul.mubr.bf16.gmra.mrb[0].mxu0 %v148
    %v571 = vpop.f32.mrb[0].mxu0
    %v572 = vadd.f32 %v195, %v571
    %v573 = vpop.f32.mrb[0].mxu0
    %v574 = vadd.f32 %v199, %v573
    %v575 = vpop.f32.mrb[0].mxu0
    %v576 = vadd.f32 %v195, %v575
    %v577 = vpop.f32.mrb[0].mxu0
    %v578 = vadd.f32 %v199, %v577
    %579 = vmatprep.mubr.bf16.mxu0 0
    %580 = vmatmul.mubr.bf16.gmra.mrb[0].mxu0 %v149
    %v581 = vpop.f32.mrb[0].mxu0
    %v582 = vadd.f32 %v195, %v581
    %v583 = vpop.f32.mrb[0].mxu0
    %v584 = vadd.f32 %v199, %v583
    %v585 = vpop.f32.mrb[0].mxu0
    %v586 = vadd.f32 %v195, %v585
    %v587 = vpop.f32.mrb[0].mxu0
    %v588 = vadd.f32 %v199, %v587
    %589 = vdwg.mxu0
    %590 = vst [vmem:[#allocation2] sm:$0xff] %v399
    %591 = vst [vmem:[#allocation2 + $0x8] sm:$0xff] %v401
    %592 = vst [vmem:[#allocation2 + $0x10] sm:$0xff] %v512
    %593 = vst [vmem:[#allocation2 + $0x18] sm:$0xff] %v514
    %594 = vst [vmem:[#allocation2 + $0x20] sm:$0xff] %v403
    %595 = vst [vmem:[#allocation2 + $0x28] sm:$0xff] %v405
    %596 = vst [vmem:[#allocation2 + $0x30] sm:$0xff] %v516
    %597 = vst [vmem:[#allocation2 + $0x38] sm:$0xff] %v518
    %598 = vst [vmem:[#allocation2 + $0x40] sm:$0xff] %v409
    %599 = vst [vmem:[#allocation2 + $0x48] sm:$0xff] %v411
    %600 = vst [vmem:[#allocation2 + $0x50] sm:$0xff] %v522
    %601 = vst [vmem:[#allocation2 + $0x58] sm:$0xff] %v524
    %602 = vst [vmem:[#allocation2 + $0x60] sm:$0xff] %v413
    %603 = vst [vmem:[#allocation2 + $0x68] sm:$0xff] %v415
    %604 = vst [vmem:[#allocation2 + $0x70] sm:$0xff] %v526
    %605 = vst [vmem:[#allocation2 + $0x78] sm:$0xff] %v528
    %606 = vst [vmem:[#allocation2 + $0x80] sm:$0xff] %v419
    %607 = vst [vmem:[#allocation2 + $0x88] sm:$0xff] %v421
    %608 = vst [vmem:[#allocation2 + $0x90] sm:$0xff] %v532
    %609 = vst [vmem:[#allocation2 + $0x98] sm:$0xff] %v534
    %610 = vst [vmem:[#allocation2 + $0xa0] sm:$0xff] %v423
    %611 = vst [vmem:[#allocation2 + $0xa8] sm:$0xff] %v425
    %612 = vst [vmem:[#allocation2 + $0xb0] sm:$0xff] %v536
    %613 = vst [vmem:[#allocation2 + $0xb8] sm:$0xff] %v538
    %614 = vst [vmem:[#allocation2 + $0xc0] sm:$0xff] %v429
    %615 = vst [vmem:[#allocation2 + $0xc8] sm:$0xff] %v431
    %616 = vst [vmem:[#allocation2 + $0xd0] sm:$0xff] %v542
    %617 = vst [vmem:[#allocation2 + $0xd8] sm:$0xff] %v544
    %618 = vst [vmem:[#allocation2 + $0xe0] sm:$0xff] %v433
    %619 = vst [vmem:[#allocation2 + $0xe8] sm:$0xff] %v435
    %620 = vst [vmem:[#allocation2 + $0xf0] sm:$0xff] %v546
    %621 = vst [vmem:[#allocation2 + $0xf8] sm:$0xff] %v548
    %622 = vst [vmem:[#allocation2 + $0x100] sm:$0xff] %v439
    %623 = vst [vmem:[#allocation2 + $0x108] sm:$0xff] %v441
    %624 = vst [vmem:[#allocation2 + $0x110] sm:$0xff] %v552
    %625 = vst [vmem:[#allocation2 + $0x118] sm:$0xff] %v554
    %626 = vst [vmem:[#allocation2 + $0x120] sm:$0xff] %v443
    %627 = vst [vmem:[#allocation2 + $0x128] sm:$0xff] %v445
    %628 = vst [vmem:[#allocation2 + $0x130] sm:$0xff] %v556
    %629 = vst [vmem:[#allocation2 + $0x138] sm:$0xff] %v558
    %630 = vst [vmem:[#allocation2 + $0x140] sm:$0xff] %v449
    %631 = vst [vmem:[#allocation2 + $0x148] sm:$0xff] %v451
    %632 = vst [vmem:[#allocation2 + $0x150] sm:$0xff] %v562
    %633 = vst [vmem:[#allocation2 + $0x158] sm:$0xff] %v564
    %634 = vst [vmem:[#allocation2 + $0x160] sm:$0xff] %v453
    %635 = vst [vmem:[#allocation2 + $0x168] sm:$0xff] %v455
    %636 = vst [vmem:[#allocation2 + $0x170] sm:$0xff] %v566
    %637 = vst [vmem:[#allocation2 + $0x178] sm:$0xff] %v568
    %638 = vst [vmem:[#allocation2 + $0x180] sm:$0xff] %v459
    %639 = vst [vmem:[#allocation2 + $0x188] sm:$0xff] %v461
    %640 = vst [vmem:[#allocation2 + $0x190] sm:$0xff] %v572
    %641 = vst [vmem:[#allocation2 + $0x198] sm:$0xff] %v574
    %642 = vst [vmem:[#allocation2 + $0x1a0] sm:$0xff] %v463
    %643 = vst [vmem:[#allocation2 + $0x1a8] sm:$0xff] %v465
    %644 = vst [vmem:[#allocation2 + $0x1b0] sm:$0xff] %v576
    %645 = vst [vmem:[#allocation2 + $0x1b8] sm:$0xff] %v578
    %646 = vst [vmem:[#allocation2 + $0x1c0] sm:$0xff] %v469
    %647 = vst [vmem:[#allocation2 + $0x1c8] sm:$0xff] %v471
    %648 = vst [vmem:[#allocation2 + $0x1d0] sm:$0xff] %v582
    %649 = vst [vmem:[#allocation2 + $0x1d8] sm:$0xff] %v584
    %650 = vst [vmem:[#allocation2 + $0x1e0] sm:$0xff] %v473
    %651 = vst [vmem:[#allocation2 + $0x1e8] sm:$0xff] %v475
    %652 = vst [vmem:[#allocation2 + $0x1f0] sm:$0xff] %v586
    %653 = vst [vmem:[#allocation2 + $0x1f8] sm:$0xff] %v588
    %v654 = vld [vmem:[#allocation3] sm:$0xff]
    %v655 = vld [vmem:[#allocation3 + $0x8] sm:$0xff]
    %v656 = vld [vmem:[#allocation3 + $0x10] sm:$0xff]
    %v657 = vld [vmem:[#allocation3 + $0x18] sm:$0xff]
    %v658 = vld [vmem:[#allocation3 + $0x20] sm:$0xff]
    %v659 = vld [vmem:[#allocation3 + $0x28] sm:$0xff]
    %v660 = vld [vmem:[#allocation3 + $0x30] sm:$0xff]
    %v661 = vld [vmem:[#allocation3 + $0x38] sm:$0xff]
    %v662 = vld [vmem:[#allocation3 + $0x40] sm:$0xff]
    %v663 = vld [vmem:[#allocation3 + $0x48] sm:$0xff]
    %v664 = vld [vmem:[#allocation3 + $0x50] sm:$0xff]
    %v665 = vld [vmem:[#allocation3 + $0x58] sm:$0xff]
    %v666 = vld [vmem:[#allocation3 + $0x60] sm:$0xff]
    %v667 = vld [vmem:[#allocation3 + $0x68] sm:$0xff]
    %v668 = vld [vmem:[#allocation3 + $0x70] sm:$0xff]
    %v669 = vld [vmem:[#allocation3 + $0x78] sm:$0xff]
    %v670 = vpack.c.bf16 %v655, %v654
    %v671 = vpack.c.bf16 %v657, %v656
    %v672 = vpack.c.bf16 %v659, %v658
    %v673 = vpack.c.bf16 %v661, %v660
    %v674 = vpack.c.bf16 %v663, %v662
    %v675 = vpack.c.bf16 %v665, %v664
    %v676 = vpack.c.bf16 %v667, %v666
    %v677 = vpack.c.bf16 %v669, %v668
    %v678 = vld [vmem:[#allocation9] sm:$0xf]
    %v679 = vld [vmem:[#allocation9 + $0x4] sm:$0xf]
    %v680 = vld [vmem:[#allocation9 + $0x8] sm:$0xf]
    %v681 = vld [vmem:[#allocation9 + $0xc] sm:$0xf]
    %v682 = vld [vmem:[#allocation9 + $0x10] sm:$0xf]
    %v683 = vld [vmem:[#allocation9 + $0x14] sm:$0xf]
    %v684 = vld [vmem:[#allocation9 + $0x18] sm:$0xf]
    %v685 = vld [vmem:[#allocation9 + $0x1c] sm:$0xf]
    %v686 = vld [vmem:[#allocation9 + $0x20] sm:$0xf]
    %v687 = vld [vmem:[#allocation9 + $0x24] sm:$0xf]
    %v688 = vld [vmem:[#allocation9 + $0x28] sm:$0xf]
    %v689 = vld [vmem:[#allocation9 + $0x2c] sm:$0xf]
    %v690 = vld [vmem:[#allocation9 + $0x30] sm:$0xf]
    %v691 = vld [vmem:[#allocation9 + $0x34] sm:$0xf]
    %v692 = vld [vmem:[#allocation9 + $0x38] sm:$0xf]
    %v693 = vld [vmem:[#allocation9 + $0x3c] sm:$0xf]
    %v694 = vld [vmem:[#allocation2] sm:$0xff]
    %v695 = vld [vmem:[#allocation2 + $0x20] sm:$0xff]
    %v696 = vld [vmem:[#allocation2 + $0x40] sm:$0xff]
    %v697 = vld [vmem:[#allocation2 + $0x60] sm:$0xff]
    %v698 = vld [vmem:[#allocation2 + $0x80] sm:$0xff]
    %v699 = vld [vmem:[#allocation2 + $0xa0] sm:$0xff]
    %v700 = vld [vmem:[#allocation2 + $0xc0] sm:$0xff]
    %v701 = vld [vmem:[#allocation2 + $0xe0] sm:$0xff]
    %v702 = vld [vmem:[#allocation2 + $0x100] sm:$0xff]
    %v703 = vld [vmem:[#allocation2 + $0x120] sm:$0xff]
    %v704 = vld [vmem:[#allocation2 + $0x140] sm:$0xff]
    %v705 = vld [vmem:[#allocation2 + $0x160] sm:$0xff]
    %v706 = vld [vmem:[#allocation2 + $0x180] sm:$0xff]
    %v707 = vld [vmem:[#allocation2 + $0x1a0] sm:$0xff]
    %v708 = vld [vmem:[#allocation2 + $0x1c0] sm:$0xff]
    %v709 = vld [vmem:[#allocation2 + $0x1e0] sm:$0xff]
    %v726 = vunpack.c.l.b16 %v678
    %v727 = vunpack.c.l.b16 %v679
    %v728 = vunpack.c.l.b16 %v680
    %v729 = vunpack.c.l.b16 %v681
    %v730 = vunpack.c.l.b16 %v682
    %v731 = vunpack.c.l.b16 %v683
    %v732 = vunpack.c.l.b16 %v684
    %v733 = vunpack.c.l.b16 %v685
    %v734 = vunpack.c.l.b16 %v686
    %v735 = vunpack.c.l.b16 %v687
    %v736 = vunpack.c.l.b16 %v688
    %v737 = vunpack.c.l.b16 %v689
    %v738 = vunpack.c.l.b16 %v690
    %v739 = vunpack.c.l.b16 %v691
    %v740 = vunpack.c.l.b16 %v692
    %v741 = vunpack.c.l.b16 %v693
    %v742 = vpack.c.b16 %v727, %v726
    %v743 = vpack.c.b16 %v729, %v728
    %v744 = vpack.c.b16 %v731, %v730
    %v745 = vpack.c.b16 %v733, %v732
    %v746 = vpack.c.b16 %v735, %v734
    %v747 = vpack.c.b16 %v737, %v736
    %v748 = vpack.c.b16 %v739, %v738
    %v749 = vpack.c.b16 %v741, %v740
    %758 = vmatprep.subr.bf16.mxu0 0
    %759 = vmatpush1.bf16.msra.mxu0 %v742
    %760 = vmatprep.subr.bf16.mxu0 0
    %761 = vmatpush1.bf16.msra.mxu0 %v743
    %762 = vmatprep.subr.bf16.mxu0 0
    %763 = vmatpush1.bf16.msra.mxu0 %v744
    %764 = vmatprep.subr.bf16.mxu0 0
    %765 = vmatpush1.bf16.msra.mxu0 %v745
    %766 = vmatprep.subr.bf16.mxu0 0
    %767 = vmatpush1.bf16.msra.mxu0 %v746
    %768 = vmatprep.subr.bf16.mxu0 0
    %769 = vmatpush1.bf16.msra.mxu0 %v747
    %770 = vmatprep.subr.bf16.mxu0 0
    %771 = vmatpush1.bf16.msra.mxu0 %v748
    %772 = vmatprep.subr.bf16.mxu0 0
    %773 = vmatpush1.bf16.msra.mxu0 %v749
    %774 = vmatprep.subr.bf16.mxu0 0
    %775 = vmatpush1.bf16.msra.mxu0 0
    %776 = vmatprep.subr.bf16.mxu0 0
    %777 = vmatpush1.bf16.msra.mxu0 0
    %778 = vmatprep.subr.bf16.mxu0 0
    %779 = vmatpush1.bf16.msra.mxu0 0
    %780 = vmatprep.subr.bf16.mxu0 0
    %781 = vmatpush1.bf16.msra.mxu0 0
    %782 = vmatprep.subr.bf16.mxu0 0
    %783 = vmatpush1.bf16.msra.mxu0 0
    %784 = vmatprep.subr.bf16.mxu0 0
    %785 = vmatpush1.bf16.msra.mxu0 0
    %786 = vmatprep.subr.bf16.mxu0 0
    %787 = vmatpush1.bf16.msra.mxu0 0
    %788 = vmatprep.subr.bf16.mxu0 0
    %789 = vmatpush1.bf16.msra.mxu0 0
    %790 = vmatprep.mubr.bf16.mxu0 0
    %791 = vmatmul.mubr.bf16.gmra.mrb[0].mxu0 %v670
    %v792 = vpop.f32.mrb[0].mxu0
    %v793 = vadd.f32 %v694, %v792
    %v794 = vpop.f32.mrb[0].mxu0
    %v795 = vpop.f32.mrb[0].mxu0
    %v796 = vadd.f32 %v695, %v795
    %v797 = vpop.f32.mrb[0].mxu0
    %798 = vmatprep.mubr.bf16.mxu0 0
    %799 = vmatmul.mubr.bf16.gmra.mrb[0].mxu0 %v671
    %v800 = vpop.f32.mrb[0].mxu0
    %v801 = vadd.f32 %v696, %v800
    %v802 = vpop.f32.mrb[0].mxu0
    %v803 = vpop.f32.mrb[0].mxu0
    %v804 = vadd.f32 %v697, %v803
    %v805 = vpop.f32.mrb[0].mxu0
    %806 = vmatprep.mubr.bf16.mxu0 0
    %807 = vmatmul.mubr.bf16.gmra.mrb[0].mxu0 %v672
    %v808 = vpop.f32.mrb[0].mxu0
    %v809 = vadd.f32 %v698, %v808
    %v810 = vpop.f32.mrb[0].mxu0
    %v811 = vpop.f32.mrb[0].mxu0
    %v812 = vadd.f32 %v699, %v811
    %v813 = vpop.f32.mrb[0].mxu0
    %814 = vmatprep.mubr.bf16.mxu0 0
    %815 = vmatmul.mubr.bf16.gmra.mrb[0].mxu0 %v673
    %v816 = vpop.f32.mrb[0].mxu0
    %v817 = vadd.f32 %v700, %v816
    %v818 = vpop.f32.mrb[0].mxu0
    %v819 = vpop.f32.mrb[0].mxu0
    %v820 = vadd.f32 %v701, %v819
    %v821 = vpop.f32.mrb[0].mxu0
    %822 = vmatprep.mubr.bf16.mxu0 0
    %823 = vmatmul.mubr.bf16.gmra.mrb[0].mxu0 %v674
    %v824 = vpop.f32.mrb[0].mxu0
    %v825 = vadd.f32 %v702, %v824
    %v826 = vpop.f32.mrb[0].mxu0
    %v827 = vpop.f32.mrb[0].mxu0
    %v828 = vadd.f32 %v703, %v827
    %v829 = vpop.f32.mrb[0].mxu0
    %830 = vmatprep.mubr.bf16.mxu0 0
    %831 = vmatmul.mubr.bf16.gmra.mrb[0].mxu0 %v675
    %v832 = vpop.f32.mrb[0].mxu0
    %v833 = vadd.f32 %v704, %v832
    %v834 = vpop.f32.mrb[0].mxu0
    %v835 = vpop.f32.mrb[0].mxu0
    %v836 = vadd.f32 %v705, %v835
    %v837 = vpop.f32.mrb[0].mxu0
    %838 = vmatprep.mubr.bf16.mxu0 0
    %839 = vmatmul.mubr.bf16.gmra.mrb[0].mxu0 %v676
    %v840 = vpop.f32.mrb[0].mxu0
    %v841 = vadd.f32 %v706, %v840
    %v842 = vpop.f32.mrb[0].mxu0
    %v843 = vpop.f32.mrb[0].mxu0
    %v844 = vadd.f32 %v707, %v843
    %v845 = vpop.f32.mrb[0].mxu0
    %846 = vmatprep.mubr.bf16.mxu0 0
    %847 = vmatmul.mubr.bf16.gmra.mrb[0].mxu0 %v677
    %v848 = vpop.f32.mrb[0].mxu0
    %v849 = vadd.f32 %v708, %v848
    %v850 = vpop.f32.mrb[0].mxu0
    %v851 = vpop.f32.mrb[0].mxu0
    %v852 = vadd.f32 %v709, %v851
    %v853 = vpop.f32.mrb[0].mxu0
    %854 = vdwg.mxu0
    %v855 = vmul.f32 %v793, 0.2
    %v856 = vmul.f32 %v796, 0.2
    %v857 = vmul.f32 %v801, 0.2
    %v858 = vmul.f32 %v804, 0.2
    %v859 = vmul.f32 %v809, 0.2
    %v860 = vmul.f32 %v812, 0.2
    %v861 = vmul.f32 %v817, 0.2
    %v862 = vmul.f32 %v820, 0.2
    %v863 = vmul.f32 %v825, 0.2
    %v864 = vmul.f32 %v828, 0.2
    %v865 = vmul.f32 %v833, 0.2
    %v866 = vmul.f32 %v836, 0.2
    %v867 = vmul.f32 %v841, 0.2
    %v868 = vmul.f32 %v844, 0.2
    %v869 = vmul.f32 %v849, 0.2
    %v870 = vmul.f32 %v852, 0.2
    %v871 = vmax.f32 %v793, %v855
    %v872 = vmax.f32 %v796, %v856
    %v873 = vmax.f32 %v801, %v857
    %v874 = vmax.f32 %v804, %v858
    %v875 = vmax.f32 %v809, %v859
    %v876 = vmax.f32 %v812, %v860
    %v877 = vmax.f32 %v817, %v861
    %v878 = vmax.f32 %v820, %v862
    %v879 = vmax.f32 %v825, %v863
    %v880 = vmax.f32 %v828, %v864
    %v881 = vmax.f32 %v833, %v865
    %v882 = vmax.f32 %v836, %v866
    %v883 = vmax.f32 %v841, %v867
    %v884 = vmax.f32 %v844, %v868
    %v885 = vmax.f32 %v849, %v869
    %v886 = vmax.f32 %v852, %v870
    %v887 = vpack.c.bf16 %v872, %v871
    %v888 = vpack.c.bf16 %v874, %v873
    %v889 = vpack.c.bf16 %v876, %v875
    %v890 = vpack.c.bf16 %v878, %v877
    %v891 = vpack.c.bf16 %v880, %v879
    %v892 = vpack.c.bf16 %v882, %v881
    %v893 = vpack.c.bf16 %v884, %v883
    %v894 = vpack.c.bf16 %v886, %v885
    %v895 = vld [vmem:[#allocation11] sm:$0xf]
    %v896 = vld [vmem:[#allocation11 + $0x4] sm:$0xf]
    %v897 = vld [vmem:[#allocation11 + $0x8] sm:$0xf]
    %v898 = vld [vmem:[#allocation11 + $0xc] sm:$0xf]
    %v899 = vld [vmem:[#allocation11 + $0x10] sm:$0xf]
    %v900 = vld [vmem:[#allocation11 + $0x14] sm:$0xf]
    %v901 = vld [vmem:[#allocation11 + $0x18] sm:$0xf]
    %v902 = vld [vmem:[#allocation11 + $0x1c] sm:$0xf]
    %v903 = vld [vmem:[#allocation11 + $0x20] sm:$0xf]
    %v904 = vld [vmem:[#allocation11 + $0x24] sm:$0xf]
    %v905 = vld [vmem:[#allocation11 + $0x28] sm:$0xf]
    %v906 = vld [vmem:[#allocation11 + $0x2c] sm:$0xf]
    %v907 = vld [vmem:[#allocation11 + $0x30] sm:$0xf]
    %v908 = vld [vmem:[#allocation11 + $0x34] sm:$0xf]
    %v909 = vld [vmem:[#allocation11 + $0x38] sm:$0xf]
    %v910 = vld [vmem:[#allocation11 + $0x3c] sm:$0xf]
    %v911 = vld [vmem:[#allocation2 + $0x8] sm:$0xff]
    %v912 = vld [vmem:[#allocation2 + $0x28] sm:$0xff]
    %v913 = vld [vmem:[#allocation2 + $0x48] sm:$0xff]
    %v914 = vld [vmem:[#allocation2 + $0x68] sm:$0xff]
    %v915 = vld [vmem:[#allocation2 + $0x88] sm:$0xff]
    %v916 = vld [vmem:[#allocation2 + $0xa8] sm:$0xff]
    %v917 = vld [vmem:[#allocation2 + $0xc8] sm:$0xff]
    %v918 = vld [vmem:[#allocation2 + $0xe8] sm:$0xff]
    %v919 = vld [vmem:[#allocation2 + $0x108] sm:$0xff]
    %v920 = vld [vmem:[#allocation2 + $0x128] sm:$0xff]
    %v921 = vld [vmem:[#allocation2 + $0x148] sm:$0xff]
    %v922 = vld [vmem:[#allocation2 + $0x168] sm:$0xff]
    %v923 = vld [vmem:[#allocation2 + $0x188] sm:$0xff]
    %v924 = vld [vmem:[#allocation2 + $0x1a8] sm:$0xff]
    %v925 = vld [vmem:[#allocation2 + $0x1c8] sm:$0xff]
    %v926 = vld [vmem:[#allocation2 + $0x1e8] sm:$0xff]
    %v943 = vunpack.c.l.b16 %v895
    %v944 = vunpack.c.l.b16 %v896
    %v945 = vunpack.c.l.b16 %v897
    %v946 = vunpack.c.l.b16 %v898
    %v947 = vunpack.c.l.b16 %v899
    %v948 = vunpack.c.l.b16 %v900
    %v949 = vunpack.c.l.b16 %v901
    %v950 = vunpack.c.l.b16 %v902
    %v951 = vunpack.c.l.b16 %v903
    %v952 = vunpack.c.l.b16 %v904
    %v953 = vunpack.c.l.b16 %v905
    %v954 = vunpack.c.l.b16 %v906
    %v955 = vunpack.c.l.b16 %v907
    %v956 = vunpack.c.l.b16 %v908
    %v957 = vunpack.c.l.b16 %v909
    %v958 = vunpack.c.l.b16 %v910
    %v959 = vpack.c.b16 %v944, %v943
    %v960 = vpack.c.b16 %v946, %v945
    %v961 = vpack.c.b16 %v948, %v947
    %v962 = vpack.c.b16 %v950, %v949
    %v963 = vpack.c.b16 %v952, %v951
    %v964 = vpack.c.b16 %v954, %v953
    %v965 = vpack.c.b16 %v956, %v955
    %v966 = vpack.c.b16 %v958, %v957
    %975 = vmatprep.subr.bf16.mxu0 0
    %976 = vmatpush1.bf16.msra.mxu0 %v959
    %977 = vmatprep.subr.bf16.mxu0 0
    %978 = vmatpush1.bf16.msra.mxu0 %v960
    %979 = vmatprep.subr.bf16.mxu0 0
    %980 = vmatpush1.bf16.msra.mxu0 %v961
    %981 = vmatprep.subr.bf16.mxu0 0
    %982 = vmatpush1.bf16.msra.mxu0 %v962
    %983 = vmatprep.subr.bf16.mxu0 0
    %984 = vmatpush1.bf16.msra.mxu0 %v963
    %985 = vmatprep.subr.bf16.mxu0 0
    %986 = vmatpush1.bf16.msra.mxu0 %v964
    %987 = vmatprep.subr.bf16.mxu0 0
    %988 = vmatpush1.bf16.msra.mxu0 %v965
    %989 = vmatprep.subr.bf16.mxu0 0
    %990 = vmatpush1.bf16.msra.mxu0 %v966
    %991 = vmatprep.subr.bf16.mxu0 0
    %992 = vmatpush1.bf16.msra.mxu0 0
    %993 = vmatprep.subr.bf16.mxu0 0
    %994 = vmatpush1.bf16.msra.mxu0 0
    %995 = vmatprep.subr.bf16.mxu0 0
    %996 = vmatpush1.bf16.msra.mxu0 0
    %997 = vmatprep.subr.bf16.mxu0 0
    %998 = vmatpush1.bf16.msra.mxu0 0
    %999 = vmatprep.subr.bf16.mxu0 0
    %1000 = vmatpush1.bf16.msra.mxu0 0
    %1001 = vmatprep.subr.bf16.mxu0 0
    %1002 = vmatpush1.bf16.msra.mxu0 0
    %1003 = vmatprep.subr.bf16.mxu0 0
    %1004 = vmatpush1.bf16.msra.mxu0 0
    %1005 = vmatprep.subr.bf16.mxu0 0
    %1006 = vmatpush1.bf16.msra.mxu0 0
    %1007 = vmatprep.mubr.bf16.mxu0 0
    %1008 = vmatmul.mubr.bf16.gmra.mrb[0].mxu0 %v887
    %v1009 = vpop.f32.mrb[0].mxu0
    %v1010 = vadd.f32 %v911, %v1009
    %v1011 = vpop.f32.mrb[0].mxu0
    %v1012 = vpop.f32.mrb[0].mxu0
    %v1013 = vadd.f32 %v912, %v1012
    %v1014 = vpop.f32.mrb[0].mxu0
    %1015 = vmatprep.mubr.bf16.mxu0 0
    %1016 = vmatmul.mubr.bf16.gmra.mrb[0].mxu0 %v888
    %v1017 = vpop.f32.mrb[0].mxu0
    %v1018 = vadd.f32 %v913, %v1017
    %v1019 = vpop.f32.mrb[0].mxu0
    %v1020 = vpop.f32.mrb[0].mxu0
    %v1021 = vadd.f32 %v914, %v1020
    %v1022 = vpop.f32.mrb[0].mxu0
    %1023 = vmatprep.mubr.bf16.mxu0 0
    %1024 = vmatmul.mubr.bf16.gmra.mrb[0].mxu0 %v889
    %v1025 = vpop.f32.mrb[0].mxu0
    %v1026 = vadd.f32 %v915, %v1025
    %v1027 = vpop.f32.mrb[0].mxu0
    %v1028 = vpop.f32.mrb[0].mxu0
    %v1029 = vadd.f32 %v916, %v1028
    %v1030 = vpop.f32.mrb[0].mxu0
    %1031 = vmatprep.mubr.bf16.mxu0 0
    %1032 = vmatmul.mubr.bf16.gmra.mrb[0].mxu0 %v890
    %v1033 = vpop.f32.mrb[0].mxu0
    %v1034 = vadd.f32 %v917, %v1033
    %v1035 = vpop.f32.mrb[0].mxu0
    %v1036 = vpop.f32.mrb[0].mxu0
    %v1037 = vadd.f32 %v918, %v1036
    %v1038 = vpop.f32.mrb[0].mxu0
    %1039 = vmatprep.mubr.bf16.mxu0 0
    %1040 = vmatmul.mubr.bf16.gmra.mrb[0].mxu0 %v891
    %v1041 = vpop.f32.mrb[0].mxu0
    %v1042 = vadd.f32 %v919, %v1041
    %v1043 = vpop.f32.mrb[0].mxu0
    %v1044 = vpop.f32.mrb[0].mxu0
    %v1045 = vadd.f32 %v920, %v1044
    %v1046 = vpop.f32.mrb[0].mxu0
    %1047 = vmatprep.mubr.bf16.mxu0 0
    %1048 = vmatmul.mubr.bf16.gmra.mrb[0].mxu0 %v892
    %v1049 = vpop.f32.mrb[0].mxu0
    %v1050 = vadd.f32 %v921, %v1049
    %v1051 = vpop.f32.mrb[0].mxu0
    %v1052 = vpop.f32.mrb[0].mxu0
    %v1053 = vadd.f32 %v922, %v1052
    %v1054 = vpop.f32.mrb[0].mxu0
    %1055 = vmatprep.mubr.bf16.mxu0 0
    %1056 = vmatmul.mubr.bf16.gmra.mrb[0].mxu0 %v893
    %v1057 = vpop.f32.mrb[0].mxu0
    %v1058 = vadd.f32 %v923, %v1057
    %v1059 = vpop.f32.mrb[0].mxu0
    %v1060 = vpop.f32.mrb[0].mxu0
    %v1061 = vadd.f32 %v924, %v1060
    %v1062 = vpop.f32.mrb[0].mxu0
    %1063 = vmatprep.mubr.bf16.mxu0 0
    %1064 = vmatmul.mubr.bf16.gmra.mrb[0].mxu0 %v894
    %v1065 = vpop.f32.mrb[0].mxu0
    %v1066 = vadd.f32 %v925, %v1065
    %v1067 = vpop.f32.mrb[0].mxu0
    %v1068 = vpop.f32.mrb[0].mxu0
    %v1069 = vadd.f32 %v926, %v1068
    %v1070 = vpop.f32.mrb[0].mxu0
    %1071 = vdwg.mxu0
    %v1072 = vmul.f32 %v1010, 0.2
    %v1073 = vmul.f32 %v1013, 0.2
    %v1074 = vmul.f32 %v1018, 0.2
    %v1075 = vmul.f32 %v1021, 0.2
    %v1076 = vmul.f32 %v1026, 0.2
    %v1077 = vmul.f32 %v1029, 0.2
    %v1078 = vmul.f32 %v1034, 0.2
    %v1079 = vmul.f32 %v1037, 0.2
    %v1080 = vmul.f32 %v1042, 0.2
    %v1081 = vmul.f32 %v1045, 0.2
    %v1082 = vmul.f32 %v1050, 0.2
    %v1083 = vmul.f32 %v1053, 0.2
    %v1084 = vmul.f32 %v1058, 0.2
    %v1085 = vmul.f32 %v1061, 0.2
    %v1086 = vmul.f32 %v1066, 0.2
    %v1087 = vmul.f32 %v1069, 0.2
    %v1088 = vmax.f32 %v1010, %v1072
    %v1089 = vmax.f32 %v1013, %v1073
    %v1090 = vmax.f32 %v1018, %v1074
    %v1091 = vmax.f32 %v1021, %v1075
    %v1092 = vmax.f32 %v1026, %v1076
    %v1093 = vmax.f32 %v1029, %v1077
    %v1094 = vmax.f32 %v1034, %v1078
    %v1095 = vmax.f32 %v1037, %v1079
    %v1096 = vmax.f32 %v1042, %v1080
    %v1097 = vmax.f32 %v1045, %v1081
    %v1098 = vmax.f32 %v1050, %v1082
    %v1099 = vmax.f32 %v1053, %v1083
    %v1100 = vmax.f32 %v1058, %v1084
    %v1101 = vmax.f32 %v1061, %v1085
    %v1102 = vmax.f32 %v1066, %v1086
    %v1103 = vmax.f32 %v1069, %v1087
    %v1104 = vpack.c.bf16 %v1089, %v1088
    %v1105 = vpack.c.bf16 %v1091, %v1090
    %v1106 = vpack.c.bf16 %v1093, %v1092
    %v1107 = vpack.c.bf16 %v1095, %v1094
    %v1108 = vpack.c.bf16 %v1097, %v1096
    %v1109 = vpack.c.bf16 %v1099, %v1098
    %v1110 = vpack.c.bf16 %v1101, %v1100
    %v1111 = vpack.c.bf16 %v1103, %v1102
    %v1112 = vld [vmem:[#allocation12] sm:$0xf]
    %v1113 = vld [vmem:[#allocation12 + $0x4] sm:$0xf]
    %v1114 = vld [vmem:[#allocation12 + $0x8] sm:$0xf]
    %v1115 = vld [vmem:[#allocation12 + $0xc] sm:$0xf]
    %v1116 = vld [vmem:[#allocation12 + $0x10] sm:$0xf]
    %v1117 = vld [vmem:[#allocation12 + $0x14] sm:$0xf]
    %v1118 = vld [vmem:[#allocation12 + $0x18] sm:$0xf]
    %v1119 = vld [vmem:[#allocation12 + $0x1c] sm:$0xf]
    %v1120 = vld [vmem:[#allocation12 + $0x20] sm:$0xf]
    %v1121 = vld [vmem:[#allocation12 + $0x24] sm:$0xf]
    %v1122 = vld [vmem:[#allocation12 + $0x28] sm:$0xf]
    %v1123 = vld [vmem:[#allocation12 + $0x2c] sm:$0xf]
    %v1124 = vld [vmem:[#allocation12 + $0x30] sm:$0xf]
    %v1125 = vld [vmem:[#allocation12 + $0x34] sm:$0xf]
    %v1126 = vld [vmem:[#allocation12 + $0x38] sm:$0xf]
    %v1127 = vld [vmem:[#allocation12 + $0x3c] sm:$0xf]
    %v1128 = vld [vmem:[#allocation2 + $0x10] sm:$0xff]
    %v1129 = vld [vmem:[#allocation2 + $0x30] sm:$0xff]
    %v1130 = vld [vmem:[#allocation2 + $0x50] sm:$0xff]
    %v1131 = vld [vmem:[#allocation2 + $0x70] sm:$0xff]
    %v1132 = vld [vmem:[#allocation2 + $0x90] sm:$0xff]
    %v1133 = vld [vmem:[#allocation2 + $0xb0] sm:$0xff]
    %v1134 = vld [vmem:[#allocation2 + $0xd0] sm:$0xff]
    %v1135 = vld [vmem:[#allocation2 + $0xf0] sm:$0xff]
    %v1136 = vld [vmem:[#allocation2 + $0x110] sm:$0xff]
    %v1137 = vld [vmem:[#allocation2 + $0x130] sm:$0xff]
    %v1138 = vld [vmem:[#allocation2 + $0x150] sm:$0xff]
    %v1139 = vld [vmem:[#allocation2 + $0x170] sm:$0xff]
    %v1140 = vld [vmem:[#allocation2 + $0x190] sm:$0xff]
    %v1141 = vld [vmem:[#allocation2 + $0x1b0] sm:$0xff]
    %v1142 = vld [vmem:[#allocation2 + $0x1d0] sm:$0xff]
    %v1143 = vld [vmem:[#allocation2 + $0x1f0] sm:$0xff]
    %v1160 = vunpack.c.l.b16 %v1112
    %v1161 = vunpack.c.l.b16 %v1113
    %v1162 = vunpack.c.l.b16 %v1114
    %v1163 = vunpack.c.l.b16 %v1115
    %v1164 = vunpack.c.l.b16 %v1116
    %v1165 = vunpack.c.l.b16 %v1117
    %v1166 = vunpack.c.l.b16 %v1118
    %v1167 = vunpack.c.l.b16 %v1119
    %v1168 = vunpack.c.l.b16 %v1120
    %v1169 = vunpack.c.l.b16 %v1121
    %v1170 = vunpack.c.l.b16 %v1122
    %v1171 = vunpack.c.l.b16 %v1123
    %v1172 = vunpack.c.l.b16 %v1124
    %v1173 = vunpack.c.l.b16 %v1125
    %v1174 = vunpack.c.l.b16 %v1126
    %v1175 = vunpack.c.l.b16 %v1127
    %v1176 = vpack.c.b16 %v1161, %v1160
    %v1177 = vpack.c.b16 %v1163, %v1162
    %v1178 = vpack.c.b16 %v1165, %v1164
    %v1179 = vpack.c.b16 %v1167, %v1166
    %v1180 = vpack.c.b16 %v1169, %v1168
    %v1181 = vpack.c.b16 %v1171, %v1170
    %v1182 = vpack.c.b16 %v1173, %v1172
    %v1183 = vpack.c.b16 %v1175, %v1174
    %1192 = vmatprep.subr.bf16.mxu0 0
    %1193 = vmatpush1.bf16.msra.mxu0 %v1176
    %1194 = vmatprep.subr.bf16.mxu0 0
    %1195 = vmatpush1.bf16.msra.mxu0 %v1177
    %1196 = vmatprep.subr.bf16.mxu0 0
    %1197 = vmatpush1.bf16.msra.mxu0 %v1178
    %1198 = vmatprep.subr.bf16.mxu0 0
    %1199 = vmatpush1.bf16.msra.mxu0 %v1179
    %1200 = vmatprep.subr.bf16.mxu0 0
    %1201 = vmatpush1.bf16.msra.mxu0 %v1180
    %1202 = vmatprep.subr.bf16.mxu0 0
    %1203 = vmatpush1.bf16.msra.mxu0 %v1181
    %1204 = vmatprep.subr.bf16.mxu0 0
    %1205 = vmatpush1.bf16.msra.mxu0 %v1182
    %1206 = vmatprep.subr.bf16.mxu0 0
    %1207 = vmatpush1.bf16.msra.mxu0 %v1183
    %1208 = vmatprep.subr.bf16.mxu0 0
    %1209 = vmatpush1.bf16.msra.mxu0 0
    %1210 = vmatprep.subr.bf16.mxu0 0
    %1211 = vmatpush1.bf16.msra.mxu0 0
    %1212 = vmatprep.subr.bf16.mxu0 0
    %1213 = vmatpush1.bf16.msra.mxu0 0
    %1214 = vmatprep.subr.bf16.mxu0 0
    %1215 = vmatpush1.bf16.msra.mxu0 0
    %1216 = vmatprep.subr.bf16.mxu0 0
    %1217 = vmatpush1.bf16.msra.mxu0 0
    %1218 = vmatprep.subr.bf16.mxu0 0
    %1219 = vmatpush1.bf16.msra.mxu0 0
    %1220 = vmatprep.subr.bf16.mxu0 0
    %1221 = vmatpush1.bf16.msra.mxu0 0
    %1222 = vmatprep.subr.bf16.mxu0 0
    %1223 = vmatpush1.bf16.msra.mxu0 0
    %1224 = vmatprep.mubr.bf16.mxu0 0
    %1225 = vmatmul.mubr.bf16.gmra.mrb[0].mxu0 %v1104
    %v1226 = vpop.f32.mrb[0].mxu0
    %v1227 = vadd.f32 %v1128, %v1226
    %v1228 = vpop.f32.mrb[0].mxu0
    %v1229 = vpop.f32.mrb[0].mxu0
    %v1230 = vadd.f32 %v1129, %v1229
    %v1231 = vpop.f32.mrb[0].mxu0
    %1232 = vmatprep.mubr.bf16.mxu0 0
    %1233 = vmatmul.mubr.bf16.gmra.mrb[0].mxu0 %v1105
    %v1234 = vpop.f32.mrb[0].mxu0
    %v1235 = vadd.f32 %v1130, %v1234
    %v1236 = vpop.f32.mrb[0].mxu0
    %v1237 = vpop.f32.mrb[0].mxu0
    %v1238 = vadd.f32 %v1131, %v1237
    %v1239 = vpop.f32.mrb[0].mxu0
    %1240 = vmatprep.mubr.bf16.mxu0 0
    %1241 = vmatmul.mubr.bf16.gmra.mrb[0].mxu0 %v1106
    %v1242 = vpop.f32.mrb[0].mxu0
    %v1243 = vadd.f32 %v1132, %v1242
    %v1244 = vpop.f32.mrb[0].mxu0
    %v1245 = vpop.f32.mrb[0].mxu0
    %v1246 = vadd.f32 %v1133, %v1245
    %v1247 = vpop.f32.mrb[0].mxu0
    %1248 = vmatprep.mubr.bf16.mxu0 0
    %1249 = vmatmul.mubr.bf16.gmra.mrb[0].mxu0 %v1107
    %v1250 = vpop.f32.mrb[0].mxu0
    %v1251 = vadd.f32 %v1134, %v1250
    %v1252 = vpop.f32.mrb[0].mxu0
    %v1253 = vpop.f32.mrb[0].mxu0
    %v1254 = vadd.f32 %v1135, %v1253
    %v1255 = vpop.f32.mrb[0].mxu0
    %1256 = vmatprep.mubr.bf16.mxu0 0
    %1257 = vmatmul.mubr.bf16.gmra.mrb[0].mxu0 %v1108
    %v1258 = vpop.f32.mrb[0].mxu0
    %v1259 = vadd.f32 %v1136, %v1258
    %v1260 = vpop.f32.mrb[0].mxu0
    %v1261 = vpop.f32.mrb[0].mxu0
    %v1262 = vadd.f32 %v1137, %v1261
    %v1263 = vpop.f32.mrb[0].mxu0
    %1264 = vmatprep.mubr.bf16.mxu0 0
    %1265 = vmatmul.mubr.bf16.gmra.mrb[0].mxu0 %v1109
    %v1266 = vpop.f32.mrb[0].mxu0
    %v1267 = vadd.f32 %v1138, %v1266
    %v1268 = vpop.f32.mrb[0].mxu0
    %v1269 = vpop.f32.mrb[0].mxu0
    %v1270 = vadd.f32 %v1139, %v1269
    %v1271 = vpop.f32.mrb[0].mxu0
    %1272 = vmatprep.mubr.bf16.mxu0 0
    %1273 = vmatmul.mubr.bf16.gmra.mrb[0].mxu0 %v1110
    %v1274 = vpop.f32.mrb[0].mxu0
    %v1275 = vadd.f32 %v1140, %v1274
    %v1276 = vpop.f32.mrb[0].mxu0
    %v1277 = vpop.f32.mrb[0].mxu0
    %v1278 = vadd.f32 %v1141, %v1277
    %v1279 = vpop.f32.mrb[0].mxu0
    %1280 = vmatprep.mubr.bf16.mxu0 0
    %1281 = vmatmul.mubr.bf16.gmra.mrb[0].mxu0 %v1111
    %v1282 = vpop.f32.mrb[0].mxu0
    %v1283 = vadd.f32 %v1142, %v1282
    %v1284 = vpop.f32.mrb[0].mxu0
    %v1285 = vpop.f32.mrb[0].mxu0
    %v1286 = vadd.f32 %v1143, %v1285
    %v1287 = vpop.f32.mrb[0].mxu0
    %1288 = vdwg.mxu0
    %v1289 = vmul.f32 %v1227, 0.2
    %v1290 = vmul.f32 %v1230, 0.2
    %v1291 = vmul.f32 %v1235, 0.2
    %v1292 = vmul.f32 %v1238, 0.2
    %v1293 = vmul.f32 %v1243, 0.2
    %v1294 = vmul.f32 %v1246, 0.2
    %v1295 = vmul.f32 %v1251, 0.2
    %v1296 = vmul.f32 %v1254, 0.2
    %v1297 = vmul.f32 %v1259, 0.2
    %v1298 = vmul.f32 %v1262, 0.2
    %v1299 = vmul.f32 %v1267, 0.2
    %v1300 = vmul.f32 %v1270, 0.2
    %v1301 = vmul.f32 %v1275, 0.2
    %v1302 = vmul.f32 %v1278, 0.2
    %v1303 = vmul.f32 %v1283, 0.2
    %v1304 = vmul.f32 %v1286, 0.2
    %v1305 = vmax.f32 %v1227, %v1289
    %v1306 = vmax.f32 %v1230, %v1290
    %v1307 = vmax.f32 %v1235, %v1291
    %v1308 = vmax.f32 %v1238, %v1292
    %v1309 = vmax.f32 %v1243, %v1293
    %v1310 = vmax.f32 %v1246, %v1294
    %v1311 = vmax.f32 %v1251, %v1295
    %v1312 = vmax.f32 %v1254, %v1296
    %v1313 = vmax.f32 %v1259, %v1297
    %v1314 = vmax.f32 %v1262, %v1298
    %v1315 = vmax.f32 %v1267, %v1299
    %v1316 = vmax.f32 %v1270, %v1300
    %v1317 = vmax.f32 %v1275, %v1301
    %v1318 = vmax.f32 %v1278, %v1302
    %v1319 = vmax.f32 %v1283, %v1303
    %v1320 = vmax.f32 %v1286, %v1304
    %v1321 = vpack.c.bf16 %v1306, %v1305
    %v1322 = vpack.c.bf16 %v1308, %v1307
    %v1323 = vpack.c.bf16 %v1310, %v1309
    %v1324 = vpack.c.bf16 %v1312, %v1311
    %v1325 = vpack.c.bf16 %v1314, %v1313
    %v1326 = vpack.c.bf16 %v1316, %v1315
    %v1327 = vpack.c.bf16 %v1318, %v1317
    %v1328 = vpack.c.bf16 %v1320, %v1319
    %v1329 = vld [vmem:[#allocation14] sm:$0xf]
    %v1330 = vld [vmem:[#allocation14 + $0x4] sm:$0xf]
    %v1331 = vld [vmem:[#allocation14 + $0x8] sm:$0xf]
    %v1332 = vld [vmem:[#allocation14 + $0xc] sm:$0xf]
    %v1333 = vld [vmem:[#allocation14 + $0x10] sm:$0xf]
    %v1334 = vld [vmem:[#allocation14 + $0x14] sm:$0xf]
    %v1335 = vld [vmem:[#allocation14 + $0x18] sm:$0xf]
    %v1336 = vld [vmem:[#allocation14 + $0x1c] sm:$0xf]
    %v1337 = vld [vmem:[#allocation14 + $0x20] sm:$0xf]
    %v1338 = vld [vmem:[#allocation14 + $0x24] sm:$0xf]
    %v1339 = vld [vmem:[#allocation14 + $0x28] sm:$0xf]
    %v1340 = vld [vmem:[#allocation14 + $0x2c] sm:$0xf]
    %v1341 = vld [vmem:[#allocation14 + $0x30] sm:$0xf]
    %v1342 = vld [vmem:[#allocation14 + $0x34] sm:$0xf]
    %v1343 = vld [vmem:[#allocation14 + $0x38] sm:$0xf]
    %v1344 = vld [vmem:[#allocation14 + $0x3c] sm:$0xf]
    %v1345 = vld [vmem:[#allocation2 + $0x18] sm:$0xff]
    %v1346 = vld [vmem:[#allocation2 + $0x38] sm:$0xff]
    %v1347 = vld [vmem:[#allocation2 + $0x58] sm:$0xff]
    %v1348 = vld [vmem:[#allocation2 + $0x78] sm:$0xff]
    %v1349 = vld [vmem:[#allocation2 + $0x98] sm:$0xff]
    %v1350 = vld [vmem:[#allocation2 + $0xb8] sm:$0xff]
    %v1351 = vld [vmem:[#allocation2 + $0xd8] sm:$0xff]
    %v1352 = vld [vmem:[#allocation2 + $0xf8] sm:$0xff]
    %v1353 = vld [vmem:[#allocation2 + $0x118] sm:$0xff]
    %v1354 = vld [vmem:[#allocation2 + $0x138] sm:$0xff]
    %v1355 = vld [vmem:[#allocation2 + $0x158] sm:$0xff]
    %v1356 = vld [vmem:[#allocation2 + $0x178] sm:$0xff]
    %v1357 = vld [vmem:[#allocation2 + $0x198] sm:$0xff]
    %v1358 = vld [vmem:[#allocation2 + $0x1b8] sm:$0xff]
    %v1359 = vld [vmem:[#allocation2 + $0x1d8] sm:$0xff]
    %v1360 = vld [vmem:[#allocation2 + $0x1f8] sm:$0xff]
    %v1377 = vunpack.c.l.b16 %v1329
    %v1378 = vunpack.c.l.b16 %v1330
    %v1379 = vunpack.c.l.b16 %v1331
    %v1380 = vunpack.c.l.b16 %v1332
    %v1381 = vunpack.c.l.b16 %v1333
    %v1382 = vunpack.c.l.b16 %v1334
    %v1383 = vunpack.c.l.b16 %v1335
    %v1384 = vunpack.c.l.b16 %v1336
    %v1385 = vunpack.c.l.b16 %v1337
    %v1386 = vunpack.c.l.b16 %v1338
    %v1387 = vunpack.c.l.b16 %v1339
    %v1388 = vunpack.c.l.b16 %v1340
    %v1389 = vunpack.c.l.b16 %v1341
    %v1390 = vunpack.c.l.b16 %v1342
    %v1391 = vunpack.c.l.b16 %v1343
    %v1392 = vunpack.c.l.b16 %v1344
    %v1393 = vpack.c.b16 %v1378, %v1377
    %v1394 = vpack.c.b16 %v1380, %v1379
    %v1395 = vpack.c.b16 %v1382, %v1381
    %v1396 = vpack.c.b16 %v1384, %v1383
    %v1397 = vpack.c.b16 %v1386, %v1385
    %v1398 = vpack.c.b16 %v1388, %v1387
    %v1399 = vpack.c.b16 %v1390, %v1389
    %v1400 = vpack.c.b16 %v1392, %v1391
    %1409 = vmatprep.subr.bf16.mxu0 0
    %1410 = vmatpush1.bf16.msra.mxu0 %v1393
    %1411 = vmatprep.subr.bf16.mxu0 0
    %1412 = vmatpush1.bf16.msra.mxu0 %v1394
    %1413 = vmatprep.subr.bf16.mxu0 0
    %1414 = vmatpush1.bf16.msra.mxu0 %v1395
    %1415 = vmatprep.subr.bf16.mxu0 0
    %1416 = vmatpush1.bf16.msra.mxu0 %v1396
    %1417 = vmatprep.subr.bf16.mxu0 0
    %1418 = vmatpush1.bf16.msra.mxu0 %v1397
    %1419 = vmatprep.subr.bf16.mxu0 0
    %1420 = vmatpush1.bf16.msra.mxu0 %v1398
    %1421 = vmatprep.subr.bf16.mxu0 0
    %1422 = vmatpush1.bf16.msra.mxu0 %v1399
    %1423 = vmatprep.subr.bf16.mxu0 0
    %1424 = vmatpush1.bf16.msra.mxu0 %v1400
    %1425 = vmatprep.subr.bf16.mxu0 0
    %1426 = vmatpush1.bf16.msra.mxu0 0
    %1427 = vmatprep.subr.bf16.mxu0 0
    %1428 = vmatpush1.bf16.msra.mxu0 0
    %1429 = vmatprep.subr.bf16.mxu0 0
    %1430 = vmatpush1.bf16.msra.mxu0 0
    %1431 = vmatprep.subr.bf16.mxu0 0
    %1432 = vmatpush1.bf16.msra.mxu0 0
    %1433 = vmatprep.subr.bf16.mxu0 0
    %1434 = vmatpush1.bf16.msra.mxu0 0
    %1435 = vmatprep.subr.bf16.mxu0 0
    %1436 = vmatpush1.bf16.msra.mxu0 0
    %1437 = vmatprep.subr.bf16.mxu0 0
    %1438 = vmatpush1.bf16.msra.mxu0 0
    %1439 = vmatprep.subr.bf16.mxu0 0
    %1440 = vmatpush1.bf16.msra.mxu0 0
    %1441 = vmatprep.mubr.bf16.mxu0 0
    %1442 = vmatmul.mubr.bf16.gmra.mrb[0].mxu0 %v1321
    %v1443 = vpop.f32.mrb[0].mxu0
    %v1444 = vadd.f32 %v1345, %v1443
    %v1445 = vpop.f32.mrb[0].mxu0
    %v1446 = vpop.f32.mrb[0].mxu0
    %v1447 = vadd.f32 %v1346, %v1446
    %v1448 = vpop.f32.mrb[0].mxu0
    %1449 = vmatprep.mubr.bf16.mxu0 0
    %1450 = vmatmul.mubr.bf16.gmra.mrb[0].mxu0 %v1322
    %v1451 = vpop.f32.mrb[0].mxu0
    %v1452 = vadd.f32 %v1347, %v1451
    %v1453 = vpop.f32.mrb[0].mxu0
    %v1454 = vpop.f32.mrb[0].mxu0
    %v1455 = vadd.f32 %v1348, %v1454
    %v1456 = vpop.f32.mrb[0].mxu0
    %1457 = vmatprep.mubr.bf16.mxu0 0
    %1458 = vmatmul.mubr.bf16.gmra.mrb[0].mxu0 %v1323
    %v1459 = vpop.f32.mrb[0].mxu0
    %v1460 = vadd.f32 %v1349, %v1459
    %v1461 = vpop.f32.mrb[0].mxu0
    %v1462 = vpop.f32.mrb[0].mxu0
    %v1463 = vadd.f32 %v1350, %v1462
    %v1464 = vpop.f32.mrb[0].mxu0
    %1465 = vmatprep.mubr.bf16.mxu0 0
    %1466 = vmatmul.mubr.bf16.gmra.mrb[0].mxu0 %v1324
    %v1467 = vpop.f32.mrb[0].mxu0
    %v1468 = vadd.f32 %v1351, %v1467
    %v1469 = vpop.f32.mrb[0].mxu0
    %v1470 = vpop.f32.mrb[0].mxu0
    %v1471 = vadd.f32 %v1352, %v1470
    %v1472 = vpop.f32.mrb[0].mxu0
    %1473 = vmatprep.mubr.bf16.mxu0 0
    %1474 = vmatmul.mubr.bf16.gmra.mrb[0].mxu0 %v1325
    %v1475 = vpop.f32.mrb[0].mxu0
    %v1476 = vadd.f32 %v1353, %v1475
    %v1477 = vpop.f32.mrb[0].mxu0
    %v1478 = vpop.f32.mrb[0].mxu0
    %v1479 = vadd.f32 %v1354, %v1478
    %v1480 = vpop.f32.mrb[0].mxu0
    %1481 = vmatprep.mubr.bf16.mxu0 0
    %1482 = vmatmul.mubr.bf16.gmra.mrb[0].mxu0 %v1326
    %v1483 = vpop.f32.mrb[0].mxu0
    %v1484 = vadd.f32 %v1355, %v1483
    %v1485 = vpop.f32.mrb[0].mxu0
    %v1486 = vpop.f32.mrb[0].mxu0
    %v1487 = vadd.f32 %v1356, %v1486
    %v1488 = vpop.f32.mrb[0].mxu0
    %1489 = vmatprep.mubr.bf16.mxu0 0
    %1490 = vmatmul.mubr.bf16.gmra.mrb[0].mxu0 %v1327
    %v1491 = vpop.f32.mrb[0].mxu0
    %v1492 = vadd.f32 %v1357, %v1491
    %v1493 = vpop.f32.mrb[0].mxu0
    %v1494 = vpop.f32.mrb[0].mxu0
    %v1495 = vadd.f32 %v1358, %v1494
    %v1496 = vpop.f32.mrb[0].mxu0
    %1497 = vmatprep.mubr.bf16.mxu0 0
    %1498 = vmatmul.mubr.bf16.gmra.mrb[0].mxu0 %v1328
    %v1499 = vpop.f32.mrb[0].mxu0
    %v1500 = vadd.f32 %v1359, %v1499
    %v1501 = vpop.f32.mrb[0].mxu0
    %v1502 = vpop.f32.mrb[0].mxu0
    %v1503 = vadd.f32 %v1360, %v1502
    %v1504 = vpop.f32.mrb[0].mxu0
    %1505 = vdwg.mxu0
    %v1506 = vtanh.pop %v1444
    %v1507 = vtanh.pop %v1447
    %v1508 = vtanh.pop %v1452
    %v1509 = vtanh.pop %v1455
    %v1510 = vtanh.pop %v1460
    %v1511 = vtanh.pop %v1463
    %v1512 = vtanh.pop %v1468
    %v1513 = vtanh.pop %v1471
    %v1514 = vtanh.pop %v1476
    %v1515 = vtanh.pop %v1479
    %v1516 = vtanh.pop %v1484
    %v1517 = vtanh.pop %v1487
    %v1518 = vtanh.pop %v1492
    %v1519 = vtanh.pop %v1495
    %v1520 = vtanh.pop %v1500
    %v1521 = vtanh.pop %v1503
    %1522 = vst [vmem:[#allocation15] sm:$0xff] %v1506
    %1523 = vst [vmem:[#allocation15 + $0x8] sm:$0xff] %v1507
    %1524 = vst [vmem:[#allocation15 + $0x10] sm:$0xff] %v1508
    %1525 = vst [vmem:[#allocation15 + $0x18] sm:$0xff] %v1509
    %1526 = vst [vmem:[#allocation15 + $0x20] sm:$0xff] %v1510
    %1527 = vst [vmem:[#allocation15 + $0x28] sm:$0xff] %v1511
    %1528 = vst [vmem:[#allocation15 + $0x30] sm:$0xff] %v1512
    %1529 = vst [vmem:[#allocation15 + $0x38] sm:$0xff] %v1513
    %1530 = vst [vmem:[#allocation15 + $0x40] sm:$0xff] %v1514
    %1531 = vst [vmem:[#allocation15 + $0x48] sm:$0xff] %v1515
    %1532 = vst [vmem:[#allocation15 + $0x50] sm:$0xff] %v1516
    %1533 = vst [vmem:[#allocation15 + $0x58] sm:$0xff] %v1517
    %1534 = vst [vmem:[#allocation15 + $0x60] sm:$0xff] %v1518
    %1535 = vst [vmem:[#allocation15 + $0x68] sm:$0xff] %v1519
    %1536 = vst [vmem:[#allocation15 + $0x70] sm:$0xff] %v1520
    %1537 = vst [vmem:[#allocation15 + $0x78] sm:$0xff] %v1521
    // Predicated region
    $region62: #{tpu_custom_call.1} parent=1 // pred_check
      _
    $region63: #{tpu_custom_call.1} parent=1 // pred_check_branch
      %1539 = sbr.rel (0) target = $region65
    $region64: #{tpu_custom_call.1} parent=1 // pred_region
      %s1541 = ssub.s32 2048, 2048
      %1542 = vsyncadd [#allocation5], %s1541
      %s1543 = sshll.u32 [#allocation15], 4
      %s1544 = int_to_ptr.vmem [resolvable:$true] %s1543
      %1549 = dma.vmem_to_hbm [thread:$0]  %s1544, 2048, %s8, [#allocation5], 128, 128, 8
    $region65: #{tpu_custom_call.1} parent=1 // pred_fallthru
      _
    // Predicated region
    $region66: #{tpu_custom_call.1} parent=1 // pred_check
      _
    $region67: #{tpu_custom_call.1} parent=1 // pred_check_branch
      %1551 = sbr.rel (0) target = $region69
    $region68: #{tpu_custom_call.1} parent=1 // pred_region
      %1552 = dma.done [#allocation5], 2048
    $region69: #{tpu_custom_call.1} parent=1 // pred_fallthru
      _
    %1553 = vsyncpa [#allocation4], 1
    %1554 = vsyncpa [#allocation7], 1
    %1555 = vsyncpa [#allocation10], 1
    %1556 = vsyncpa [#allocation13], 1
    %1557 = vsyncpa [#allocation5], 1

</llo_original>
